<compile_context>
chip_gen: v7x
topology: tpu7x:2x2x1
jax: 0.10.0
libtpu: 0.0.40
codegen_flags: <defaults>
</compile_context>

<pallas_src>
import math

import jax
import jax.numpy as jnp
import numpy as np
from jax.experimental import pallas as pl
from jax.experimental.pallas import tpu as pltpu

# Set to jnp.bfloat16 for ~2x MXU throughput on v5e/v6e/v7x (~1e-3 rel error).
COMPUTE_DTYPE = jnp.float32


def _round_up(a, b):
    return (a + b - 1) // b * b


def _cdiv(a, b):
    return (a + b - 1) // b


# ----------------------------- Pallas kernel --------------------------------
def _stft_pallas(chunks, basis, *, tm, c_terms, cpad, n_frames_pad):
    """out[b, j, :] = sum_c chunks[b, j + c, :] @ basis[c*W:(c+1)*W, :].

    chunks: (B, n_chunks, W)  raw signal split into hop-sized rows (or frames
            themselves when c_terms == 1).
    basis : (n_fft, Npad)     interleaved re/im DFT basis, lane-padded.
    """
    B, n_chunks, W = chunks.shape
    n_fft, n_pad = basis.shape
    num_tiles = n_frames_pad // tm

    def kernel(sig_ref, basis_ref, out_ref):
        i = pl.program_id(1)
        start = pl.multiple_of(i * tm, 8)                      # tm is a multiple of 8
        window = sig_ref[0, pl.ds(start, tm + cpad), :]        # (tm+cpad, W)
        acc = jnp.zeros((tm, n_pad), jnp.float32)
        for c in range(c_terms):                               # small, unrolled
            lhs = window[c:c + tm, :]                          # shifted chunk rows
            rhs = basis_ref[c * W:(c + 1) * W, :]
            acc = acc + jnp.dot(lhs, rhs, preferred_element_type=jnp.float32)
        out_ref[0, :, :] = acc

    return pl.pallas_call(
        kernel,
        out_shape=jax.ShapeDtypeStruct((B, n_frames_pad, n_pad), jnp.float32),
        grid_spec=pltpu.PrefetchScalarGridSpec(
            num_scalar_prefetch=0,
            grid=(B, num_tiles),
            in_specs=[
                # raw signal: resident per batch (re-fetched only when b changes)
                pl.BlockSpec((1, n_chunks, W), lambda b, i: (b, 0, 0)),
                # basis: resident for the whole kernel
                pl.BlockSpec((n_fft, n_pad), lambda b, i: (0, 0)),
            ],
            out_specs=pl.BlockSpec((1, tm, n_pad), lambda b, i: (b, i, 0)),
        ),
        compiler_params=pltpu.CompilerParams(
            dimension_semantics=("parallel", "parallel")),
    )(chunks, basis)


# ------------------------------- glue ---------------------------------------
def hann_window(win_length):
    # torch.hann_window(periodic=True)
    n = jnp.arange(win_length, dtype=jnp.float32)
    return 0.5 - 0.5 * jnp.cos(2.0 * math.pi * n / win_length)


def hamming_window(win_length):
    # torch.hamming_window(periodic=True)
    n = jnp.arange(win_length, dtype=jnp.float32)
    return 0.54 - 0.46 * jnp.cos(2.0 * math.pi * n / win_length)


def _fused_dft_basis(n_fft, n_freq, window_padded, normalized, n_pad):
    """Interleaved [re, im] DFT basis, window + normalization folded in."""
    n = jnp.arange(n_fft, dtype=jnp.int32)[:, None]
    f = jnp.arange(n_freq, dtype=jnp.int32)[None, :]
    ang = (2.0 * math.pi / n_fft) * ((n * f) % n_fft).astype(jnp.float32)
    scale = (1.0 / math.sqrt(n_fft)) if normalized else 1.0
    w = window_padded.astype(jnp.float32)[:, None] * jnp.float32(scale)
    re = w * jnp.cos(ang)                                   # (n_fft, n_freq)
    im = -w * jnp.sin(ang)
    fused = jnp.stack([re, im], axis=-1).reshape(n_fft, 2 * n_freq)  # re/im interleaved
    return jnp.pad(fused, ((0, 0), (0, n_pad - 2 * n_freq)))


def stft(x, n_fft, hop_length=None, win_length=None, window=None, center=True,
         pad_mode="reflect", normalized=False, onesided=True):
    """torch.stft(..., return_complex=True) followed by torch.view_as_real."""
    if hop_length is None:
        hop_length = n_fft // 4
    if win_length is None:
        win_length = n_fft
    if window is None:
        window = jnp.ones((win_length,), jnp.float32)

    # center-pad the window to n_fft, like torch does
    left = (n_fft - win_length) // 2
    wpad = jnp.zeros((n_fft,), jnp.float32).at[left:left + win_length].set(window)

    squeeze = x.ndim == 1
    if squeeze:
        x = x[None, :]
    x = x.astype(jnp.float32)

    if center:
        pad = n_fft // 2
        mode = "reflect" if pad_mode == "reflect" else "constant"
        x = jnp.pad(x, ((0, 0), (pad, pad)), mode=mode)

    B, T = x.shape
    n_frames = 1 + (T - n_fft) // hop_length
    n_freq = n_fft // 2 + 1 if onesided else n_fft
    n_pad = _round_up(2 * n_freq, 128)            # lane-dense output width

    tm = min(256, _round_up(n_frames, 8))         # frame-tile (sublane) size
    n_frames_pad = _round_up(n_frames, tm)

    if n_fft % hop_length == 0 and n_fft // hop_length <= 8:
        # Overlapped framing happens inside the kernel as C shifted chunk dots;
        # only the raw signal (1x bytes) travels HBM -> VMEM.
        c_terms = n_fft // hop_length
        chunk_w = hop_length
        cpad = _round_up(c_terms - 1, 8)
        n_chunks = max(_cdiv(T, chunk_w), n_frames_pad + cpad)
        xb = jnp.pad(x, ((0, 0), (0, n_chunks * chunk_w - T)))
        chunks = xb.reshape(B, n_chunks, chunk_w)
    else:
        # TODO(synk): generic hop (hop does not divide n_fft) still materializes
        # the framed copy via gather; not exercised by this model.
        c_terms, chunk_w, cpad = 1, n_fft, 0
        n_chunks = n_frames_pad
        idx = jnp.arange(n_frames)[:, None] * hop_length + jnp.arange(n_fft)[None, :]
        frames = jnp.take(x, idx, axis=-1)         # (B, n_frames, n_fft)
        chunks = jnp.pad(frames, ((0, 0), (0, n_frames_pad - n_frames), (0, 0)))

    basis = _fused_dft_basis(n_fft, n_freq, wpad, normalized, n_pad)

    out = _stft_pallas(chunks.astype(COMPUTE_DTYPE), basis.astype(COMPUTE_DTYPE),
                       tm=tm, c_terms=c_terms, cpad=cpad, n_frames_pad=n_frames_pad)

    out = out[:, :n_frames, :2 * n_freq]           # drop tile / lane padding
    out = out.reshape(B, n_frames, n_freq, 2)      # interleaved -> view_as_real pairs
    out = jnp.transpose(out, (0, 2, 1, 3))         # (B, n_freq, n_frames, 2)
    if squeeze:
        out = out[0]
    return out


def model_forward(x, y):
    out0 = stft(x, n_fft=64, window=hann_window(44), win_length=44,
                center=True, normalized=True, onesided=True)
    out1 = stft(x, n_fft=128, center=False, onesided=True)
    out2 = stft(y, n_fft=512, window=hamming_window(256), win_length=256,
                hop_length=128, center=True, pad_mode="constant", onesided=True)
    out3 = stft(y, n_fft=512, center=True, onesided=False)
    return out0, out1, out2, out3


# ------------------------- numpy reference (host) ----------------------------
def _stft_ref_np(x, n_fft, hop_length=None, win_length=None, window=None,
                 center=True, pad_mode="reflect", normalized=False, onesided=True):
    if hop_length is None:
        hop_length = n_fft // 4
    if win_length is None:
        win_length = n_fft
    if window is None:
        window = np.ones(win_length, np.float64)
    window = np.asarray(window, np.float64)
    left = (n_fft - win_length) // 2
    w = np.zeros(n_fft, np.float64)
    w[left:left + win_length] = window
    x = np.asarray(x, np.float64)
    squeeze = x.ndim == 1
    if squeeze:
        x = x[None]
    if center:
        p = n_fft // 2
        x = np.pad(x, ((0, 0), (p, p)),
                   mode="reflect" if pad_mode == "reflect" else "constant")
    B, T = x.shape
    n_frames = 1 + (T - n_fft) // hop_length
    frames = np.stack([x[:, j * hop_length:j * hop_length + n_fft]
                       for j in range(n_frames)], axis=1)
    spec = np.fft.fft(frames * w, axis=-1)
    if onesided:
        spec = spec[..., : n_fft // 2 + 1]
    if normalized:
        spec = spec / math.sqrt(n_fft)
    out = np.stack([spec.real, spec.imag], axis=-1)
    out = np.transpose(out, (0, 2, 1, 3)).astype(np.float32)
    return out[0] if squeeze else out


if __name__ == "__main__":
    key = jax.random.PRNGKey(0)
    kx, ky = jax.random.split(key)
    x = jax.random.uniform(kx, (2, 320), dtype=jnp.float32)
    y = jax.random.uniform(ky, (640,), dtype=jnp.float32)

    fwd = jax.jit(model_forward)
    outs = jax.block_until_ready(fwd(x, y))

    expected_shapes = [
        (2, 33, 1 + 320 // 16, 2),                   # out0: n_fft=64, hop=16, centered
        (2, 65, 1 + (320 - 128) // 32, 2),           # out1: n_fft=128, not centered
        (257, 1 + (640 + 512 - 512) // 128, 2),      # out2: n_fft=512, hop=128, centered
        (512, 1 + (640 + 512 - 512) // 128, 2),      # out3: n_fft=512, two-sided
    ]
    refs = [
        _stft_ref_np(x, 64, window=hann_window(44), win_length=44,
                     center=True, normalized=True, onesided=True),
        _stft_ref_np(x, 128, center=False, onesided=True),
        _stft_ref_np(y, 512, window=hamming_window(256), win_length=256,
                     hop_length=128, center=True, pad_mode="constant", onesided=True),
        _stft_ref_np(y, 512, center=True, onesided=False),
    ]
    for o, s, r in zip(outs, expected_shapes, refs):
        assert o.shape == tuple(s), (o.shape, s)
        assert o.dtype == jnp.float32
        err = float(np.max(np.abs(np.asarray(o) - r)))
        tol = 1e-3 * (1.0 + float(np.max(np.abs(r))))
        assert err < tol, (err, tol)
    print("KERNEL_OK")
</pallas_src>

<mosaic_0001>
module attributes {stable_mosaic.version = 11 : i64} {
  func.func @kernel(%arg0: i32, %arg1: i32, %arg2: memref<1x16x128xf32, #tpu.memory_space<vmem>>, %arg3: memref<512x640xf32, #tpu.memory_space<vmem>>, %arg4: memref<1x8x640xf32, #tpu.memory_space<vmem>>) attributes {dimension_semantics = [#tpu.dimension_semantics<parallel>, #tpu.dimension_semantics<parallel>], iteration_bounds = array<i64: 1, 1>, scalar_prefetch = 0 : i64, scratch_operands = 0 : i64, tpu.core_type = #tpu.core_type<tc>, window_params = [{transform_indices = @transform_0, window_bounds = array<i64: 1, 16, 128>}, {pipeline_mode = #tpu.pipeline_mode<synchronous>, transform_indices = @transform_1, window_bounds = array<i64: 512, 640>}, {transform_indices = @transform_2, window_bounds = array<i64: 1, 8, 640>}]} {
    %c8_i32 = arith.constant 8 : i32
    %0 = arith.muli %arg1, %c8_i32 : i32
    %1 = tpu.assume_multiple %0, 8 : i32
    %c0 = arith.constant 0 : index
    %2 = arith.index_cast %1 : i32 to index
    %c0_0 = arith.constant 0 : index
    %3 = vector.load %arg2[%c0, %2, %c0_0] : memref<1x16x128xf32, #tpu.memory_space<vmem>>, vector<1x16x128xf32>
    %4 = vector.shape_cast %3 : vector<1x16x128xf32> to vector<16x128xf32>
    %cst = arith.constant 0.000000e+00 : f32
    %5 = vector.broadcast %cst : f32 to vector<8x640xf32>
    %6 = vector.extract_strided_slice %4 {offsets = [0, 0], sizes = [8, 128], strides = [1, 1]} : vector<16x128xf32> to vector<8x128xf32>
    %c0_1 = arith.constant 0 : index
    %c0_2 = arith.constant 0 : index
    %7 = vector.load %arg3[%c0_1, %c0_2] : memref<512x640xf32, #tpu.memory_space<vmem>>, vector<128x640xf32>
    %cst_3 = arith.constant dense<0.000000e+00> : vector<8x640xf32>
    %8 = tpu.matmul %6, %7, %cst_3 {dimension_numbers = #tpu.dot_dimension_numbers<[1], [0], [0], [1], [0, 0, 1, 1], [], []>} : vector<8x128xf32>, vector<128x640xf32>, vector<8x640xf32> -> vector<8x640xf32>
    %9 = arith.addf %5, %8 : vector<8x640xf32>
    %10 = vector.extract_strided_slice %4 {offsets = [1, 0], sizes = [8, 128], strides = [1, 1]} : vector<16x128xf32> to vector<8x128xf32>
    %c128 = arith.constant 128 : index
    %c0_4 = arith.constant 0 : index
    %11 = vector.load %arg3[%c128, %c0_4] : memref<512x640xf32, #tpu.memory_space<vmem>>, vector<128x640xf32>
    %cst_5 = arith.constant dense<0.000000e+00> : vector<8x640xf32>
    %12 = tpu.matmul %10, %11, %cst_5 {dimension_numbers = #tpu.dot_dimension_numbers<[1], [0], [0], [1], [0, 0, 1, 1], [], []>} : vector<8x128xf32>, vector<128x640xf32>, vector<8x640xf32> -> vector<8x640xf32>
    %13 = arith.addf %9, %12 : vector<8x640xf32>
    %14 = vector.extract_strided_slice %4 {offsets = [2, 0], sizes = [8, 128], strides = [1, 1]} : vector<16x128xf32> to vector<8x128xf32>
    %c256 = arith.constant 256 : index
    %c0_6 = arith.constant 0 : index
    %15 = vector.load %arg3[%c256, %c0_6] : memref<512x640xf32, #tpu.memory_space<vmem>>, vector<128x640xf32>
    %cst_7 = arith.constant dense<0.000000e+00> : vector<8x640xf32>
    %16 = tpu.matmul %14, %15, %cst_7 {dimension_numbers = #tpu.dot_dimension_numbers<[1], [0], [0], [1], [0, 0, 1, 1], [], []>} : vector<8x128xf32>, vector<128x640xf32>, vector<8x640xf32> -> vector<8x640xf32>
    %17 = arith.addf %13, %16 : vector<8x640xf32>
    %18 = vector.extract_strided_slice %4 {offsets = [3, 0], sizes = [8, 128], strides = [1, 1]} : vector<16x128xf32> to vector<8x128xf32>
    %c384 = arith.constant 384 : index
    %c0_8 = arith.constant 0 : index
    %19 = vector.load %arg3[%c384, %c0_8] : memref<512x640xf32, #tpu.memory_space<vmem>>, vector<128x640xf32>
    %cst_9 = arith.constant dense<0.000000e+00> : vector<8x640xf32>
    %20 = tpu.matmul %18, %19, %cst_9 {dimension_numbers = #tpu.dot_dimension_numbers<[1], [0], [0], [1], [0, 0, 1, 1], [], []>} : vector<8x128xf32>, vector<128x640xf32>, vector<8x640xf32> -> vector<8x640xf32>
    %21 = arith.addf %17, %20 : vector<8x640xf32>
    %c0_10 = arith.constant 0 : index
    %c0_11 = arith.constant 0 : index
    %c0_12 = arith.constant 0 : index
    %22 = vector.load %arg4[%c0_10, %c0_11, %c0_12] : memref<1x8x640xf32, #tpu.memory_space<vmem>>, vector<1x8x640xf32>
    %23 = vector.shape_cast %22 : vector<1x8x640xf32> to vector<8x640xf32>
    %24 = vector.shape_cast %21 : vector<8x640xf32> to vector<1x8x640xf32>
    tpu.vector_store %arg4[%c0_10, %c0_11, %c0_12], %24 {strides = array<i32>} : memref<1x8x640xf32, #tpu.memory_space<vmem>>, vector<1x8x640xf32>,
    return
  }
  func.func @transform_0(%arg0: i32, %arg1: i32) -> (i32, i32, i32) {
    %c0_i32 = arith.constant 0 : i32
    %c0_i32_0 = arith.constant 0 : i32
    %c0_i32_1 = arith.constant 0 : i32
    return %arg0, %c0_i32, %c0_i32_0 : i32, i32, i32
  }
  func.func @transform_1(%arg0: i32, %arg1: i32) -> (i32, i32) {
    %c0_i32 = arith.constant 0 : i32
    %c0_i32_0 = arith.constant 0 : i32
    %c0_i32_1 = arith.constant 0 : i32
    return %c0_i32, %c0_i32_0 : i32, i32
  }
  func.func @transform_2(%arg0: i32, %arg1: i32) -> (i32, i32, i32) {
    %c0_i32 = arith.constant 0 : i32
    %c0_i32_0 = arith.constant 0 : i32
    return %arg0, %arg1, %c0_i32 : i32, i32, i32
  }
}

module attributes {stable_mosaic.version = 11 : i64} {
  func.func @kernel(%arg0: i32, %arg1: i32, %arg2: memref<1x32x16xf32, #tpu.memory_space<vmem>>, %arg3: memref<64x128xf32, #tpu.memory_space<vmem>>, %arg4: memref<1x24x128xf32, #tpu.memory_space<vmem>>) attributes {dimension_semantics = [#tpu.dimension_semantics<parallel>, #tpu.dimension_semantics<parallel>], iteration_bounds = array<i64: 2, 1>, scalar_prefetch = 0 : i64, scratch_operands = 0 : i64, tpu.core_type = #tpu.core_type<tc>, window_params = [{transform_indices = @transform_0, window_bounds = array<i64: 1, 32, 16>}, {pipeline_mode = #tpu.pipeline_mode<synchronous>, transform_indices = @transform_1, window_bounds = array<i64: 64, 128>}, {transform_indices = @transform_2, window_bounds = array<i64: 1, 24, 128>}]} {
    %c24_i32 = arith.constant 24 : i32
    %0 = arith.muli %arg1, %c24_i32 : i32
    %1 = tpu.assume_multiple %0, 8 : i32
    %c0 = arith.constant 0 : index
    %2 = arith.index_cast %1 : i32 to index
    %c0_0 = arith.constant 0 : index
    %3 = vector.load %arg2[%c0, %2, %c0_0] : memref<1x32x16xf32, #tpu.memory_space<vmem>>, vector<1x32x16xf32>
    %4 = vector.shape_cast %3 : vector<1x32x16xf32> to vector<32x16xf32>
    %cst = arith.constant 0.000000e+00 : f32
    %5 = vector.broadcast %cst : f32 to vector<24x128xf32>
    %6 = vector.extract_strided_slice %4 {offsets = [0, 0], sizes = [24, 16], strides = [1, 1]} : vector<32x16xf32> to vector<24x16xf32>
    %c0_1 = arith.constant 0 : index
    %c0_2 = arith.constant 0 : index
    %7 = vector.load %arg3[%c0_1, %c0_2] : memref<64x128xf32, #tpu.memory_space<vmem>>, vector<16x128xf32>
    %cst_3 = arith.constant dense<0.000000e+00> : vector<24x128xf32>
    %8 = tpu.matmul %6, %7, %cst_3 {dimension_numbers = #tpu.dot_dimension_numbers<[1], [0], [0], [1], [0, 0, 1, 1], [], []>} : vector<24x16xf32>, vector<16x128xf32>, vector<24x128xf32> -> vector<24x128xf32>
    %9 = arith.addf %5, %8 : vector<24x128xf32>
    %10 = vector.extract_strided_slice %4 {offsets = [1, 0], sizes = [24, 16], strides = [1, 1]} : vector<32x16xf32> to vector<24x16xf32>
    %c16 = arith.constant 16 : index
    %c0_4 = arith.constant 0 : index
    %11 = vector.load %arg3[%c16, %c0_4] : memref<64x128xf32, #tpu.memory_space<vmem>>, vector<16x128xf32>
    %cst_5 = arith.constant dense<0.000000e+00> : vector<24x128xf32>
    %12 = tpu.matmul %10, %11, %cst_5 {dimension_numbers = #tpu.dot_dimension_numbers<[1], [0], [0], [1], [0, 0, 1, 1], [], []>} : vector<24x16xf32>, vector<16x128xf32>, vector<24x128xf32> -> vector<24x128xf32>
    %13 = arith.addf %9, %12 : vector<24x128xf32>
    %14 = vector.extract_strided_slice %4 {offsets = [2, 0], sizes = [24, 16], strides = [1, 1]} : vector<32x16xf32> to vector<24x16xf32>
    %c32 = arith.constant 32 : index
    %c0_6 = arith.constant 0 : index
    %15 = vector.load %arg3[%c32, %c0_6] : memref<64x128xf32, #tpu.memory_space<vmem>>, vector<16x128xf32>
    %cst_7 = arith.constant dense<0.000000e+00> : vector<24x128xf32>
    %16 = tpu.matmul %14, %15, %cst_7 {dimension_numbers = #tpu.dot_dimension_numbers<[1], [0], [0], [1], [0, 0, 1, 1], [], []>} : vector<24x16xf32>, vector<16x128xf32>, vector<24x128xf32> -> vector<24x128xf32>
    %17 = arith.addf %13, %16 : vector<24x128xf32>
    %18 = vector.extract_strided_slice %4 {offsets = [3, 0], sizes = [24, 16], strides = [1, 1]} : vector<32x16xf32> to vector<24x16xf32>
    %c48 = arith.constant 48 : index
    %c0_8 = arith.constant 0 : index
    %19 = vector.load %arg3[%c48, %c0_8] : memref<64x128xf32, #tpu.memory_space<vmem>>, vector<16x128xf32>
    %cst_9 = arith.constant dense<0.000000e+00> : vector<24x128xf32>
    %20 = tpu.matmul %18, %19, %cst_9 {dimension_numbers = #tpu.dot_dimension_numbers<[1], [0], [0], [1], [0, 0, 1, 1], [], []>} : vector<24x16xf32>, vector<16x128xf32>, vector<24x128xf32> -> vector<24x128xf32>
    %21 = arith.addf %17, %20 : vector<24x128xf32>
    %c0_10 = arith.constant 0 : index
    %c0_11 = arith.constant 0 : index
    %c0_12 = arith.constant 0 : index
    %22 = vector.load %arg4[%c0_10, %c0_11, %c0_12] : memref<1x24x128xf32, #tpu.memory_space<vmem>>, vector<1x24x128xf32>
    %23 = vector.shape_cast %22 : vector<1x24x128xf32> to vector<24x128xf32>
    %24 = vector.shape_cast %21 : vector<24x128xf32> to vector<1x24x128xf32>
    tpu.vector_store %arg4[%c0_10, %c0_11, %c0_12], %24 {strides = array<i32>} : memref<1x24x128xf32, #tpu.memory_space<vmem>>, vector<1x24x128xf32>,
    return
  }
  func.func @transform_0(%arg0: i32, %arg1: i32) -> (i32, i32, i32) {
    %c0_i32 = arith.constant 0 : i32
    %c0_i32_0 = arith.constant 0 : i32
    %c0_i32_1 = arith.constant 0 : i32
    return %arg0, %c0_i32, %c0_i32_0 : i32, i32, i32
  }
  func.func @transform_1(%arg0: i32, %arg1: i32) -> (i32, i32) {
    %c0_i32 = arith.constant 0 : i32
    %c0_i32_0 = arith.constant 0 : i32
    %c0_i32_1 = arith.constant 0 : i32
    return %c0_i32, %c0_i32_0 : i32, i32
  }
  func.func @transform_2(%arg0: i32, %arg1: i32) -> (i32, i32, i32) {
    %c0_i32 = arith.constant 0 : i32
    %c0_i32_0 = arith.constant 0 : i32
    return %arg0, %arg1, %c0_i32 : i32, i32, i32
  }
}

module attributes {stable_mosaic.version = 11 : i64} {
  func.func @kernel(%arg0: i32, %arg1: i32, %arg2: memref<1x16x128xf32, #tpu.memory_space<vmem>>, %arg3: memref<512x1024xf32, #tpu.memory_space<vmem>>, %arg4: memref<1x8x1024xf32, #tpu.memory_space<vmem>>) attributes {dimension_semantics = [#tpu.dimension_semantics<parallel>, #tpu.dimension_semantics<parallel>], iteration_bounds = array<i64: 1, 1>, scalar_prefetch = 0 : i64, scratch_operands = 0 : i64, tpu.core_type = #tpu.core_type<tc>, window_params = [{transform_indices = @transform_0, window_bounds = array<i64: 1, 16, 128>}, {pipeline_mode = #tpu.pipeline_mode<synchronous>, transform_indices = @transform_1, window_bounds = array<i64: 512, 1024>}, {transform_indices = @transform_2, window_bounds = array<i64: 1, 8, 1024>}]} {
    %c8_i32 = arith.constant 8 : i32
    %0 = arith.muli %arg1, %c8_i32 : i32
    %1 = tpu.assume_multiple %0, 8 : i32
    %c0 = arith.constant 0 : index
    %2 = arith.index_cast %1 : i32 to index
    %c0_0 = arith.constant 0 : index
    %3 = vector.load %arg2[%c0, %2, %c0_0] : memref<1x16x128xf32, #tpu.memory_space<vmem>>, vector<1x16x128xf32>
    %4 = vector.shape_cast %3 : vector<1x16x128xf32> to vector<16x128xf32>
    %cst = arith.constant 0.000000e+00 : f32
    %5 = vector.broadcast %cst : f32 to vector<8x1024xf32>
    %6 = vector.extract_strided_slice %4 {offsets = [0, 0], sizes = [8, 128], strides = [1, 1]} : vector<16x128xf32> to vector<8x128xf32>
    %c0_1 = arith.constant 0 : index
    %c0_2 = arith.constant 0 : index
    %7 = vector.load %arg3[%c0_1, %c0_2] : memref<512x1024xf32, #tpu.memory_space<vmem>>, vector<128x1024xf32>
    %cst_3 = arith.constant dense<0.000000e+00> : vector<8x1024xf32>
    %8 = tpu.matmul %6, %7, %cst_3 {dimension_numbers = #tpu.dot_dimension_numbers<[1], [0], [0], [1], [0, 0, 1, 1], [], []>} : vector<8x128xf32>, vector<128x1024xf32>, vector<8x1024xf32> -> vector<8x1024xf32>
    %9 = arith.addf %5, %8 : vector<8x1024xf32>
    %10 = vector.extract_strided_slice %4 {offsets = [1, 0], sizes = [8, 128], strides = [1, 1]} : vector<16x128xf32> to vector<8x128xf32>
    %c128 = arith.constant 128 : index
    %c0_4 = arith.constant 0 : index
    %11 = vector.load %arg3[%c128, %c0_4] : memref<512x1024xf32, #tpu.memory_space<vmem>>, vector<128x1024xf32>
    %cst_5 = arith.constant dense<0.000000e+00> : vector<8x1024xf32>
    %12 = tpu.matmul %10, %11, %cst_5 {dimension_numbers = #tpu.dot_dimension_numbers<[1], [0], [0], [1], [0, 0, 1, 1], [], []>} : vector<8x128xf32>, vector<128x1024xf32>, vector<8x1024xf32> -> vector<8x1024xf32>
    %13 = arith.addf %9, %12 : vector<8x1024xf32>
    %14 = vector.extract_strided_slice %4 {offsets = [2, 0], sizes = [8, 128], strides = [1, 1]} : vector<16x128xf32> to vector<8x128xf32>
    %c256 = arith.constant 256 : index
    %c0_6 = arith.constant 0 : index
    %15 = vector.load %arg3[%c256, %c0_6] : memref<512x1024xf32, #tpu.memory_space<vmem>>, vector<128x1024xf32>
    %cst_7 = arith.constant dense<0.000000e+00> : vector<8x1024xf32>
    %16 = tpu.matmul %14, %15, %cst_7 {dimension_numbers = #tpu.dot_dimension_numbers<[1], [0], [0], [1], [0, 0, 1, 1], [], []>} : vector<8x128xf32>, vector<128x1024xf32>, vector<8x1024xf32> -> vector<8x1024xf32>
    %17 = arith.addf %13, %16 : vector<8x1024xf32>
    %18 = vector.extract_strided_slice %4 {offsets = [3, 0], sizes = [8, 128], strides = [1, 1]} : vector<16x128xf32> to vector<8x128xf32>
    %c384 = arith.constant 384 : index
    %c0_8 = arith.constant 0 : index
    %19 = vector.load %arg3[%c384, %c0_8] : memref<512x1024xf32, #tpu.memory_space<vmem>>, vector<128x1024xf32>
    %cst_9 = arith.constant dense<0.000000e+00> : vector<8x1024xf32>
    %20 = tpu.matmul %18, %19, %cst_9 {dimension_numbers = #tpu.dot_dimension_numbers<[1], [0], [0], [1], [0, 0, 1, 1], [], []>} : vector<8x128xf32>, vector<128x1024xf32>, vector<8x1024xf32> -> vector<8x1024xf32>
    %21 = arith.addf %17, %20 : vector<8x1024xf32>
    %c0_10 = arith.constant 0 : index
    %c0_11 = arith.constant 0 : index
    %c0_12 = arith.constant 0 : index
    %22 = vector.load %arg4[%c0_10, %c0_11, %c0_12] : memref<1x8x1024xf32, #tpu.memory_space<vmem>>, vector<1x8x1024xf32>
    %23 = vector.shape_cast %22 : vector<1x8x1024xf32> to vector<8x1024xf32>
    %24 = vector.shape_cast %21 : vector<8x1024xf32> to vector<1x8x1024xf32>
    tpu.vector_store %arg4[%c0_10, %c0_11, %c0_12], %24 {strides = array<i32>} : memref<1x8x1024xf32, #tpu.memory_space<vmem>>, vector<1x8x1024xf32>,
    return
  }
  func.func @transform_0(%arg0: i32, %arg1: i32) -> (i32, i32, i32) {
    %c0_i32 = arith.constant 0 : i32
    %c0_i32_0 = arith.constant 0 : i32
    %c0_i32_1 = arith.constant 0 : i32
    return %arg0, %c0_i32, %c0_i32_0 : i32, i32, i32
  }
  func.func @transform_1(%arg0: i32, %arg1: i32) -> (i32, i32) {
    %c0_i32 = arith.constant 0 : i32
    %c0_i32_0 = arith.constant 0 : i32
    %c0_i32_1 = arith.constant 0 : i32
    return %c0_i32, %c0_i32_0 : i32, i32
  }
  func.func @transform_2(%arg0: i32, %arg1: i32) -> (i32, i32, i32) {
    %c0_i32 = arith.constant 0 : i32
    %c0_i32_0 = arith.constant 0 : i32
    return %arg0, %arg1, %c0_i32 : i32, i32, i32
  }
}

module attributes {stable_mosaic.version = 11 : i64} {
  func.func @kernel(%arg0: i32, %arg1: i32, %arg2: memref<1x16x32xf32, #tpu.memory_space<vmem>>, %arg3: memref<128x256xf32, #tpu.memory_space<vmem>>, %arg4: memref<1x8x256xf32, #tpu.memory_space<vmem>>) attributes {dimension_semantics = [#tpu.dimension_semantics<parallel>, #tpu.dimension_semantics<parallel>], iteration_bounds = array<i64: 2, 1>, scalar_prefetch = 0 : i64, scratch_operands = 0 : i64, tpu.core_type = #tpu.core_type<tc>, window_params = [{transform_indices = @transform_0, window_bounds = array<i64: 1, 16, 32>}, {pipeline_mode = #tpu.pipeline_mode<synchronous>, transform_indices = @transform_1, window_bounds = array<i64: 128, 256>}, {transform_indices = @transform_2, window_bounds = array<i64: 1, 8, 256>}]} {
    %c8_i32 = arith.constant 8 : i32
    %0 = arith.muli %arg1, %c8_i32 : i32
    %1 = tpu.assume_multiple %0, 8 : i32
    %c0 = arith.constant 0 : index
    %2 = arith.index_cast %1 : i32 to index
    %c0_0 = arith.constant 0 : index
    %3 = vector.load %arg2[%c0, %2, %c0_0] : memref<1x16x32xf32, #tpu.memory_space<vmem>>, vector<1x16x32xf32>
    %4 = vector.shape_cast %3 : vector<1x16x32xf32> to vector<16x32xf32>
    %cst = arith.constant 0.000000e+00 : f32
    %5 = vector.broadcast %cst : f32 to vector<8x256xf32>
    %6 = vector.extract_strided_slice %4 {offsets = [0, 0], sizes = [8, 32], strides = [1, 1]} : vector<16x32xf32> to vector<8x32xf32>
    %c0_1 = arith.constant 0 : index
    %c0_2 = arith.constant 0 : index
    %7 = vector.load %arg3[%c0_1, %c0_2] : memref<128x256xf32, #tpu.memory_space<vmem>>, vector<32x256xf32>
    %cst_3 = arith.constant dense<0.000000e+00> : vector<8x256xf32>
    %8 = tpu.matmul %6, %7, %cst_3 {dimension_numbers = #tpu.dot_dimension_numbers<[1], [0], [0], [1], [0, 0, 1, 1], [], []>} : vector<8x32xf32>, vector<32x256xf32>, vector<8x256xf32> -> vector<8x256xf32>
    %9 = arith.addf %5, %8 : vector<8x256xf32>
    %10 = vector.extract_strided_slice %4 {offsets = [1, 0], sizes = [8, 32], strides = [1, 1]} : vector<16x32xf32> to vector<8x32xf32>
    %c32 = arith.constant 32 : index
    %c0_4 = arith.constant 0 : index
    %11 = vector.load %arg3[%c32, %c0_4] : memref<128x256xf32, #tpu.memory_space<vmem>>, vector<32x256xf32>
    %cst_5 = arith.constant dense<0.000000e+00> : vector<8x256xf32>
    %12 = tpu.matmul %10, %11, %cst_5 {dimension_numbers = #tpu.dot_dimension_numbers<[1], [0], [0], [1], [0, 0, 1, 1], [], []>} : vector<8x32xf32>, vector<32x256xf32>, vector<8x256xf32> -> vector<8x256xf32>
    %13 = arith.addf %9, %12 : vector<8x256xf32>
    %14 = vector.extract_strided_slice %4 {offsets = [2, 0], sizes = [8, 32], strides = [1, 1]} : vector<16x32xf32> to vector<8x32xf32>
    %c64 = arith.constant 64 : index
    %c0_6 = arith.constant 0 : index
    %15 = vector.load %arg3[%c64, %c0_6] : memref<128x256xf32, #tpu.memory_space<vmem>>, vector<32x256xf32>
    %cst_7 = arith.constant dense<0.000000e+00> : vector<8x256xf32>
    %16 = tpu.matmul %14, %15, %cst_7 {dimension_numbers = #tpu.dot_dimension_numbers<[1], [0], [0], [1], [0, 0, 1, 1], [], []>} : vector<8x32xf32>, vector<32x256xf32>, vector<8x256xf32> -> vector<8x256xf32>
    %17 = arith.addf %13, %16 : vector<8x256xf32>
    %18 = vector.extract_strided_slice %4 {offsets = [3, 0], sizes = [8, 32], strides = [1, 1]} : vector<16x32xf32> to vector<8x32xf32>
    %c96 = arith.constant 96 : index
    %c0_8 = arith.constant 0 : index
    %19 = vector.load %arg3[%c96, %c0_8] : memref<128x256xf32, #tpu.memory_space<vmem>>, vector<32x256xf32>
    %cst_9 = arith.constant dense<0.000000e+00> : vector<8x256xf32>
    %20 = tpu.matmul %18, %19, %cst_9 {dimension_numbers = #tpu.dot_dimension_numbers<[1], [0], [0], [1], [0, 0, 1, 1], [], []>} : vector<8x32xf32>, vector<32x256xf32>, vector<8x256xf32> -> vector<8x256xf32>
    %21 = arith.addf %17, %20 : vector<8x256xf32>
    %c0_10 = arith.constant 0 : index
    %c0_11 = arith.constant 0 : index
    %c0_12 = arith.constant 0 : index
    %22 = vector.load %arg4[%c0_10, %c0_11, %c0_12] : memref<1x8x256xf32, #tpu.memory_space<vmem>>, vector<1x8x256xf32>
    %23 = vector.shape_cast %22 : vector<1x8x256xf32> to vector<8x256xf32>
    %24 = vector.shape_cast %21 : vector<8x256xf32> to vector<1x8x256xf32>
    tpu.vector_store %arg4[%c0_10, %c0_11, %c0_12], %24 {strides = array<i32>} : memref<1x8x256xf32, #tpu.memory_space<vmem>>, vector<1x8x256xf32>,
    return
  }
  func.func @transform_0(%arg0: i32, %arg1: i32) -> (i32, i32, i32) {
    %c0_i32 = arith.constant 0 : i32
    %c0_i32_0 = arith.constant 0 : i32
    %c0_i32_1 = arith.constant 0 : i32
    return %arg0, %c0_i32, %c0_i32_0 : i32, i32, i32
  }
  func.func @transform_1(%arg0: i32, %arg1: i32) -> (i32, i32) {
    %c0_i32 = arith.constant 0 : i32
    %c0_i32_0 = arith.constant 0 : i32
    %c0_i32_1 = arith.constant 0 : i32
    return %c0_i32, %c0_i32_0 : i32, i32
  }
  func.func @transform_2(%arg0: i32, %arg1: i32) -> (i32, i32, i32) {
    %c0_i32 = arith.constant 0 : i32
    %c0_i32_0 = arith.constant 0 : i32
    return %arg0, %arg1, %c0_i32 : i32, i32, i32
  }
}

</mosaic_0001>

<llo_original>
// kernel: model_forward.6
$region0: #{model_forward.6}
  #allocation0 [shape = 'u32[]', space=smem, size = 0x4, offset = 0x4, fixed_abs, tag = 'smem constant byte address 0x4 - core index']
  #allocation1 [shape = 'u32[144,128]{1,0:T(1,128)}', space=vmem, size = 0x12000, scoped, tag = 'internal scratch']
  %s0 = inlined_call_operand.vmem [shape: f32[1,16,128], index: 0, kind: input, shape index: {}]
  %s1 = inlined_call_operand.vmem [shape: f32[512,640], index: 1, kind: input, shape index: {}]
  %s2 = inlined_call_operand.vmem [shape: f32[1,8,640], index: 2, kind: output, shape index: {}]
  %s3 = sld [smem:[#allocation0]]
  $region18: #{model_forward.6} parent=0
    _
  %s5 = ssub.s32 1, %s3
  %s6 = scalar_select 0, %s5, %s3
  // Predicated region
  $region2: #{model_forward.6} parent=0 // pred_check
    _
  $region3: #{model_forward.6} parent=0 // pred_check_branch
    %8 = sbr.rel (0) target = $region5
  $region4: #{model_forward.6} parent=0 // pred_region
    _
  $region5: #{model_forward.6} parent=0 // pred_fallthru
    _
  // Predicated region
  $region6: #{model_forward.6} parent=0 // pred_check
    _
  $region7: #{model_forward.6} parent=0 // pred_check_branch
    %10 = sbr.rel (0) target = $region9
  $region8: #{model_forward.6} parent=0 // pred_region
    _
  $region9: #{model_forward.6} parent=0 // pred_fallthru
    _
  %s11 = smul.u32 0, 8
  %s12 = scalar_lea.vmem %s0, %s11
  %v13 = vld [vmem:[%s12] sm:$0xff]
  %v14 = vld [vmem:[%s12 + $0x8] sm:$0xff]
  %v15 = vld [vmem:[%s1] sm:$0xff]
  %v16 = vld [vmem:[%s1 + $0x8] sm:$0xff]
  %v17 = vld [vmem:[%s1 + $0x10] sm:$0xff]
  %v18 = vld [vmem:[%s1 + $0x18] sm:$0xff]
  %v19 = vld [vmem:[%s1 + $0x20] sm:$0xff]
  %v20 = vld [vmem:[%s1 + $0x28] sm:$0xff]
  %v21 = vld [vmem:[%s1 + $0x30] sm:$0xff]
  %v22 = vld [vmem:[%s1 + $0x38] sm:$0xff]
  %v23 = vld [vmem:[%s1 + $0x40] sm:$0xff]
  %v24 = vld [vmem:[%s1 + $0x48] sm:$0xff]
  %v25 = vld [vmem:[%s1 + $0x50] sm:$0xff]
  %v26 = vld [vmem:[%s1 + $0x58] sm:$0xff]
  %v27 = vld [vmem:[%s1 + $0x60] sm:$0xff]
  %v28 = vld [vmem:[%s1 + $0x68] sm:$0xff]
  %v29 = vld [vmem:[%s1 + $0x70] sm:$0xff]
  %v30 = vld [vmem:[%s1 + $0x78] sm:$0xff]
  %v31 = vld [vmem:[%s1 + $0x80] sm:$0xff]
  %v32 = vld [vmem:[%s1 + $0x88] sm:$0xff]
  %v33 = vld [vmem:[%s1 + $0x90] sm:$0xff]
  %v34 = vld [vmem:[%s1 + $0x98] sm:$0xff]
  %v35 = vld [vmem:[%s1 + $0xa0] sm:$0xff]
  %v36 = vld [vmem:[%s1 + $0xa8] sm:$0xff]
  %v37 = vld [vmem:[%s1 + $0xb0] sm:$0xff]
  %v38 = vld [vmem:[%s1 + $0xb8] sm:$0xff]
  %v39 = vld [vmem:[%s1 + $0xc0] sm:$0xff]
  %v40 = vld [vmem:[%s1 + $0xc8] sm:$0xff]
  %v41 = vld [vmem:[%s1 + $0xd0] sm:$0xff]
  %v42 = vld [vmem:[%s1 + $0xd8] sm:$0xff]
  %v43 = vld [vmem:[%s1 + $0xe0] sm:$0xff]
  %v44 = vld [vmem:[%s1 + $0xe8] sm:$0xff]
  %v45 = vld [vmem:[%s1 + $0xf0] sm:$0xff]
  %v46 = vld [vmem:[%s1 + $0xf8] sm:$0xff]
  %v47 = vld [vmem:[%s1 + $0x100] sm:$0xff]
  %v48 = vld [vmem:[%s1 + $0x108] sm:$0xff]
  %v49 = vld [vmem:[%s1 + $0x110] sm:$0xff]
  %v50 = vld [vmem:[%s1 + $0x118] sm:$0xff]
  %v51 = vld [vmem:[%s1 + $0x120] sm:$0xff]
  %v52 = vld [vmem:[%s1 + $0x128] sm:$0xff]
  %v53 = vld [vmem:[%s1 + $0x130] sm:$0xff]
  %v54 = vld [vmem:[%s1 + $0x138] sm:$0xff]
  %v55 = vld [vmem:[%s1 + $0x140] sm:$0xff]
  %v56 = vld [vmem:[%s1 + $0x148] sm:$0xff]
  %v57 = vld [vmem:[%s1 + $0x150] sm:$0xff]
  %v58 = vld [vmem:[%s1 + $0x158] sm:$0xff]
  %v59 = vld [vmem:[%s1 + $0x160] sm:$0xff]
  %v60 = vld [vmem:[%s1 + $0x168] sm:$0xff]
  %v61 = vld [vmem:[%s1 + $0x170] sm:$0xff]
  %v62 = vld [vmem:[%s1 + $0x178] sm:$0xff]
  %v63 = vld [vmem:[%s1 + $0x180] sm:$0xff]
  %v64 = vld [vmem:[%s1 + $0x188] sm:$0xff]
  %v65 = vld [vmem:[%s1 + $0x190] sm:$0xff]
  %v66 = vld [vmem:[%s1 + $0x198] sm:$0xff]
  %v67 = vld [vmem:[%s1 + $0x1a0] sm:$0xff]
  %v68 = vld [vmem:[%s1 + $0x1a8] sm:$0xff]
  %v69 = vld [vmem:[%s1 + $0x1b0] sm:$0xff]
  %v70 = vld [vmem:[%s1 + $0x1b8] sm:$0xff]
  %v71 = vld [vmem:[%s1 + $0x1c0] sm:$0xff]
  %v72 = vld [vmem:[%s1 + $0x1c8] sm:$0xff]
  %v73 = vld [vmem:[%s1 + $0x1d0] sm:$0xff]
  %v74 = vld [vmem:[%s1 + $0x1d8] sm:$0xff]
  %v75 = vld [vmem:[%s1 + $0x1e0] sm:$0xff]
  %v76 = vld [vmem:[%s1 + $0x1e8] sm:$0xff]
  %v77 = vld [vmem:[%s1 + $0x1f0] sm:$0xff]
  %v78 = vld [vmem:[%s1 + $0x1f8] sm:$0xff]
  %v79 = vld [vmem:[%s1 + $0x200] sm:$0xff]
  %v80 = vld [vmem:[%s1 + $0x208] sm:$0xff]
  %v81 = vld [vmem:[%s1 + $0x210] sm:$0xff]
  %v82 = vld [vmem:[%s1 + $0x218] sm:$0xff]
  %v83 = vld [vmem:[%s1 + $0x220] sm:$0xff]
  %v84 = vld [vmem:[%s1 + $0x228] sm:$0xff]
  %v85 = vld [vmem:[%s1 + $0x230] sm:$0xff]
  %v86 = vld [vmem:[%s1 + $0x238] sm:$0xff]
  %v87 = vld [vmem:[%s1 + $0x240] sm:$0xff]
  %v88 = vld [vmem:[%s1 + $0x248] sm:$0xff]
  %v89 = vld [vmem:[%s1 + $0x250] sm:$0xff]
  %v90 = vld [vmem:[%s1 + $0x258] sm:$0xff]
  %v91 = vld [vmem:[%s1 + $0x260] sm:$0xff]
  %v92 = vld [vmem:[%s1 + $0x268] sm:$0xff]
  %v93 = vld [vmem:[%s1 + $0x270] sm:$0xff]
  %v94 = vld [vmem:[%s1 + $0x278] sm:$0xff]
  %v95 = vld [vmem:[%s1 + $0x280] sm:$0xff]
  %v96 = vld [vmem:[%s1 + $0x288] sm:$0xff]
  %v97 = vld [vmem:[%s1 + $0x290] sm:$0xff]
  %v98 = vld [vmem:[%s1 + $0x298] sm:$0xff]
  %v99 = vld [vmem:[%s1 + $0x2a0] sm:$0xff]
  %v100 = vld [vmem:[%s1 + $0x2a8] sm:$0xff]
  %v101 = vld [vmem:[%s1 + $0x2b0] sm:$0xff]
  %v102 = vld [vmem:[%s1 + $0x2b8] sm:$0xff]
  %v103 = vld [vmem:[%s1 + $0x2c0] sm:$0xff]
  %v104 = vld [vmem:[%s1 + $0x2c8] sm:$0xff]
  %v105 = vld [vmem:[%s1 + $0x2d0] sm:$0xff]
  %v106 = vld [vmem:[%s1 + $0x2d8] sm:$0xff]
  %v107 = vld [vmem:[%s1 + $0x2e0] sm:$0xff]
  %v108 = vld [vmem:[%s1 + $0x2e8] sm:$0xff]
  %v109 = vld [vmem:[%s1 + $0x2f0] sm:$0xff]
  %v110 = vld [vmem:[%s1 + $0x2f8] sm:$0xff]
  %v111 = vld [vmem:[%s1 + $0x300] sm:$0xff]
  %v112 = vld [vmem:[%s1 + $0x308] sm:$0xff]
  %v113 = vld [vmem:[%s1 + $0x310] sm:$0xff]
  %v114 = vld [vmem:[%s1 + $0x318] sm:$0xff]
  %v115 = vld [vmem:[%s1 + $0x320] sm:$0xff]
  %v116 = vld [vmem:[%s1 + $0x328] sm:$0xff]
  %v117 = vld [vmem:[%s1 + $0x330] sm:$0xff]
  %v118 = vld [vmem:[%s1 + $0x338] sm:$0xff]
  %v119 = vld [vmem:[%s1 + $0x340] sm:$0xff]
  %v120 = vld [vmem:[%s1 + $0x348] sm:$0xff]
  %v121 = vld [vmem:[%s1 + $0x350] sm:$0xff]
  %v122 = vld [vmem:[%s1 + $0x358] sm:$0xff]
  %v123 = vld [vmem:[%s1 + $0x360] sm:$0xff]
  %v124 = vld [vmem:[%s1 + $0x368] sm:$0xff]
  %v125 = vld [vmem:[%s1 + $0x370] sm:$0xff]
  %v126 = vld [vmem:[%s1 + $0x378] sm:$0xff]
  %v127 = vld [vmem:[%s1 + $0x380] sm:$0xff]
  %v128 = vld [vmem:[%s1 + $0x388] sm:$0xff]
  %v129 = vld [vmem:[%s1 + $0x390] sm:$0xff]
  %v130 = vld [vmem:[%s1 + $0x398] sm:$0xff]
  %v131 = vld [vmem:[%s1 + $0x3a0] sm:$0xff]
  %v132 = vld [vmem:[%s1 + $0x3a8] sm:$0xff]
  %v133 = vld [vmem:[%s1 + $0x3b0] sm:$0xff]
  %v134 = vld [vmem:[%s1 + $0x3b8] sm:$0xff]
  %v135 = vld [vmem:[%s1 + $0x3c0] sm:$0xff]
  %v136 = vld [vmem:[%s1 + $0x3c8] sm:$0xff]
  %v137 = vld [vmem:[%s1 + $0x3d0] sm:$0xff]
  %v138 = vld [vmem:[%s1 + $0x3d8] sm:$0xff]
  %v139 = vld [vmem:[%s1 + $0x3e0] sm:$0xff]
  %v140 = vld [vmem:[%s1 + $0x3e8] sm:$0xff]
  %v141 = vld [vmem:[%s1 + $0x3f0] sm:$0xff]
  %v142 = vld [vmem:[%s1 + $0x3f8] sm:$0xff]
  %v143 = vld [vmem:[%s1 + $0x400] sm:$0xff]
  %v144 = vld [vmem:[%s1 + $0x408] sm:$0xff]
  %v145 = vld [vmem:[%s1 + $0x410] sm:$0xff]
  %v146 = vld [vmem:[%s1 + $0x418] sm:$0xff]
  %v147 = vld [vmem:[%s1 + $0x420] sm:$0xff]
  %v148 = vld [vmem:[%s1 + $0x428] sm:$0xff]
  %v149 = vld [vmem:[%s1 + $0x430] sm:$0xff]
  %v150 = vld [vmem:[%s1 + $0x438] sm:$0xff]
  %v151 = vld [vmem:[%s1 + $0x440] sm:$0xff]
  %v152 = vld [vmem:[%s1 + $0x448] sm:$0xff]
  %v153 = vld [vmem:[%s1 + $0x450] sm:$0xff]
  %v154 = vld [vmem:[%s1 + $0x458] sm:$0xff]
  %v155 = vld [vmem:[%s1 + $0x460] sm:$0xff]
  %v156 = vld [vmem:[%s1 + $0x468] sm:$0xff]
  %v157 = vld [vmem:[%s1 + $0x470] sm:$0xff]
  %v158 = vld [vmem:[%s1 + $0x478] sm:$0xff]
  %v159 = vld [vmem:[%s1 + $0x480] sm:$0xff]
  %v160 = vld [vmem:[%s1 + $0x488] sm:$0xff]
  %v161 = vld [vmem:[%s1 + $0x490] sm:$0xff]
  %v162 = vld [vmem:[%s1 + $0x498] sm:$0xff]
  %v163 = vld [vmem:[%s1 + $0x4a0] sm:$0xff]
  %v164 = vld [vmem:[%s1 + $0x4a8] sm:$0xff]
  %v165 = vld [vmem:[%s1 + $0x4b0] sm:$0xff]
  %v166 = vld [vmem:[%s1 + $0x4b8] sm:$0xff]
  %v167 = vld [vmem:[%s1 + $0x4c0] sm:$0xff]
  %v168 = vld [vmem:[%s1 + $0x4c8] sm:$0xff]
  %v169 = vld [vmem:[%s1 + $0x4d0] sm:$0xff]
  %v170 = vld [vmem:[%s1 + $0x4d8] sm:$0xff]
  %v171 = vld [vmem:[%s1 + $0x4e0] sm:$0xff]
  %v172 = vld [vmem:[%s1 + $0x4e8] sm:$0xff]
  %v173 = vld [vmem:[%s1 + $0x4f0] sm:$0xff]
  %v174 = vld [vmem:[%s1 + $0x4f8] sm:$0xff]
  %vm177 = vcmask 1046528
  %v178 = vrot.slane %v13, 1
  %v179 = vrot.slane %v14, 1
  %v180 = vsel %vm177, %v178, %v179
  %182 = vmatprep.subr.mxu0 %v96
  %183 = vmatpush1.msra.mxu0 %v95
  %184 = vmatprep.subr.mxu0 %v101
  %185 = vmatpush1.msra.mxu0 %v100
  %186 = vmatprep.subr.mxu0 %v106
  %187 = vmatpush1.msra.mxu0 %v105
  %188 = vmatprep.subr.mxu0 %v111
  %189 = vmatpush1.msra.mxu0 %v110
  %190 = vmatprep.subr.mxu0 %v116
  %191 = vmatpush1.msra.mxu0 %v115
  %192 = vmatprep.subr.mxu0 %v121
  %193 = vmatpush1.msra.mxu0 %v120
  %194 = vmatprep.subr.mxu0 %v126
  %195 = vmatpush1.msra.mxu0 %v125
  %196 = vmatprep.subr.mxu0 %v131
  %197 = vmatpush1.msra.mxu0 %v130
  %198 = vmatprep.subr.mxu0 %v136
  %199 = vmatpush1.msra.mxu0 %v135
  %200 = vmatprep.subr.mxu0 %v141
  %201 = vmatpush1.msra.mxu0 %v140
  %202 = vmatprep.subr.mxu0 %v146
  %203 = vmatpush1.msra.mxu0 %v145
  %204 = vmatprep.subr.mxu0 %v151
  %205 = vmatpush1.msra.mxu0 %v150
  %206 = vmatprep.subr.mxu0 %v156
  %207 = vmatpush1.msra.mxu0 %v155
  %208 = vmatprep.subr.mxu0 %v161
  %209 = vmatpush1.msra.mxu0 %v160
  %210 = vmatprep.subr.mxu0 %v166
  %211 = vmatpush1.msra.mxu0 %v165
  %212 = vmatprep.subr.mxu0 %v171
  %213 = vmatpush1.msra.mxu0 %v170
  %214 = vmatprep.subr.mxu0 0.0
  %215 = vmatpush1.msra.mxu0 0.0
  %216 = vmatprep.subr.mxu0 0.0
  %217 = vmatpush1.msra.mxu0 0.0
  %218 = vmatprep.subr.mxu0 0.0
  %219 = vmatpush1.msra.mxu0 0.0
  %220 = vmatprep.subr.mxu0 0.0
  %221 = vmatpush1.msra.mxu0 0.0
  %222 = vmatprep.subr.mxu0 0.0
  %223 = vmatpush1.msra.mxu0 0.0
  %224 = vmatprep.subr.mxu0 0.0
  %225 = vmatpush1.msra.mxu0 0.0
  %226 = vmatprep.subr.mxu0 0.0
  %227 = vmatpush1.msra.mxu0 0.0
  %228 = vmatprep.subr.mxu0 0.0
  %229 = vmatpush1.msra.mxu0 0.0
  %230 = vmatprep.subr.mxu0 0.0
  %231 = vmatpush1.msra.mxu0 0.0
  %232 = vmatprep.subr.mxu0 0.0
  %233 = vmatpush1.msra.mxu0 0.0
  %234 = vmatprep.subr.mxu0 0.0
  %235 = vmatpush1.msra.mxu0 0.0
  %236 = vmatprep.subr.mxu0 0.0
  %237 = vmatpush1.msra.mxu0 0.0
  %238 = vmatprep.subr.mxu0 0.0
  %239 = vmatpush1.msra.mxu0 0.0
  %240 = vmatprep.subr.mxu0 0.0
  %241 = vmatpush1.msra.mxu0 0.0
  %242 = vmatprep.subr.mxu0 0.0
  %243 = vmatpush1.msra.mxu0 0.0
  %244 = vmatprep.subr.mxu0 0.0
  %245 = vmatpush1.msra.mxu0 0.0
  %246 = vmatprep.mubr.f32.mxu0 0.0
  %247 = vmatmul.mubr.f32.gmra.mrb[0].mxu0 %v180
  %v248 = vpop.f32.mrb[0].mxu0
  %v249 = vadd.f32 0.0, %v248
  %v250 = vpop.f32.mrb[0].mxu0
  %v251 = vadd.f32 0.0, %v250
  %252 = vdwg.mxu0
  %253 = vmatprep.subr.mxu0 %v98
  %254 = vmatpush1.msra.mxu0 %v97
  %255 = vmatprep.subr.mxu0 %v103
  %256 = vmatpush1.msra.mxu0 %v102
  %257 = vmatprep.subr.mxu0 %v108
  %258 = vmatpush1.msra.mxu0 %v107
  %259 = vmatprep.subr.mxu0 %v113
  %260 = vmatpush1.msra.mxu0 %v112
  %261 = vmatprep.subr.mxu0 %v118
  %262 = vmatpush1.msra.mxu0 %v117
  %263 = vmatprep.subr.mxu0 %v123
  %264 = vmatpush1.msra.mxu0 %v122
  %265 = vmatprep.subr.mxu0 %v128
  %266 = vmatpush1.msra.mxu0 %v127
  %267 = vmatprep.subr.mxu0 %v133
  %268 = vmatpush1.msra.mxu0 %v132
  %269 = vmatprep.subr.mxu0 %v138
  %270 = vmatpush1.msra.mxu0 %v137
  %271 = vmatprep.subr.mxu0 %v143
  %272 = vmatpush1.msra.mxu0 %v142
  %273 = vmatprep.subr.mxu0 %v148
  %274 = vmatpush1.msra.mxu0 %v147
  %275 = vmatprep.subr.mxu0 %v153
  %276 = vmatpush1.msra.mxu0 %v152
  %277 = vmatprep.subr.mxu0 %v158
  %278 = vmatpush1.msra.mxu0 %v157
  %279 = vmatprep.subr.mxu0 %v163
  %280 = vmatpush1.msra.mxu0 %v162
  %281 = vmatprep.subr.mxu0 %v168
  %282 = vmatpush1.msra.mxu0 %v167
  %283 = vmatprep.subr.mxu0 %v173
  %284 = vmatpush1.msra.mxu0 %v172
  %285 = vmatprep.subr.mxu0 0.0
  %286 = vmatpush1.msra.mxu0 0.0
  %287 = vmatprep.subr.mxu0 0.0
  %288 = vmatpush1.msra.mxu0 0.0
  %289 = vmatprep.subr.mxu0 0.0
  %290 = vmatpush1.msra.mxu0 0.0
  %291 = vmatprep.subr.mxu0 0.0
  %292 = vmatpush1.msra.mxu0 0.0
  %293 = vmatprep.subr.mxu0 0.0
  %294 = vmatpush1.msra.mxu0 0.0
  %295 = vmatprep.subr.mxu0 0.0
  %296 = vmatpush1.msra.mxu0 0.0
  %297 = vmatprep.subr.mxu0 0.0
  %298 = vmatpush1.msra.mxu0 0.0
  %299 = vmatprep.subr.mxu0 0.0
  %300 = vmatpush1.msra.mxu0 0.0
  %301 = vmatprep.subr.mxu0 0.0
  %302 = vmatpush1.msra.mxu0 0.0
  %303 = vmatprep.subr.mxu0 0.0
  %304 = vmatpush1.msra.mxu0 0.0
  %305 = vmatprep.subr.mxu0 0.0
  %306 = vmatpush1.msra.mxu0 0.0
  %307 = vmatprep.subr.mxu0 0.0
  %308 = vmatpush1.msra.mxu0 0.0
  %309 = vmatprep.subr.mxu0 0.0
  %310 = vmatpush1.msra.mxu0 0.0
  %311 = vmatprep.subr.mxu0 0.0
  %312 = vmatpush1.msra.mxu0 0.0
  %313 = vmatprep.subr.mxu0 0.0
  %314 = vmatpush1.msra.mxu0 0.0
  %315 = vmatprep.subr.mxu0 0.0
  %316 = vmatpush1.msra.mxu0 0.0
  %317 = vmatprep.mubr.f32.mxu0 0.0
  %318 = vmatmul.mubr.f32.gmra.mrb[0].mxu0 %v180
  %v319 = vpop.f32.mrb[0].mxu0
  %v320 = vadd.f32 0.0, %v319
  %v321 = vpop.f32.mrb[0].mxu0
  %v322 = vadd.f32 0.0, %v321
  %323 = vdwg.mxu0
  %324 = vmatprep.subr.mxu0 0.0
  %325 = vmatpush1.msra.mxu0 %v99
  %326 = vmatprep.subr.mxu0 0.0
  %327 = vmatpush1.msra.mxu0 %v104
  %328 = vmatprep.subr.mxu0 0.0
  %329 = vmatpush1.msra.mxu0 %v109
  %330 = vmatprep.subr.mxu0 0.0
  %331 = vmatpush1.msra.mxu0 %v114
  %332 = vmatprep.subr.mxu0 0.0
  %333 = vmatpush1.msra.mxu0 %v119
  %334 = vmatprep.subr.mxu0 0.0
  %335 = vmatpush1.msra.mxu0 %v124
  %336 = vmatprep.subr.mxu0 0.0
  %337 = vmatpush1.msra.mxu0 %v129
  %338 = vmatprep.subr.mxu0 0.0
  %339 = vmatpush1.msra.mxu0 %v134
  %340 = vmatprep.subr.mxu0 0.0
  %341 = vmatpush1.msra.mxu0 %v139
  %342 = vmatprep.subr.mxu0 0.0
  %343 = vmatpush1.msra.mxu0 %v144
  %344 = vmatprep.subr.mxu0 0.0
  %345 = vmatpush1.msra.mxu0 %v149
  %346 = vmatprep.subr.mxu0 0.0
  %347 = vmatpush1.msra.mxu0 %v154
  %348 = vmatprep.subr.mxu0 0.0
  %349 = vmatpush1.msra.mxu0 %v159
  %350 = vmatprep.subr.mxu0 0.0
  %351 = vmatpush1.msra.mxu0 %v164
  %352 = vmatprep.subr.mxu0 0.0
  %353 = vmatpush1.msra.mxu0 %v169
  %354 = vmatprep.subr.mxu0 0.0
  %355 = vmatpush1.msra.mxu0 %v174
  %356 = vmatprep.subr.mxu0 0.0
  %357 = vmatpush1.msra.mxu0 0.0
  %358 = vmatprep.subr.mxu0 0.0
  %359 = vmatpush1.msra.mxu0 0.0
  %360 = vmatprep.subr.mxu0 0.0
  %361 = vmatpush1.msra.mxu0 0.0
  %362 = vmatprep.subr.mxu0 0.0
  %363 = vmatpush1.msra.mxu0 0.0
  %364 = vmatprep.subr.mxu0 0.0
  %365 = vmatpush1.msra.mxu0 0.0
  %366 = vmatprep.subr.mxu0 0.0
  %367 = vmatpush1.msra.mxu0 0.0
  %368 = vmatprep.subr.mxu0 0.0
  %369 = vmatpush1.msra.mxu0 0.0
  %370 = vmatprep.subr.mxu0 0.0
  %371 = vmatpush1.msra.mxu0 0.0
  %372 = vmatprep.subr.mxu0 0.0
  %373 = vmatpush1.msra.mxu0 0.0
  %374 = vmatprep.subr.mxu0 0.0
  %375 = vmatpush1.msra.mxu0 0.0
  %376 = vmatprep.subr.mxu0 0.0
  %377 = vmatpush1.msra.mxu0 0.0
  %378 = vmatprep.subr.mxu0 0.0
  %379 = vmatpush1.msra.mxu0 0.0
  %380 = vmatprep.subr.mxu0 0.0
  %381 = vmatpush1.msra.mxu0 0.0
  %382 = vmatprep.subr.mxu0 0.0
  %383 = vmatpush1.msra.mxu0 0.0
  %384 = vmatprep.subr.mxu0 0.0
  %385 = vmatpush1.msra.mxu0 0.0
  %386 = vmatprep.subr.mxu0 0.0
  %387 = vmatpush1.msra.mxu0 0.0
  %388 = vmatprep.mubr.f32.mxu0 0.0
  %389 = vmatmul.mubr.f32.gmra.mrb[0].mxu0 %v180
  %v390 = vpop.f32.mrb[0].mxu0
  %v391 = vadd.f32 0.0, %v390
  %v392 = vpop.f32.mrb[0].mxu0
  %393 = vdwg.mxu0
  %394 = vmatprep.subr.mxu0 %v16
  %395 = vmatpush1.msra.mxu0 %v15
  %396 = vmatprep.subr.mxu0 %v21
  %397 = vmatpush1.msra.mxu0 %v20
  %398 = vmatprep.subr.mxu0 %v26
  %399 = vmatpush1.msra.mxu0 %v25
  %400 = vmatprep.subr.mxu0 %v31
  %401 = vmatpush1.msra.mxu0 %v30
  %402 = vmatprep.subr.mxu0 %v36
  %403 = vmatpush1.msra.mxu0 %v35
  %404 = vmatprep.subr.mxu0 %v41
  %405 = vmatpush1.msra.mxu0 %v40
  %406 = vmatprep.subr.mxu0 %v46
  %407 = vmatpush1.msra.mxu0 %v45
  %408 = vmatprep.subr.mxu0 %v51
  %409 = vmatpush1.msra.mxu0 %v50
  %410 = vmatprep.subr.mxu0 %v56
  %411 = vmatpush1.msra.mxu0 %v55
  %412 = vmatprep.subr.mxu0 %v61
  %413 = vmatpush1.msra.mxu0 %v60
  %414 = vmatprep.subr.mxu0 %v66
  %415 = vmatpush1.msra.mxu0 %v65
  %416 = vmatprep.subr.mxu0 %v71
  %417 = vmatpush1.msra.mxu0 %v70
  %418 = vmatprep.subr.mxu0 %v76
  %419 = vmatpush1.msra.mxu0 %v75
  %420 = vmatprep.subr.mxu0 %v81
  %421 = vmatpush1.msra.mxu0 %v80
  %422 = vmatprep.subr.mxu0 %v86
  %423 = vmatpush1.msra.mxu0 %v85
  %424 = vmatprep.subr.mxu0 %v91
  %425 = vmatpush1.msra.mxu0 %v90
  %426 = vmatprep.subr.mxu0 0.0
  %427 = vmatpush1.msra.mxu0 0.0
  %428 = vmatprep.subr.mxu0 0.0
  %429 = vmatpush1.msra.mxu0 0.0
  %430 = vmatprep.subr.mxu0 0.0
  %431 = vmatpush1.msra.mxu0 0.0
  %432 = vmatprep.subr.mxu0 0.0
  %433 = vmatpush1.msra.mxu0 0.0
  %434 = vmatprep.subr.mxu0 0.0
  %435 = vmatpush1.msra.mxu0 0.0
  %436 = vmatprep.subr.mxu0 0.0
  %437 = vmatpush1.msra.mxu0 0.0
  %438 = vmatprep.subr.mxu0 0.0
  %439 = vmatpush1.msra.mxu0 0.0
  %440 = vmatprep.subr.mxu0 0.0
  %441 = vmatpush1.msra.mxu0 0.0
  %442 = vmatprep.subr.mxu0 0.0
  %443 = vmatpush1.msra.mxu0 0.0
  %444 = vmatprep.subr.mxu0 0.0
  %445 = vmatpush1.msra.mxu0 0.0
  %446 = vmatprep.subr.mxu0 0.0
  %447 = vmatpush1.msra.mxu0 0.0
  %448 = vmatprep.subr.mxu0 0.0
  %449 = vmatpush1.msra.mxu0 0.0
  %450 = vmatprep.subr.mxu0 0.0
  %451 = vmatpush1.msra.mxu0 0.0
  %452 = vmatprep.subr.mxu0 0.0
  %453 = vmatpush1.msra.mxu0 0.0
  %454 = vmatprep.subr.mxu0 0.0
  %455 = vmatpush1.msra.mxu0 0.0
  %456 = vmatprep.subr.mxu0 0.0
  %457 = vmatpush1.msra.mxu0 0.0
  %458 = vmatprep.mubr.f32.mxu0 0.0
  %459 = vmatmul.mubr.f32.gmra.mrb[0].mxu0 %v13
  %v460 = vpop.f32.mrb[0].mxu0
  %v461 = vadd.f32 %v249, %v460
  %v462 = vpop.f32.mrb[0].mxu0
  %v463 = vadd.f32 %v251, %v462
  %464 = vdwg.mxu0
  %465 = vmatprep.subr.mxu0 %v18
  %466 = vmatpush1.msra.mxu0 %v17
  %467 = vmatprep.subr.mxu0 %v23
  %468 = vmatpush1.msra.mxu0 %v22
  %469 = vmatprep.subr.mxu0 %v28
  %470 = vmatpush1.msra.mxu0 %v27
  %471 = vmatprep.subr.mxu0 %v33
  %472 = vmatpush1.msra.mxu0 %v32
  %473 = vmatprep.subr.mxu0 %v38
  %474 = vmatpush1.msra.mxu0 %v37
  %475 = vmatprep.subr.mxu0 %v43
  %476 = vmatpush1.msra.mxu0 %v42
  %477 = vmatprep.subr.mxu0 %v48
  %478 = vmatpush1.msra.mxu0 %v47
  %479 = vmatprep.subr.mxu0 %v53
  %480 = vmatpush1.msra.mxu0 %v52
  %481 = vmatprep.subr.mxu0 %v58
  %482 = vmatpush1.msra.mxu0 %v57
  %483 = vmatprep.subr.mxu0 %v63
  %484 = vmatpush1.msra.mxu0 %v62
  %485 = vmatprep.subr.mxu0 %v68
  %486 = vmatpush1.msra.mxu0 %v67
  %487 = vmatprep.subr.mxu0 %v73
  %488 = vmatpush1.msra.mxu0 %v72
  %489 = vmatprep.subr.mxu0 %v78
  %490 = vmatpush1.msra.mxu0 %v77
  %491 = vmatprep.subr.mxu0 %v83
  %492 = vmatpush1.msra.mxu0 %v82
  %493 = vmatprep.subr.mxu0 %v88
  %494 = vmatpush1.msra.mxu0 %v87
  %495 = vmatprep.subr.mxu0 %v93
  %496 = vmatpush1.msra.mxu0 %v92
  %497 = vmatprep.subr.mxu0 0.0
  %498 = vmatpush1.msra.mxu0 0.0
  %499 = vmatprep.subr.mxu0 0.0
  %500 = vmatpush1.msra.mxu0 0.0
  %501 = vmatprep.subr.mxu0 0.0
  %502 = vmatpush1.msra.mxu0 0.0
  %503 = vmatprep.subr.mxu0 0.0
  %504 = vmatpush1.msra.mxu0 0.0
  %505 = vmatprep.subr.mxu0 0.0
  %506 = vmatpush1.msra.mxu0 0.0
  %507 = vmatprep.subr.mxu0 0.0
  %508 = vmatpush1.msra.mxu0 0.0
  %509 = vmatprep.subr.mxu0 0.0
  %510 = vmatpush1.msra.mxu0 0.0
  %511 = vmatprep.subr.mxu0 0.0
  %512 = vmatpush1.msra.mxu0 0.0
  %513 = vmatprep.subr.mxu0 0.0
  %514 = vmatpush1.msra.mxu0 0.0
  %515 = vmatprep.subr.mxu0 0.0
  %516 = vmatpush1.msra.mxu0 0.0
  %517 = vmatprep.subr.mxu0 0.0
  %518 = vmatpush1.msra.mxu0 0.0
  %519 = vmatprep.subr.mxu0 0.0
  %520 = vmatpush1.msra.mxu0 0.0
  %521 = vmatprep.subr.mxu0 0.0
  %522 = vmatpush1.msra.mxu0 0.0
  %523 = vmatprep.subr.mxu0 0.0
  %524 = vmatpush1.msra.mxu0 0.0
  %525 = vmatprep.subr.mxu0 0.0
  %526 = vmatpush1.msra.mxu0 0.0
  %527 = vmatprep.subr.mxu0 0.0
  %528 = vmatpush1.msra.mxu0 0.0
  %529 = vmatprep.mubr.f32.mxu0 0.0
  %530 = vmatmul.mubr.f32.gmra.mrb[0].mxu0 %v13
  %v531 = vpop.f32.mrb[0].mxu0
  %v532 = vadd.f32 %v320, %v531
  %v533 = vpop.f32.mrb[0].mxu0
  %v534 = vadd.f32 %v322, %v533
  %535 = vdwg.mxu0
  %536 = vmatprep.subr.mxu0 0.0
  %537 = vmatpush1.msra.mxu0 %v19
  %538 = vmatprep.subr.mxu0 0.0
  %539 = vmatpush1.msra.mxu0 %v24
  %540 = vmatprep.subr.mxu0 0.0
  %541 = vmatpush1.msra.mxu0 %v29
  %542 = vmatprep.subr.mxu0 0.0
  %543 = vmatpush1.msra.mxu0 %v34
  %544 = vmatprep.subr.mxu0 0.0
  %545 = vmatpush1.msra.mxu0 %v39
  %546 = vmatprep.subr.mxu0 0.0
  %547 = vmatpush1.msra.mxu0 %v44
  %548 = vmatprep.subr.mxu0 0.0
  %549 = vmatpush1.msra.mxu0 %v49
  %550 = vmatprep.subr.mxu0 0.0
  %551 = vmatpush1.msra.mxu0 %v54
  %552 = vmatprep.subr.mxu0 0.0
  %553 = vmatpush1.msra.mxu0 %v59
  %554 = vmatprep.subr.mxu0 0.0
  %555 = vmatpush1.msra.mxu0 %v64
  %556 = vmatprep.subr.mxu0 0.0
  %557 = vmatpush1.msra.mxu0 %v69
  %558 = vmatprep.subr.mxu0 0.0
  %559 = vmatpush1.msra.mxu0 %v74
  %560 = vmatprep.subr.mxu0 0.0
  %561 = vmatpush1.msra.mxu0 %v79
  %562 = vmatprep.subr.mxu0 0.0
  %563 = vmatpush1.msra.mxu0 %v84
  %564 = vmatprep.subr.mxu0 0.0
  %565 = vmatpush1.msra.mxu0 %v89
  %566 = vmatprep.subr.mxu0 0.0
  %567 = vmatpush1.msra.mxu0 %v94
  %568 = vmatprep.subr.mxu0 0.0
  %569 = vmatpush1.msra.mxu0 0.0
  %570 = vmatprep.subr.mxu0 0.0
  %571 = vmatpush1.msra.mxu0 0.0
  %572 = vmatprep.subr.mxu0 0.0
  %573 = vmatpush1.msra.mxu0 0.0
  %574 = vmatprep.subr.mxu0 0.0
  %575 = vmatpush1.msra.mxu0 0.0
  %576 = vmatprep.subr.mxu0 0.0
  %577 = vmatpush1.msra.mxu0 0.0
  %578 = vmatprep.subr.mxu0 0.0
  %579 = vmatpush1.msra.mxu0 0.0
  %580 = vmatprep.subr.mxu0 0.0
  %581 = vmatpush1.msra.mxu0 0.0
  %582 = vmatprep.subr.mxu0 0.0
  %583 = vmatpush1.msra.mxu0 0.0
  %584 = vmatprep.subr.mxu0 0.0
  %585 = vmatpush1.msra.mxu0 0.0
  %586 = vmatprep.subr.mxu0 0.0
  %587 = vmatpush1.msra.mxu0 0.0
  %588 = vmatprep.subr.mxu0 0.0
  %589 = vmatpush1.msra.mxu0 0.0
  %590 = vmatprep.subr.mxu0 0.0
  %591 = vmatpush1.msra.mxu0 0.0
  %592 = vmatprep.subr.mxu0 0.0
  %593 = vmatpush1.msra.mxu0 0.0
  %594 = vmatprep.subr.mxu0 0.0
  %595 = vmatpush1.msra.mxu0 0.0
  %596 = vmatprep.subr.mxu0 0.0
  %597 = vmatpush1.msra.mxu0 0.0
  %598 = vmatprep.subr.mxu0 0.0
  %599 = vmatpush1.msra.mxu0 0.0
  %600 = vmatprep.mubr.f32.mxu0 0.0
  %601 = vmatmul.mubr.f32.gmra.mrb[0].mxu0 %v13
  %v602 = vpop.f32.mrb[0].mxu0
  %v603 = vadd.f32 %v391, %v602
  %v604 = vpop.f32.mrb[0].mxu0
  %605 = vdwg.mxu0
  %v606 = vld [vmem:[%s1 + $0x500] sm:$0xff]
  %v607 = vld [vmem:[%s1 + $0x508] sm:$0xff]
  %v608 = vld [vmem:[%s1 + $0x510] sm:$0xff]
  %v609 = vld [vmem:[%s1 + $0x518] sm:$0xff]
  %v610 = vld [vmem:[%s1 + $0x520] sm:$0xff]
  %v611 = vld [vmem:[%s1 + $0x528] sm:$0xff]
  %v612 = vld [vmem:[%s1 + $0x530] sm:$0xff]
  %v613 = vld [vmem:[%s1 + $0x538] sm:$0xff]
  %v614 = vld [vmem:[%s1 + $0x540] sm:$0xff]
  %v615 = vld [vmem:[%s1 + $0x548] sm:$0xff]
  %v616 = vld [vmem:[%s1 + $0x550] sm:$0xff]
  %v617 = vld [vmem:[%s1 + $0x558] sm:$0xff]
  %v618 = vld [vmem:[%s1 + $0x560] sm:$0xff]
  %v619 = vld [vmem:[%s1 + $0x568] sm:$0xff]
  %v620 = vld [vmem:[%s1 + $0x570] sm:$0xff]
  %v621 = vld [vmem:[%s1 + $0x578] sm:$0xff]
  %v622 = vld [vmem:[%s1 + $0x580] sm:$0xff]
  %v623 = vld [vmem:[%s1 + $0x588] sm:$0xff]
  %v624 = vld [vmem:[%s1 + $0x590] sm:$0xff]
  %v625 = vld [vmem:[%s1 + $0x598] sm:$0xff]
  %v626 = vld [vmem:[%s1 + $0x5a0] sm:$0xff]
  %v627 = vld [vmem:[%s1 + $0x5a8] sm:$0xff]
  %v628 = vld [vmem:[%s1 + $0x5b0] sm:$0xff]
  %v629 = vld [vmem:[%s1 + $0x5b8] sm:$0xff]
  %v630 = vld [vmem:[%s1 + $0x5c0] sm:$0xff]
  %v631 = vld [vmem:[%s1 + $0x5c8] sm:$0xff]
  %v632 = vld [vmem:[%s1 + $0x5d0] sm:$0xff]
  %v633 = vld [vmem:[%s1 + $0x5d8] sm:$0xff]
  %v634 = vld [vmem:[%s1 + $0x5e0] sm:$0xff]
  %v635 = vld [vmem:[%s1 + $0x5e8] sm:$0xff]
  %v636 = vld [vmem:[%s1 + $0x5f0] sm:$0xff]
  %v637 = vld [vmem:[%s1 + $0x5f8] sm:$0xff]
  %v638 = vld [vmem:[%s1 + $0x600] sm:$0xff]
  %v639 = vld [vmem:[%s1 + $0x608] sm:$0xff]
  %v640 = vld [vmem:[%s1 + $0x610] sm:$0xff]
  %v641 = vld [vmem:[%s1 + $0x618] sm:$0xff]
  %v642 = vld [vmem:[%s1 + $0x620] sm:$0xff]
  %v643 = vld [vmem:[%s1 + $0x628] sm:$0xff]
  %v644 = vld [vmem:[%s1 + $0x630] sm:$0xff]
  %v645 = vld [vmem:[%s1 + $0x638] sm:$0xff]
  %v646 = vld [vmem:[%s1 + $0x640] sm:$0xff]
  %v647 = vld [vmem:[%s1 + $0x648] sm:$0xff]
  %v648 = vld [vmem:[%s1 + $0x650] sm:$0xff]
  %v649 = vld [vmem:[%s1 + $0x658] sm:$0xff]
  %v650 = vld [vmem:[%s1 + $0x660] sm:$0xff]
  %v651 = vld [vmem:[%s1 + $0x668] sm:$0xff]
  %v652 = vld [vmem:[%s1 + $0x670] sm:$0xff]
  %v653 = vld [vmem:[%s1 + $0x678] sm:$0xff]
  %v654 = vld [vmem:[%s1 + $0x680] sm:$0xff]
  %v655 = vld [vmem:[%s1 + $0x688] sm:$0xff]
  %v656 = vld [vmem:[%s1 + $0x690] sm:$0xff]
  %v657 = vld [vmem:[%s1 + $0x698] sm:$0xff]
  %v658 = vld [vmem:[%s1 + $0x6a0] sm:$0xff]
  %v659 = vld [vmem:[%s1 + $0x6a8] sm:$0xff]
  %v660 = vld [vmem:[%s1 + $0x6b0] sm:$0xff]
  %v661 = vld [vmem:[%s1 + $0x6b8] sm:$0xff]
  %v662 = vld [vmem:[%s1 + $0x6c0] sm:$0xff]
  %v663 = vld [vmem:[%s1 + $0x6c8] sm:$0xff]
  %v664 = vld [vmem:[%s1 + $0x6d0] sm:$0xff]
  %v665 = vld [vmem:[%s1 + $0x6d8] sm:$0xff]
  %v666 = vld [vmem:[%s1 + $0x6e0] sm:$0xff]
  %v667 = vld [vmem:[%s1 + $0x6e8] sm:$0xff]
  %v668 = vld [vmem:[%s1 + $0x6f0] sm:$0xff]
  %v669 = vld [vmem:[%s1 + $0x6f8] sm:$0xff]
  %v670 = vld [vmem:[%s1 + $0x700] sm:$0xff]
  %v671 = vld [vmem:[%s1 + $0x708] sm:$0xff]
  %v672 = vld [vmem:[%s1 + $0x710] sm:$0xff]
  %v673 = vld [vmem:[%s1 + $0x718] sm:$0xff]
  %v674 = vld [vmem:[%s1 + $0x720] sm:$0xff]
  %v675 = vld [vmem:[%s1 + $0x728] sm:$0xff]
  %v676 = vld [vmem:[%s1 + $0x730] sm:$0xff]
  %v677 = vld [vmem:[%s1 + $0x738] sm:$0xff]
  %v678 = vld [vmem:[%s1 + $0x740] sm:$0xff]
  %v679 = vld [vmem:[%s1 + $0x748] sm:$0xff]
  %v680 = vld [vmem:[%s1 + $0x750] sm:$0xff]
  %v681 = vld [vmem:[%s1 + $0x758] sm:$0xff]
  %v682 = vld [vmem:[%s1 + $0x760] sm:$0xff]
  %v683 = vld [vmem:[%s1 + $0x768] sm:$0xff]
  %v684 = vld [vmem:[%s1 + $0x770] sm:$0xff]
  %v685 = vld [vmem:[%s1 + $0x778] sm:$0xff]
  %vm686 = vcmask 1045504
  %v687 = vrot.slane %v13, 2
  %v688 = vrot.slane %v14, 2
  %v689 = vsel %vm686, %v687, %v688
  %691 = vmatprep.subr.mxu0 %v607
  %692 = vmatpush1.msra.mxu0 %v606
  %693 = vmatprep.subr.mxu0 %v612
  %694 = vmatpush1.msra.mxu0 %v611
  %695 = vmatprep.subr.mxu0 %v617
  %696 = vmatpush1.msra.mxu0 %v616
  %697 = vmatprep.subr.mxu0 %v622
  %698 = vmatpush1.msra.mxu0 %v621
  %699 = vmatprep.subr.mxu0 %v627
  %700 = vmatpush1.msra.mxu0 %v626
  %701 = vmatprep.subr.mxu0 %v632
  %702 = vmatpush1.msra.mxu0 %v631
  %703 = vmatprep.subr.mxu0 %v637
  %704 = vmatpush1.msra.mxu0 %v636
  %705 = vmatprep.subr.mxu0 %v642
  %706 = vmatpush1.msra.mxu0 %v641
  %707 = vmatprep.subr.mxu0 %v647
  %708 = vmatpush1.msra.mxu0 %v646
  %709 = vmatprep.subr.mxu0 %v652
  %710 = vmatpush1.msra.mxu0 %v651
  %711 = vmatprep.subr.mxu0 %v657
  %712 = vmatpush1.msra.mxu0 %v656
  %713 = vmatprep.subr.mxu0 %v662
  %714 = vmatpush1.msra.mxu0 %v661
  %715 = vmatprep.subr.mxu0 %v667
  %716 = vmatpush1.msra.mxu0 %v666
  %717 = vmatprep.subr.mxu0 %v672
  %718 = vmatpush1.msra.mxu0 %v671
  %719 = vmatprep.subr.mxu0 %v677
  %720 = vmatpush1.msra.mxu0 %v676
  %721 = vmatprep.subr.mxu0 %v682
  %722 = vmatpush1.msra.mxu0 %v681
  %723 = vmatprep.subr.mxu0 0.0
  %724 = vmatpush1.msra.mxu0 0.0
  %725 = vmatprep.subr.mxu0 0.0
  %726 = vmatpush1.msra.mxu0 0.0
  %727 = vmatprep.subr.mxu0 0.0
  %728 = vmatpush1.msra.mxu0 0.0
  %729 = vmatprep.subr.mxu0 0.0
  %730 = vmatpush1.msra.mxu0 0.0
  %731 = vmatprep.subr.mxu0 0.0
  %732 = vmatpush1.msra.mxu0 0.0
  %733 = vmatprep.subr.mxu0 0.0
  %734 = vmatpush1.msra.mxu0 0.0
  %735 = vmatprep.subr.mxu0 0.0
  %736 = vmatpush1.msra.mxu0 0.0
  %737 = vmatprep.subr.mxu0 0.0
  %738 = vmatpush1.msra.mxu0 0.0
  %739 = vmatprep.subr.mxu0 0.0
  %740 = vmatpush1.msra.mxu0 0.0
  %741 = vmatprep.subr.mxu0 0.0
  %742 = vmatpush1.msra.mxu0 0.0
  %743 = vmatprep.subr.mxu0 0.0
  %744 = vmatpush1.msra.mxu0 0.0
  %745 = vmatprep.subr.mxu0 0.0
  %746 = vmatpush1.msra.mxu0 0.0
  %747 = vmatprep.subr.mxu0 0.0
  %748 = vmatpush1.msra.mxu0 0.0
  %749 = vmatprep.subr.mxu0 0.0
  %750 = vmatpush1.msra.mxu0 0.0
  %751 = vmatprep.subr.mxu0 0.0
  %752 = vmatpush1.msra.mxu0 0.0
  %753 = vmatprep.subr.mxu0 0.0
  %754 = vmatpush1.msra.mxu0 0.0
  %755 = vmatprep.mubr.f32.mxu0 0.0
  %756 = vmatmul.mubr.f32.gmra.mrb[0].mxu0 %v689
  %v757 = vpop.f32.mrb[0].mxu0
  %v758 = vadd.f32 0.0, %v757
  %v759 = vpop.f32.mrb[0].mxu0
  %v760 = vadd.f32 0.0, %v759
  %761 = vdwg.mxu0
  %762 = vmatprep.subr.mxu0 %v609
  %763 = vmatpush1.msra.mxu0 %v608
  %764 = vmatprep.subr.mxu0 %v614
  %765 = vmatpush1.msra.mxu0 %v613
  %766 = vmatprep.subr.mxu0 %v619
  %767 = vmatpush1.msra.mxu0 %v618
  %768 = vmatprep.subr.mxu0 %v624
  %769 = vmatpush1.msra.mxu0 %v623
  %770 = vmatprep.subr.mxu0 %v629
  %771 = vmatpush1.msra.mxu0 %v628
  %772 = vmatprep.subr.mxu0 %v634
  %773 = vmatpush1.msra.mxu0 %v633
  %774 = vmatprep.subr.mxu0 %v639
  %775 = vmatpush1.msra.mxu0 %v638
  %776 = vmatprep.subr.mxu0 %v644
  %777 = vmatpush1.msra.mxu0 %v643
  %778 = vmatprep.subr.mxu0 %v649
  %779 = vmatpush1.msra.mxu0 %v648
  %780 = vmatprep.subr.mxu0 %v654
  %781 = vmatpush1.msra.mxu0 %v653
  %782 = vmatprep.subr.mxu0 %v659
  %783 = vmatpush1.msra.mxu0 %v658
  %784 = vmatprep.subr.mxu0 %v664
  %785 = vmatpush1.msra.mxu0 %v663
  %786 = vmatprep.subr.mxu0 %v669
  %787 = vmatpush1.msra.mxu0 %v668
  %788 = vmatprep.subr.mxu0 %v674
  %789 = vmatpush1.msra.mxu0 %v673
  %790 = vmatprep.subr.mxu0 %v679
  %791 = vmatpush1.msra.mxu0 %v678
  %792 = vmatprep.subr.mxu0 %v684
  %793 = vmatpush1.msra.mxu0 %v683
  %794 = vmatprep.subr.mxu0 0.0
  %795 = vmatpush1.msra.mxu0 0.0
  %796 = vmatprep.subr.mxu0 0.0
  %797 = vmatpush1.msra.mxu0 0.0
  %798 = vmatprep.subr.mxu0 0.0
  %799 = vmatpush1.msra.mxu0 0.0
  %800 = vmatprep.subr.mxu0 0.0
  %801 = vmatpush1.msra.mxu0 0.0
  %802 = vmatprep.subr.mxu0 0.0
  %803 = vmatpush1.msra.mxu0 0.0
  %804 = vmatprep.subr.mxu0 0.0
  %805 = vmatpush1.msra.mxu0 0.0
  %806 = vmatprep.subr.mxu0 0.0
  %807 = vmatpush1.msra.mxu0 0.0
  %808 = vmatprep.subr.mxu0 0.0
  %809 = vmatpush1.msra.mxu0 0.0
  %810 = vmatprep.subr.mxu0 0.0
  %811 = vmatpush1.msra.mxu0 0.0
  %812 = vmatprep.subr.mxu0 0.0
  %813 = vmatpush1.msra.mxu0 0.0
  %814 = vmatprep.subr.mxu0 0.0
  %815 = vmatpush1.msra.mxu0 0.0
  %816 = vmatprep.subr.mxu0 0.0
  %817 = vmatpush1.msra.mxu0 0.0
  %818 = vmatprep.subr.mxu0 0.0
  %819 = vmatpush1.msra.mxu0 0.0
  %820 = vmatprep.subr.mxu0 0.0
  %821 = vmatpush1.msra.mxu0 0.0
  %822 = vmatprep.subr.mxu0 0.0
  %823 = vmatpush1.msra.mxu0 0.0
  %824 = vmatprep.subr.mxu0 0.0
  %825 = vmatpush1.msra.mxu0 0.0
  %826 = vmatprep.mubr.f32.mxu0 0.0
  %827 = vmatmul.mubr.f32.gmra.mrb[0].mxu0 %v689
  %v828 = vpop.f32.mrb[0].mxu0
  %v829 = vadd.f32 0.0, %v828
  %v830 = vpop.f32.mrb[0].mxu0
  %v831 = vadd.f32 0.0, %v830
  %832 = vdwg.mxu0
  %833 = vmatprep.subr.mxu0 0.0
  %834 = vmatpush1.msra.mxu0 %v610
  %835 = vmatprep.subr.mxu0 0.0
  %836 = vmatpush1.msra.mxu0 %v615
  %837 = vmatprep.subr.mxu0 0.0
  %838 = vmatpush1.msra.mxu0 %v620
  %839 = vmatprep.subr.mxu0 0.0
  %840 = vmatpush1.msra.mxu0 %v625
  %841 = vmatprep.subr.mxu0 0.0
  %842 = vmatpush1.msra.mxu0 %v630
  %843 = vmatprep.subr.mxu0 0.0
  %844 = vmatpush1.msra.mxu0 %v635
  %845 = vmatprep.subr.mxu0 0.0
  %846 = vmatpush1.msra.mxu0 %v640
  %847 = vmatprep.subr.mxu0 0.0
  %848 = vmatpush1.msra.mxu0 %v645
  %849 = vmatprep.subr.mxu0 0.0
  %850 = vmatpush1.msra.mxu0 %v650
  %851 = vmatprep.subr.mxu0 0.0
  %852 = vmatpush1.msra.mxu0 %v655
  %853 = vmatprep.subr.mxu0 0.0
  %854 = vmatpush1.msra.mxu0 %v660
  %855 = vmatprep.subr.mxu0 0.0
  %856 = vmatpush1.msra.mxu0 %v665
  %857 = vmatprep.subr.mxu0 0.0
  %858 = vmatpush1.msra.mxu0 %v670
  %859 = vmatprep.subr.mxu0 0.0
  %860 = vmatpush1.msra.mxu0 %v675
  %861 = vmatprep.subr.mxu0 0.0
  %862 = vmatpush1.msra.mxu0 %v680
  %863 = vmatprep.subr.mxu0 0.0
  %864 = vmatpush1.msra.mxu0 %v685
  %865 = vmatprep.subr.mxu0 0.0
  %866 = vmatpush1.msra.mxu0 0.0
  %867 = vmatprep.subr.mxu0 0.0
  %868 = vmatpush1.msra.mxu0 0.0
  %869 = vmatprep.subr.mxu0 0.0
  %870 = vmatpush1.msra.mxu0 0.0
  %871 = vmatprep.subr.mxu0 0.0
  %872 = vmatpush1.msra.mxu0 0.0
  %873 = vmatprep.subr.mxu0 0.0
  %874 = vmatpush1.msra.mxu0 0.0
  %875 = vmatprep.subr.mxu0 0.0
  %876 = vmatpush1.msra.mxu0 0.0
  %877 = vmatprep.subr.mxu0 0.0
  %878 = vmatpush1.msra.mxu0 0.0
  %879 = vmatprep.subr.mxu0 0.0
  %880 = vmatpush1.msra.mxu0 0.0
  %881 = vmatprep.subr.mxu0 0.0
  %882 = vmatpush1.msra.mxu0 0.0
  %883 = vmatprep.subr.mxu0 0.0
  %884 = vmatpush1.msra.mxu0 0.0
  %885 = vmatprep.subr.mxu0 0.0
  %886 = vmatpush1.msra.mxu0 0.0
  %887 = vmatprep.subr.mxu0 0.0
  %888 = vmatpush1.msra.mxu0 0.0
  %889 = vmatprep.subr.mxu0 0.0
  %890 = vmatpush1.msra.mxu0 0.0
  %891 = vmatprep.subr.mxu0 0.0
  %892 = vmatpush1.msra.mxu0 0.0
  %893 = vmatprep.subr.mxu0 0.0
  %894 = vmatpush1.msra.mxu0 0.0
  %895 = vmatprep.subr.mxu0 0.0
  %896 = vmatpush1.msra.mxu0 0.0
  %897 = vmatprep.mubr.f32.mxu0 0.0
  %898 = vmatmul.mubr.f32.gmra.mrb[0].mxu0 %v689
  %v899 = vpop.f32.mrb[0].mxu0
  %v900 = vadd.f32 0.0, %v899
  %v901 = vpop.f32.mrb[0].mxu0
  %902 = vdwg.mxu0
  %v903 = vadd.f32 %v461, %v758
  %v904 = vadd.f32 %v463, %v760
  %v905 = vadd.f32 %v532, %v829
  %v906 = vadd.f32 %v534, %v831
  %v907 = vadd.f32 %v603, %v900
  %v908 = vld [vmem:[%s1 + $0x780] sm:$0xff]
  %v909 = vld [vmem:[%s1 + $0x788] sm:$0xff]
  %v910 = vld [vmem:[%s1 + $0x790] sm:$0xff]
  %v911 = vld [vmem:[%s1 + $0x798] sm:$0xff]
  %v912 = vld [vmem:[%s1 + $0x7a0] sm:$0xff]
  %v913 = vld [vmem:[%s1 + $0x7a8] sm:$0xff]
  %v914 = vld [vmem:[%s1 + $0x7b0] sm:$0xff]
  %v915 = vld [vmem:[%s1 + $0x7b8] sm:$0xff]
  %v916 = vld [vmem:[%s1 + $0x7c0] sm:$0xff]
  %v917 = vld [vmem:[%s1 + $0x7c8] sm:$0xff]
  %v918 = vld [vmem:[%s1 + $0x7d0] sm:$0xff]
  %v919 = vld [vmem:[%s1 + $0x7d8] sm:$0xff]
  %v920 = vld [vmem:[%s1 + $0x7e0] sm:$0xff]
  %v921 = vld [vmem:[%s1 + $0x7e8] sm:$0xff]
  %v922 = vld [vmem:[%s1 + $0x7f0] sm:$0xff]
  %v923 = vld [vmem:[%s1 + $0x7f8] sm:$0xff]
  %v924 = vld [vmem:[%s1 + $0x800] sm:$0xff]
  %v925 = vld [vmem:[%s1 + $0x808] sm:$0xff]
  %v926 = vld [vmem:[%s1 + $0x810] sm:$0xff]
  %v927 = vld [vmem:[%s1 + $0x818] sm:$0xff]
  %v928 = vld [vmem:[%s1 + $0x820] sm:$0xff]
  %v929 = vld [vmem:[%s1 + $0x828] sm:$0xff]
  %v930 = vld [vmem:[%s1 + $0x830] sm:$0xff]
  %v931 = vld [vmem:[%s1 + $0x838] sm:$0xff]
  %v932 = vld [vmem:[%s1 + $0x840] sm:$0xff]
  %v933 = vld [vmem:[%s1 + $0x848] sm:$0xff]
  %v934 = vld [vmem:[%s1 + $0x850] sm:$0xff]
  %v935 = vld [vmem:[%s1 + $0x858] sm:$0xff]
  %v936 = vld [vmem:[%s1 + $0x860] sm:$0xff]
  %v937 = vld [vmem:[%s1 + $0x868] sm:$0xff]
  %v938 = vld [vmem:[%s1 + $0x870] sm:$0xff]
  %v939 = vld [vmem:[%s1 + $0x878] sm:$0xff]
  %v940 = vld [vmem:[%s1 + $0x880] sm:$0xff]
  %v941 = vld [vmem:[%s1 + $0x888] sm:$0xff]
  %v942 = vld [vmem:[%s1 + $0x890] sm:$0xff]
  %v943 = vld [vmem:[%s1 + $0x898] sm:$0xff]
  %v944 = vld [vmem:[%s1 + $0x8a0] sm:$0xff]
  %v945 = vld [vmem:[%s1 + $0x8a8] sm:$0xff]
  %v946 = vld [vmem:[%s1 + $0x8b0] sm:$0xff]
  %v947 = vld [vmem:[%s1 + $0x8b8] sm:$0xff]
  %v948 = vld [vmem:[%s1 + $0x8c0] sm:$0xff]
  %v949 = vld [vmem:[%s1 + $0x8c8] sm:$0xff]
  %v950 = vld [vmem:[%s1 + $0x8d0] sm:$0xff]
  %v951 = vld [vmem:[%s1 + $0x8d8] sm:$0xff]
  %v952 = vld [vmem:[%s1 + $0x8e0] sm:$0xff]
  %v953 = vld [vmem:[%s1 + $0x8e8] sm:$0xff]
  %v954 = vld [vmem:[%s1 + $0x8f0] sm:$0xff]
  %v955 = vld [vmem:[%s1 + $0x8f8] sm:$0xff]
  %v956 = vld [vmem:[%s1 + $0x900] sm:$0xff]
  %v957 = vld [vmem:[%s1 + $0x908] sm:$0xff]
  %v958 = vld [vmem:[%s1 + $0x910] sm:$0xff]
  %v959 = vld [vmem:[%s1 + $0x918] sm:$0xff]
  %v960 = vld [vmem:[%s1 + $0x920] sm:$0xff]
  %v961 = vld [vmem:[%s1 + $0x928] sm:$0xff]
  %v962 = vld [vmem:[%s1 + $0x930] sm:$0xff]
  %v963 = vld [vmem:[%s1 + $0x938] sm:$0xff]
  %v964 = vld [vmem:[%s1 + $0x940] sm:$0xff]
  %v965 = vld [vmem:[%s1 + $0x948] sm:$0xff]
  %v966 = vld [vmem:[%s1 + $0x950] sm:$0xff]
  %v967 = vld [vmem:[%s1 + $0x958] sm:$0xff]
  %v968 = vld [vmem:[%s1 + $0x960] sm:$0xff]
  %v969 = vld [vmem:[%s1 + $0x968] sm:$0xff]
  %v970 = vld [vmem:[%s1 + $0x970] sm:$0xff]
  %v971 = vld [vmem:[%s1 + $0x978] sm:$0xff]
  %v972 = vld [vmem:[%s1 + $0x980] sm:$0xff]
  %v973 = vld [vmem:[%s1 + $0x988] sm:$0xff]
  %v974 = vld [vmem:[%s1 + $0x990] sm:$0xff]
  %v975 = vld [vmem:[%s1 + $0x998] sm:$0xff]
  %v976 = vld [vmem:[%s1 + $0x9a0] sm:$0xff]
  %v977 = vld [vmem:[%s1 + $0x9a8] sm:$0xff]
  %v978 = vld [vmem:[%s1 + $0x9b0] sm:$0xff]
  %v979 = vld [vmem:[%s1 + $0x9b8] sm:$0xff]
  %v980 = vld [vmem:[%s1 + $0x9c0] sm:$0xff]
  %v981 = vld [vmem:[%s1 + $0x9c8] sm:$0xff]
  %v982 = vld [vmem:[%s1 + $0x9d0] sm:$0xff]
  %v983 = vld [vmem:[%s1 + $0x9d8] sm:$0xff]
  %v984 = vld [vmem:[%s1 + $0x9e0] sm:$0xff]
  %v985 = vld [vmem:[%s1 + $0x9e8] sm:$0xff]
  %v986 = vld [vmem:[%s1 + $0x9f0] sm:$0xff]
  %v987 = vld [vmem:[%s1 + $0x9f8] sm:$0xff]
  %vm988 = vcmask 1044480
  %v989 = vrot.slane %v13, 3
  %v990 = vrot.slane %v14, 3
  %v991 = vsel %vm988, %v989, %v990
  %993 = vmatprep.subr.mxu0 %v909
  %994 = vmatpush1.msra.mxu0 %v908
  %995 = vmatprep.subr.mxu0 %v914
  %996 = vmatpush1.msra.mxu0 %v913
  %997 = vmatprep.subr.mxu0 %v919
  %998 = vmatpush1.msra.mxu0 %v918
  %999 = vmatprep.subr.mxu0 %v924
  %1000 = vmatpush1.msra.mxu0 %v923
  %1001 = vmatprep.subr.mxu0 %v929
  %1002 = vmatpush1.msra.mxu0 %v928
  %1003 = vmatprep.subr.mxu0 %v934
  %1004 = vmatpush1.msra.mxu0 %v933
  %1005 = vmatprep.subr.mxu0 %v939
  %1006 = vmatpush1.msra.mxu0 %v938
  %1007 = vmatprep.subr.mxu0 %v944
  %1008 = vmatpush1.msra.mxu0 %v943
  %1009 = vmatprep.subr.mxu0 %v949
  %1010 = vmatpush1.msra.mxu0 %v948
  %1011 = vmatprep.subr.mxu0 %v954
  %1012 = vmatpush1.msra.mxu0 %v953
  %1013 = vmatprep.subr.mxu0 %v959
  %1014 = vmatpush1.msra.mxu0 %v958
  %1015 = vmatprep.subr.mxu0 %v964
  %1016 = vmatpush1.msra.mxu0 %v963
  %1017 = vmatprep.subr.mxu0 %v969
  %1018 = vmatpush1.msra.mxu0 %v968
  %1019 = vmatprep.subr.mxu0 %v974
  %1020 = vmatpush1.msra.mxu0 %v973
  %1021 = vmatprep.subr.mxu0 %v979
  %1022 = vmatpush1.msra.mxu0 %v978
  %1023 = vmatprep.subr.mxu0 %v984
  %1024 = vmatpush1.msra.mxu0 %v983
  %1025 = vmatprep.subr.mxu0 0.0
  %1026 = vmatpush1.msra.mxu0 0.0
  %1027 = vmatprep.subr.mxu0 0.0
  %1028 = vmatpush1.msra.mxu0 0.0
  %1029 = vmatprep.subr.mxu0 0.0
  %1030 = vmatpush1.msra.mxu0 0.0
  %1031 = vmatprep.subr.mxu0 0.0
  %1032 = vmatpush1.msra.mxu0 0.0
  %1033 = vmatprep.subr.mxu0 0.0
  %1034 = vmatpush1.msra.mxu0 0.0
  %1035 = vmatprep.subr.mxu0 0.0
  %1036 = vmatpush1.msra.mxu0 0.0
  %1037 = vmatprep.subr.mxu0 0.0
  %1038 = vmatpush1.msra.mxu0 0.0
  %1039 = vmatprep.subr.mxu0 0.0
  %1040 = vmatpush1.msra.mxu0 0.0
  %1041 = vmatprep.subr.mxu0 0.0
  %1042 = vmatpush1.msra.mxu0 0.0
  %1043 = vmatprep.subr.mxu0 0.0
  %1044 = vmatpush1.msra.mxu0 0.0
  %1045 = vmatprep.subr.mxu0 0.0
  %1046 = vmatpush1.msra.mxu0 0.0
  %1047 = vmatprep.subr.mxu0 0.0
  %1048 = vmatpush1.msra.mxu0 0.0
  %1049 = vmatprep.subr.mxu0 0.0
  %1050 = vmatpush1.msra.mxu0 0.0
  %1051 = vmatprep.subr.mxu0 0.0
  %1052 = vmatpush1.msra.mxu0 0.0
  %1053 = vmatprep.subr.mxu0 0.0
  %1054 = vmatpush1.msra.mxu0 0.0
  %1055 = vmatprep.subr.mxu0 0.0
  %1056 = vmatpush1.msra.mxu0 0.0
  %1057 = vmatprep.mubr.f32.mxu0 0.0
  %1058 = vmatmul.mubr.f32.gmra.mrb[0].mxu0 %v991
  %v1059 = vpop.f32.mrb[0].mxu0
  %v1060 = vadd.f32 0.0, %v1059
  %v1061 = vpop.f32.mrb[0].mxu0
  %v1062 = vadd.f32 0.0, %v1061
  %1063 = vdwg.mxu0
  %1064 = vmatprep.subr.mxu0 %v911
  %1065 = vmatpush1.msra.mxu0 %v910
  %1066 = vmatprep.subr.mxu0 %v916
  %1067 = vmatpush1.msra.mxu0 %v915
  %1068 = vmatprep.subr.mxu0 %v921
  %1069 = vmatpush1.msra.mxu0 %v920
  %1070 = vmatprep.subr.mxu0 %v926
  %1071 = vmatpush1.msra.mxu0 %v925
  %1072 = vmatprep.subr.mxu0 %v931
  %1073 = vmatpush1.msra.mxu0 %v930
  %1074 = vmatprep.subr.mxu0 %v936
  %1075 = vmatpush1.msra.mxu0 %v935
  %1076 = vmatprep.subr.mxu0 %v941
  %1077 = vmatpush1.msra.mxu0 %v940
  %1078 = vmatprep.subr.mxu0 %v946
  %1079 = vmatpush1.msra.mxu0 %v945
  %1080 = vmatprep.subr.mxu0 %v951
  %1081 = vmatpush1.msra.mxu0 %v950
  %1082 = vmatprep.subr.mxu0 %v956
  %1083 = vmatpush1.msra.mxu0 %v955
  %1084 = vmatprep.subr.mxu0 %v961
  %1085 = vmatpush1.msra.mxu0 %v960
  %1086 = vmatprep.subr.mxu0 %v966
  %1087 = vmatpush1.msra.mxu0 %v965
  %1088 = vmatprep.subr.mxu0 %v971
  %1089 = vmatpush1.msra.mxu0 %v970
  %1090 = vmatprep.subr.mxu0 %v976
  %1091 = vmatpush1.msra.mxu0 %v975
  %1092 = vmatprep.subr.mxu0 %v981
  %1093 = vmatpush1.msra.mxu0 %v980
  %1094 = vmatprep.subr.mxu0 %v986
  %1095 = vmatpush1.msra.mxu0 %v985
  %1096 = vmatprep.subr.mxu0 0.0
  %1097 = vmatpush1.msra.mxu0 0.0
  %1098 = vmatprep.subr.mxu0 0.0
  %1099 = vmatpush1.msra.mxu0 0.0
  %1100 = vmatprep.subr.mxu0 0.0
  %1101 = vmatpush1.msra.mxu0 0.0
  %1102 = vmatprep.subr.mxu0 0.0
  %1103 = vmatpush1.msra.mxu0 0.0
  %1104 = vmatprep.subr.mxu0 0.0
  %1105 = vmatpush1.msra.mxu0 0.0
  %1106 = vmatprep.subr.mxu0 0.0
  %1107 = vmatpush1.msra.mxu0 0.0
  %1108 = vmatprep.subr.mxu0 0.0
  %1109 = vmatpush1.msra.mxu0 0.0
  %1110 = vmatprep.subr.mxu0 0.0
  %1111 = vmatpush1.msra.mxu0 0.0
  %1112 = vmatprep.subr.mxu0 0.0
  %1113 = vmatpush1.msra.mxu0 0.0
  %1114 = vmatprep.subr.mxu0 0.0
  %1115 = vmatpush1.msra.mxu0 0.0
  %1116 = vmatprep.subr.mxu0 0.0
  %1117 = vmatpush1.msra.mxu0 0.0
  %1118 = vmatprep.subr.mxu0 0.0
  %1119 = vmatpush1.msra.mxu0 0.0
  %1120 = vmatprep.subr.mxu0 0.0
  %1121 = vmatpush1.msra.mxu0 0.0
  %1122 = vmatprep.subr.mxu0 0.0
  %1123 = vmatpush1.msra.mxu0 0.0
  %1124 = vmatprep.subr.mxu0 0.0
  %1125 = vmatpush1.msra.mxu0 0.0
  %1126 = vmatprep.subr.mxu0 0.0
  %1127 = vmatpush1.msra.mxu0 0.0
  %1128 = vmatprep.mubr.f32.mxu0 0.0
  %1129 = vmatmul.mubr.f32.gmra.mrb[0].mxu0 %v991
  %v1130 = vpop.f32.mrb[0].mxu0
  %v1131 = vadd.f32 0.0, %v1130
  %v1132 = vpop.f32.mrb[0].mxu0
  %v1133 = vadd.f32 0.0, %v1132
  %1134 = vdwg.mxu0
  %1135 = vmatprep.subr.mxu0 0.0
  %1136 = vmatpush1.msra.mxu0 %v912
  %1137 = vmatprep.subr.mxu0 0.0
  %1138 = vmatpush1.msra.mxu0 %v917
  %1139 = vmatprep.subr.mxu0 0.0
  %1140 = vmatpush1.msra.mxu0 %v922
  %1141 = vmatprep.subr.mxu0 0.0
  %1142 = vmatpush1.msra.mxu0 %v927
  %1143 = vmatprep.subr.mxu0 0.0
  %1144 = vmatpush1.msra.mxu0 %v932
  %1145 = vmatprep.subr.mxu0 0.0
  %1146 = vmatpush1.msra.mxu0 %v937
  %1147 = vmatprep.subr.mxu0 0.0
  %1148 = vmatpush1.msra.mxu0 %v942
  %1149 = vmatprep.subr.mxu0 0.0
  %1150 = vmatpush1.msra.mxu0 %v947
  %1151 = vmatprep.subr.mxu0 0.0
  %1152 = vmatpush1.msra.mxu0 %v952
  %1153 = vmatprep.subr.mxu0 0.0
  %1154 = vmatpush1.msra.mxu0 %v957
  %1155 = vmatprep.subr.mxu0 0.0
  %1156 = vmatpush1.msra.mxu0 %v962
  %1157 = vmatprep.subr.mxu0 0.0
  %1158 = vmatpush1.msra.mxu0 %v967
  %1159 = vmatprep.subr.mxu0 0.0
  %1160 = vmatpush1.msra.mxu0 %v972
  %1161 = vmatprep.subr.mxu0 0.0
  %1162 = vmatpush1.msra.mxu0 %v977
  %1163 = vmatprep.subr.mxu0 0.0
  %1164 = vmatpush1.msra.mxu0 %v982
  %1165 = vmatprep.subr.mxu0 0.0
  %1166 = vmatpush1.msra.mxu0 %v987
  %1167 = vmatprep.subr.mxu0 0.0
  %1168 = vmatpush1.msra.mxu0 0.0
  %1169 = vmatprep.subr.mxu0 0.0
  %1170 = vmatpush1.msra.mxu0 0.0
  %1171 = vmatprep.subr.mxu0 0.0
  %1172 = vmatpush1.msra.mxu0 0.0
  %1173 = vmatprep.subr.mxu0 0.0
  %1174 = vmatpush1.msra.mxu0 0.0
  %1175 = vmatprep.subr.mxu0 0.0
  %1176 = vmatpush1.msra.mxu0 0.0
  %1177 = vmatprep.subr.mxu0 0.0
  %1178 = vmatpush1.msra.mxu0 0.0
  %1179 = vmatprep.subr.mxu0 0.0
  %1180 = vmatpush1.msra.mxu0 0.0
  %1181 = vmatprep.subr.mxu0 0.0
  %1182 = vmatpush1.msra.mxu0 0.0
  %1183 = vmatprep.subr.mxu0 0.0
  %1184 = vmatpush1.msra.mxu0 0.0
  %1185 = vmatprep.subr.mxu0 0.0
  %1186 = vmatpush1.msra.mxu0 0.0
  %1187 = vmatprep.subr.mxu0 0.0
  %1188 = vmatpush1.msra.mxu0 0.0
  %1189 = vmatprep.subr.mxu0 0.0
  %1190 = vmatpush1.msra.mxu0 0.0
  %1191 = vmatprep.subr.mxu0 0.0
  %1192 = vmatpush1.msra.mxu0 0.0
  %1193 = vmatprep.subr.mxu0 0.0
  %1194 = vmatpush1.msra.mxu0 0.0
  %1195 = vmatprep.subr.mxu0 0.0
  %1196 = vmatpush1.msra.mxu0 0.0
  %1197 = vmatprep.subr.mxu0 0.0
  %1198 = vmatpush1.msra.mxu0 0.0
  %1199 = vmatprep.mubr.f32.mxu0 0.0
  %1200 = vmatmul.mubr.f32.gmra.mrb[0].mxu0 %v991
  %v1201 = vpop.f32.mrb[0].mxu0
  %v1202 = vadd.f32 0.0, %v1201
  %v1203 = vpop.f32.mrb[0].mxu0
  %1204 = vdwg.mxu0
  %v1205 = vadd.f32 %v903, %v1060
  %v1206 = vadd.f32 %v904, %v1062
  %v1207 = vadd.f32 %v905, %v1131
  %v1208 = vadd.f32 %v906, %v1133
  %v1209 = vadd.f32 %v907, %v1202
  %1210 = vst [vmem:[%s2] sm:$0xff] %v1205
  %1211 = vst [vmem:[%s2 + $0x8] sm:$0xff] %v1206
  %1212 = vst [vmem:[%s2 + $0x10] sm:$0xff] %v1207
  %1213 = vst [vmem:[%s2 + $0x18] sm:$0xff] %v1208
  %1214 = vst [vmem:[%s2 + $0x20] sm:$0xff] %v1209
  // Predicated region
  $region10: #{model_forward.6} parent=0 // pred_check
    _
  $region11: #{model_forward.6} parent=0 // pred_check_branch
    %1216 = sbr.rel (0) target = $region13
  $region12: #{model_forward.6} parent=0 // pred_region
    _
  $region13: #{model_forward.6} parent=0 // pred_fallthru
    _
  // Predicated region
  $region14: #{model_forward.6} parent=0 // pred_check
    _
  $region15: #{model_forward.6} parent=0 // pred_check_branch
    %1218 = sbr.rel (0) target = $region17
  $region16: #{model_forward.6} parent=0 // pred_region
    _
  $region17: #{model_forward.6} parent=0 // pred_fallthru
    _

// kernel: model_forward.4
$region0: #{model_forward.4}
  #allocation0 [shape = 'u32[]', space=smem, size = 0x4, offset = 0x4, fixed_abs, tag = 'smem constant byte address 0x4 - core index']
  #allocation1 [shape = 'u32[144,128]{1,0:T(1,128)}', space=vmem, size = 0x12000, scoped, tag = 'internal scratch']
  %s0 = inlined_call_operand.vmem [shape: f32[2,32,16], index: 0, kind: input, shape index: {}]
  %s1 = inlined_call_operand.vmem [shape: f32[64,128], index: 1, kind: input, shape index: {}]
  %s2 = inlined_call_operand.vmem [shape: f32[2,24,128], index: 2, kind: output, shape index: {}]
  %s3 = sld [smem:[#allocation0]]
  $region41: #{model_forward.4} parent=0
    _
  %s5 = ssub.s32 1, %s3
  %s6 = scalar_select 0, %s5, %s3
  loop: start=0, step=1, limit=4
  $region2: #{model_forward.4} parent=0 // loop_pre_header
    _
  $region3: #{model_forward.4} parent=0 // loop_header
    %s8 = sphi 0, %s12
    %p9 = scmp.ge.s32.totalorder %s8, 4
    %s15 = sphi 0, %s27
    %s16 = sphi 0, %s23
    %s17 = sphi 0, %s15
    %s18 = sphi 0, %s16
    %s19 = sphi 0, %s17
    %s20 = sphi 0, %s18
    %s30 = sphi 0, %s32
    %s33 = sphi 0, %s30
    %s34 = sphi 0, %s33
    %s50 = sphi 0, %s34
    %s54 = sphi 0, %s54
    %s56 = sphi 0, %s54
    %s57 = sphi 0, %s56
    %s71 = sphi 0, %s57
    %s79 = sphi 0, %s81
    %s82 = sphi 0, %s79
    %s83 = sphi 0, %s82
    %s99 = sphi 0, %s83
  $region4: #{model_forward.4} parent=0 // loop_header_branch
    %11 = sbr.rel (%p9) target = $region8
  $region5: #{model_forward.4} parent=0 // loop_body
    %s13 = ssub.s32 %s8, 1
    %s14 = ssub.s32 %s8, 2
    %s21 = sadd.s32 1, %s16
    %p22 = scmp.ge.s32.totalorder %s21, 1
    %s23 = scalar_select %p22, 0, %s21
    %s24 = sadd.s32 1, %s15
    %s25 = scalar_select %p22, %s24, %s15
    %p26 = scmp.ge.s32.totalorder %s25, 2
    %s27 = scalar_select %p26, 0, %s25
    %s28 = ssub.s32 %s15, %s27
    %p29 = scmp.eq.s32.totalorder %s28, 0
    %s31 = sadd.s32 %s30, 1
    %s32 = scalar_select %p29, %s30, %s31
    %p35 = pneg %p29
    %p36 = scmp.eq.s32.totalorder %s8, 1
    %p37 = por %p35, %p36
    %p38 = scmp.ne.s32.totalorder %s30, %s33
    %p39 = scmp.eq.s32.totalorder %s8, 0
    %p40 = por %p38, %p39
    %p41 = scmp.ne.s32.totalorder %s30, %s33
    %p42 = scmp.eq.s32.totalorder %s13, 1
    %p43 = por %p41, %p42
    %p44 = scmp.ne.s32.totalorder %s33, %s34
    %p45 = scmp.eq.s32.totalorder %s13, 0
    %p46 = por %p44, %p45
    %p47 = scmp.ne.s32.totalorder %s33, %s34
    %p48 = scmp.eq.s32.totalorder %s14, 1
    %p49 = por %p47, %p48
    %p51 = scmp.ne.s32.totalorder %s34, %s50
    %p52 = scmp.eq.s32.totalorder %s14, 0
    %p53 = por %p51, %p52
    %s55 = sadd.s32 %s54, 1
    %p58 = scmp.eq.s32.totalorder %s8, 1
    %p59 = scmp.ne.s32.totalorder %s54, %s56
    %p60 = scmp.eq.s32.totalorder %s8, 0
    %p61 = por %p59, %p60
    %p62 = scmp.ne.s32.totalorder %s54, %s56
    %p63 = scmp.eq.s32.totalorder %s13, 1
    %p64 = por %p62, %p63
    %p65 = scmp.ne.s32.totalorder %s56, %s57
    %p66 = scmp.eq.s32.totalorder %s13, 0
    %p67 = por %p65, %p66
    %p68 = scmp.ne.s32.totalorder %s56, %s57
    %p69 = scmp.eq.s32.totalorder %s14, 1
    %p70 = por %p68, %p69
    %p72 = scmp.ne.s32.totalorder %s57, %s71
    %p73 = scmp.eq.s32.totalorder %s14, 0
    %p74 = por %p72, %p73
    %s75 = ssub.s32 %s15, %s27
    %s76 = ssub.s32 %s16, %s23
    %s77 = sor.u32 %s75, %s76
    %p78 = scmp.eq.s32.totalorder %s77, 0
    %s80 = sadd.s32 %s79, 1
    %s81 = scalar_select %p78, %s79, %s80
    %p84 = pneg %p78
    %p85 = scmp.eq.s32.totalorder %s8, 1
    %p86 = por %p84, %p85
    %p87 = scmp.ne.s32.totalorder %s79, %s82
    %p88 = scmp.eq.s32.totalorder %s8, 0
    %p89 = por %p87, %p88
    %p90 = scmp.ne.s32.totalorder %s79, %s82
    %p91 = scmp.eq.s32.totalorder %s13, 1
    %p92 = por %p90, %p91
    %p93 = scmp.ne.s32.totalorder %s82, %s83
    %p94 = scmp.eq.s32.totalorder %s13, 0
    %p95 = por %p93, %p94
    %p96 = scmp.ne.s32.totalorder %s82, %s83
    %p97 = scmp.eq.s32.totalorder %s14, 1
    %p98 = por %p96, %p97
    %p100 = scmp.ne.s32.totalorder %s83, %s99
    %p101 = scmp.eq.s32.totalorder %s14, 0
    %p102 = por %p100, %p101
    %p103 = scmp.le.s32.totalorder 1, %s8
    %p104 = scmp.lt.s32.totalorder %s8, 3
    %p105 = pnand %p103, %p104
    %p106 = pneg %p105
    // Predicated region
    $region9: #{model_forward.4} parent=5 // pred_check
      _
    $region10: #{model_forward.4} parent=5 // pred_check_branch
      %108 = sbr.rel (%p105) target = $region12
    $region11: #{model_forward.4} parent=5 // pred_region
      %s109 = ssub.s32 %s8, 1
      // Predicated region
      $region13: #{model_forward.4} parent=11 // pred_check
        %p110 = pneg %p67
      $region14: #{model_forward.4} parent=11 // pred_check_branch
        %112 = sbr.rel (%p110) target = $region16
      $region15: #{model_forward.4} parent=11 // pred_region
        _
      $region16: #{model_forward.4} parent=11 // pred_fallthru
        _
    $region12: #{model_forward.4} parent=5 // pred_fallthru
      _
    %p113 = scmp.lt.s32.totalorder %s8, 2
    // Predicated region
    $region17: #{model_forward.4} parent=5 // pred_check
      %p114 = pneg %p113
    $region18: #{model_forward.4} parent=5 // pred_check_branch
      %116 = sbr.rel (%p114) target = $region20
    $region19: #{model_forward.4} parent=5 // pred_region
      // Predicated region
      $region21: #{model_forward.4} parent=19 // pred_check
        %p117 = pneg %p40
      $region22: #{model_forward.4} parent=19 // pred_check_branch
        %119 = sbr.rel (%p117) target = $region24
      $region23: #{model_forward.4} parent=19 // pred_region
        %p120 = scmp.lt.s32.totalorder %s15, 1
        %s121 = scalar_select %p120, %s15, 1
        %s122 = smul.addr %s121, 4
        %s123 = smul.addr %s122, 8
        %s124 = scalar_lea.vmem %s0, %s123
      $region24: #{model_forward.4} parent=19 // pred_fallthru
        _
    $region20: #{model_forward.4} parent=5 // pred_fallthru
      _
    %p125 = scmp.le.s32.totalorder 1, %s8
    %p126 = scmp.lt.s32.totalorder %s8, 3
    %p127 = pnand %p125, %p126
    %p128 = pneg %p127
    // Predicated region
    $region25: #{model_forward.4} parent=5 // pred_check
      _
    $region26: #{model_forward.4} parent=5 // pred_check_branch
      %130 = sbr.rel (%p127) target = $region28
    $region27: #{model_forward.4} parent=5 // pred_region
      %s131 = ssub.s32 %s8, 1
      %p132 = scmp.lt.s32.totalorder %s17, 1
      %s133 = scalar_select %p132, %s17, 1
      %s134 = smul.addr %s133, 4
      %s135 = smul.addr %s134, 8
      %s136 = scalar_lea.vmem %s0, %s135
      %p137 = pneg %p46
      %p138 = pneg %p43
      %p139 = pneg %p67
      %p140 = pneg %p64
      %p141 = pneg %p95
      %p142 = pneg %p92
      %s143 = smul.u32 3, %s18
      %p144 = scmp.lt.s32.totalorder %s17, 1
      %s145 = scalar_select %p144, %s17, 1
      %p146 = scmp.lt.s32.totalorder %s143, 2
      %s147 = scalar_select %p146, %s143, 2
      %s148 = smul.addr %s145, 3
      %s149 = sadd.s32 %s147, %s148
      %s150 = smul.addr %s149, 8
      %s151 = scalar_lea.vmem %s2, %s150
      %p152 = scmp.lt.s32.totalorder %s17, 1
      %s153 = scalar_select %p152, %s17, 1
      %s154 = smul.addr %s153, 4
      %s155 = smul.addr %s154, 8
      %s156 = scalar_lea.vmem %s0, %s155
      %s157 = smul.u32 3, %s18
      %p158 = scmp.lt.s32.totalorder %s17, 1
      %s159 = scalar_select %p158, %s17, 1
      %p160 = scmp.lt.s32.totalorder %s157, 2
      %s161 = scalar_select %p160, %s157, 2
      %s162 = smul.addr %s159, 3
      %s163 = sadd.s32 %s161, %s162
      %s164 = smul.addr %s163, 8
      %s165 = scalar_lea.vmem %s2, %s164
      %s166 = smul.u32 3, %s18
      %s167 = smul.u32 %s18, 24
      %s168 = scalar_lea.vmem %s156, %s167
      %v169 = vld [vmem:[%s168] sm:$0xff]
      %v170 = vld [vmem:[%s168 + $0x8] sm:$0xff]
      %v171 = vld [vmem:[%s168 + $0x10] sm:$0xff]
      %v172 = vld [vmem:[%s168 + $0x18] sm:$0xff]
      %v173 = vld [vmem:[%s1] sm:$0xff]
      %v174 = vld [vmem:[%s1 + $0x8] sm:$0xff]
      %v175 = vld [vmem:[%s1 + $0x10] sm:$0xff]
      %v176 = vld [vmem:[%s1 + $0x18] sm:$0xff]
      %vm181 = vcmask 1046528
      %v182 = vrot.slane %v169, 1
      %v183 = vrot.slane %v170, 1
      %v184 = vsel %vm181, %v182, %v183
      %v185 = vrot.slane %v171, 1
      %v186 = vsel %vm181, %v183, %v185
      %v187 = vrot.slane %v172, 1
      %v188 = vsel %vm181, %v185, %v187
      %vm189 = vcmask 130048
      %v190 = vsel %vm189, %v184, 0
      %v192 = vsel %vm189, %v186, 0
      %v194 = vsel %vm189, %v188, 0
      %196 = vmatprep.subr.mxu0 0.0
      %197 = vmatpush1.msra.mxu0 %v175
      %198 = vmatprep.subr.mxu0 0.0
      %199 = vmatpush1.msra.mxu0 %v176
      %200 = vmatprep.subr.mxu0 0.0
      %201 = vmatpush1.msra.mxu0 0.0
      %202 = vmatprep.subr.mxu0 0.0
      %203 = vmatpush1.msra.mxu0 0.0
      %204 = vmatprep.subr.mxu0 0.0
      %205 = vmatpush1.msra.mxu0 0.0
      %206 = vmatprep.subr.mxu0 0.0
      %207 = vmatpush1.msra.mxu0 0.0
      %208 = vmatprep.subr.mxu0 0.0
      %209 = vmatpush1.msra.mxu0 0.0
      %210 = vmatprep.subr.mxu0 0.0
      %211 = vmatpush1.msra.mxu0 0.0
      %212 = vmatprep.subr.mxu0 0.0
      %213 = vmatpush1.msra.mxu0 0.0
      %214 = vmatprep.subr.mxu0 0.0
      %215 = vmatpush1.msra.mxu0 0.0
      %216 = vmatprep.subr.mxu0 0.0
      %217 = vmatpush1.msra.mxu0 0.0
      %218 = vmatprep.subr.mxu0 0.0
      %219 = vmatpush1.msra.mxu0 0.0
      %220 = vmatprep.subr.mxu0 0.0
      %221 = vmatpush1.msra.mxu0 0.0
      %222 = vmatprep.subr.mxu0 0.0
      %223 = vmatpush1.msra.mxu0 0.0
      %224 = vmatprep.subr.mxu0 0.0
      %225 = vmatpush1.msra.mxu0 0.0
      %226 = vmatprep.subr.mxu0 0.0
      %227 = vmatpush1.msra.mxu0 0.0
      %228 = vmatprep.subr.mxu0 0.0
      %229 = vmatpush1.msra.mxu0 0.0
      %230 = vmatprep.subr.mxu0 0.0
      %231 = vmatpush1.msra.mxu0 0.0
      %232 = vmatprep.subr.mxu0 0.0
      %233 = vmatpush1.msra.mxu0 0.0
      %234 = vmatprep.subr.mxu0 0.0
      %235 = vmatpush1.msra.mxu0 0.0
      %236 = vmatprep.subr.mxu0 0.0
      %237 = vmatpush1.msra.mxu0 0.0
      %238 = vmatprep.subr.mxu0 0.0
      %239 = vmatpush1.msra.mxu0 0.0
      %240 = vmatprep.subr.mxu0 0.0
      %241 = vmatpush1.msra.mxu0 0.0
      %242 = vmatprep.subr.mxu0 0.0
      %243 = vmatpush1.msra.mxu0 0.0
      %244 = vmatprep.subr.mxu0 0.0
      %245 = vmatpush1.msra.mxu0 0.0
      %246 = vmatprep.subr.mxu0 0.0
      %247 = vmatpush1.msra.mxu0 0.0
      %248 = vmatprep.subr.mxu0 0.0
      %249 = vmatpush1.msra.mxu0 0.0
      %250 = vmatprep.subr.mxu0 0.0
      %251 = vmatpush1.msra.mxu0 0.0
      %252 = vmatprep.subr.mxu0 0.0
      %253 = vmatpush1.msra.mxu0 0.0
      %254 = vmatprep.subr.mxu0 0.0
      %255 = vmatpush1.msra.mxu0 0.0
      %256 = vmatprep.subr.mxu0 0.0
      %257 = vmatpush1.msra.mxu0 0.0
      %258 = vmatprep.subr.mxu0 0.0
      %259 = vmatpush1.msra.mxu0 0.0
      %260 = vmatprep.mubr.f32.mxu0 0.0
      %261 = vmatmul.mubr.f32.gmra.mrb[0].mxu0 %v190
      %v262 = vpop.f32.mrb[0].mxu0
      %v263 = vadd.f32 0.0, %v262
      %v264 = vpop.f32.mrb[0].mxu0
      %265 = vmatprep.mubr.f32.mxu0 0.0
      %266 = vmatmul.mubr.f32.gmra.mrb[0].mxu0 %v192
      %v267 = vpop.f32.mrb[0].mxu0
      %v268 = vadd.f32 0.0, %v267
      %v269 = vpop.f32.mrb[0].mxu0
      %270 = vmatprep.mubr.f32.mxu0 0.0
      %271 = vmatmul.mubr.f32.gmra.mrb[0].mxu0 %v194
      %v272 = vpop.f32.mrb[0].mxu0
      %v273 = vadd.f32 0.0, %v272
      %v274 = vpop.f32.mrb[0].mxu0
      %275 = vdwg.mxu0
      %v276 = vsel %vm189, %v169, 0
      %v278 = vsel %vm189, %v170, 0
      %v280 = vsel %vm189, %v171, 0
      %282 = vmatprep.subr.mxu0 0.0
      %283 = vmatpush1.msra.mxu0 %v173
      %284 = vmatprep.subr.mxu0 0.0
      %285 = vmatpush1.msra.mxu0 %v174
      %286 = vmatprep.subr.mxu0 0.0
      %287 = vmatpush1.msra.mxu0 0.0
      %288 = vmatprep.subr.mxu0 0.0
      %289 = vmatpush1.msra.mxu0 0.0
      %290 = vmatprep.subr.mxu0 0.0
      %291 = vmatpush1.msra.mxu0 0.0
      %292 = vmatprep.subr.mxu0 0.0
      %293 = vmatpush1.msra.mxu0 0.0
      %294 = vmatprep.subr.mxu0 0.0
      %295 = vmatpush1.msra.mxu0 0.0
      %296 = vmatprep.subr.mxu0 0.0
      %297 = vmatpush1.msra.mxu0 0.0
      %298 = vmatprep.subr.mxu0 0.0
      %299 = vmatpush1.msra.mxu0 0.0
      %300 = vmatprep.subr.mxu0 0.0
      %301 = vmatpush1.msra.mxu0 0.0
      %302 = vmatprep.subr.mxu0 0.0
      %303 = vmatpush1.msra.mxu0 0.0
      %304 = vmatprep.subr.mxu0 0.0
      %305 = vmatpush1.msra.mxu0 0.0
      %306 = vmatprep.subr.mxu0 0.0
      %307 = vmatpush1.msra.mxu0 0.0
      %308 = vmatprep.subr.mxu0 0.0
      %309 = vmatpush1.msra.mxu0 0.0
      %310 = vmatprep.subr.mxu0 0.0
      %311 = vmatpush1.msra.mxu0 0.0
      %312 = vmatprep.subr.mxu0 0.0
      %313 = vmatpush1.msra.mxu0 0.0
      %314 = vmatprep.subr.mxu0 0.0
      %315 = vmatpush1.msra.mxu0 0.0
      %316 = vmatprep.subr.mxu0 0.0
      %317 = vmatpush1.msra.mxu0 0.0
      %318 = vmatprep.subr.mxu0 0.0
      %319 = vmatpush1.msra.mxu0 0.0
      %320 = vmatprep.subr.mxu0 0.0
      %321 = vmatpush1.msra.mxu0 0.0
      %322 = vmatprep.subr.mxu0 0.0
      %323 = vmatpush1.msra.mxu0 0.0
      %324 = vmatprep.subr.mxu0 0.0
      %325 = vmatpush1.msra.mxu0 0.0
      %326 = vmatprep.subr.mxu0 0.0
      %327 = vmatpush1.msra.mxu0 0.0
      %328 = vmatprep.subr.mxu0 0.0
      %329 = vmatpush1.msra.mxu0 0.0
      %330 = vmatprep.subr.mxu0 0.0
      %331 = vmatpush1.msra.mxu0 0.0
      %332 = vmatprep.subr.mxu0 0.0
      %333 = vmatpush1.msra.mxu0 0.0
      %334 = vmatprep.subr.mxu0 0.0
      %335 = vmatpush1.msra.mxu0 0.0
      %336 = vmatprep.subr.mxu0 0.0
      %337 = vmatpush1.msra.mxu0 0.0
      %338 = vmatprep.subr.mxu0 0.0
      %339 = vmatpush1.msra.mxu0 0.0
      %340 = vmatprep.subr.mxu0 0.0
      %341 = vmatpush1.msra.mxu0 0.0
      %342 = vmatprep.subr.mxu0 0.0
      %343 = vmatpush1.msra.mxu0 0.0
      %344 = vmatprep.subr.mxu0 0.0
      %345 = vmatpush1.msra.mxu0 0.0
      %346 = vmatprep.mubr.f32.mxu0 0.0
      %347 = vmatmul.mubr.f32.gmra.mrb[0].mxu0 %v276
      %v348 = vpop.f32.mrb[0].mxu0
      %v349 = vadd.f32 %v263, %v348
      %v350 = vpop.f32.mrb[0].mxu0
      %351 = vmatprep.mubr.f32.mxu0 0.0
      %352 = vmatmul.mubr.f32.gmra.mrb[0].mxu0 %v278
      %v353 = vpop.f32.mrb[0].mxu0
      %v354 = vadd.f32 %v268, %v353
      %v355 = vpop.f32.mrb[0].mxu0
      %356 = vmatprep.mubr.f32.mxu0 0.0
      %357 = vmatmul.mubr.f32.gmra.mrb[0].mxu0 %v280
      %v358 = vpop.f32.mrb[0].mxu0
      %v359 = vadd.f32 %v273, %v358
      %v360 = vpop.f32.mrb[0].mxu0
      %361 = vdwg.mxu0
      %v362 = vld [vmem:[%s1 + $0x20] sm:$0xff]
      %v363 = vld [vmem:[%s1 + $0x28] sm:$0xff]
      %vm364 = vcmask 1045504
      %v365 = vrot.slane %v169, 2
      %v366 = vrot.slane %v170, 2
      %v367 = vsel %vm364, %v365, %v366
      %v368 = vrot.slane %v171, 2
      %v369 = vsel %vm364, %v366, %v368
      %v370 = vrot.slane %v172, 2
      %v371 = vsel %vm364, %v368, %v370
      %v372 = vsel %vm189, %v367, 0
      %v374 = vsel %vm189, %v369, 0
      %v376 = vsel %vm189, %v371, 0
      %378 = vmatprep.subr.mxu0 0.0
      %379 = vmatpush1.msra.mxu0 %v362
      %380 = vmatprep.subr.mxu0 0.0
      %381 = vmatpush1.msra.mxu0 %v363
      %382 = vmatprep.subr.mxu0 0.0
      %383 = vmatpush1.msra.mxu0 0.0
      %384 = vmatprep.subr.mxu0 0.0
      %385 = vmatpush1.msra.mxu0 0.0
      %386 = vmatprep.subr.mxu0 0.0
      %387 = vmatpush1.msra.mxu0 0.0
      %388 = vmatprep.subr.mxu0 0.0
      %389 = vmatpush1.msra.mxu0 0.0
      %390 = vmatprep.subr.mxu0 0.0
      %391 = vmatpush1.msra.mxu0 0.0
      %392 = vmatprep.subr.mxu0 0.0
      %393 = vmatpush1.msra.mxu0 0.0
      %394 = vmatprep.subr.mxu0 0.0
      %395 = vmatpush1.msra.mxu0 0.0
      %396 = vmatprep.subr.mxu0 0.0
      %397 = vmatpush1.msra.mxu0 0.0
      %398 = vmatprep.subr.mxu0 0.0
      %399 = vmatpush1.msra.mxu0 0.0
      %400 = vmatprep.subr.mxu0 0.0
      %401 = vmatpush1.msra.mxu0 0.0
      %402 = vmatprep.subr.mxu0 0.0
      %403 = vmatpush1.msra.mxu0 0.0
      %404 = vmatprep.subr.mxu0 0.0
      %405 = vmatpush1.msra.mxu0 0.0
      %406 = vmatprep.subr.mxu0 0.0
      %407 = vmatpush1.msra.mxu0 0.0
      %408 = vmatprep.subr.mxu0 0.0
      %409 = vmatpush1.msra.mxu0 0.0
      %410 = vmatprep.subr.mxu0 0.0
      %411 = vmatpush1.msra.mxu0 0.0
      %412 = vmatprep.subr.mxu0 0.0
      %413 = vmatpush1.msra.mxu0 0.0
      %414 = vmatprep.subr.mxu0 0.0
      %415 = vmatpush1.msra.mxu0 0.0
      %416 = vmatprep.subr.mxu0 0.0
      %417 = vmatpush1.msra.mxu0 0.0
      %418 = vmatprep.subr.mxu0 0.0
      %419 = vmatpush1.msra.mxu0 0.0
      %420 = vmatprep.subr.mxu0 0.0
      %421 = vmatpush1.msra.mxu0 0.0
      %422 = vmatprep.subr.mxu0 0.0
      %423 = vmatpush1.msra.mxu0 0.0
      %424 = vmatprep.subr.mxu0 0.0
      %425 = vmatpush1.msra.mxu0 0.0
      %426 = vmatprep.subr.mxu0 0.0
      %427 = vmatpush1.msra.mxu0 0.0
      %428 = vmatprep.subr.mxu0 0.0
      %429 = vmatpush1.msra.mxu0 0.0
      %430 = vmatprep.subr.mxu0 0.0
      %431 = vmatpush1.msra.mxu0 0.0
      %432 = vmatprep.subr.mxu0 0.0
      %433 = vmatpush1.msra.mxu0 0.0
      %434 = vmatprep.subr.mxu0 0.0
      %435 = vmatpush1.msra.mxu0 0.0
      %436 = vmatprep.subr.mxu0 0.0
      %437 = vmatpush1.msra.mxu0 0.0
      %438 = vmatprep.subr.mxu0 0.0
      %439 = vmatpush1.msra.mxu0 0.0
      %440 = vmatprep.subr.mxu0 0.0
      %441 = vmatpush1.msra.mxu0 0.0
      %442 = vmatprep.mubr.f32.mxu0 0.0
      %443 = vmatmul.mubr.f32.gmra.mrb[0].mxu0 %v372
      %v444 = vpop.f32.mrb[0].mxu0
      %v445 = vadd.f32 0.0, %v444
      %v446 = vpop.f32.mrb[0].mxu0
      %447 = vmatprep.mubr.f32.mxu0 0.0
      %448 = vmatmul.mubr.f32.gmra.mrb[0].mxu0 %v374
      %v449 = vpop.f32.mrb[0].mxu0
      %v450 = vadd.f32 0.0, %v449
      %v451 = vpop.f32.mrb[0].mxu0
      %452 = vmatprep.mubr.f32.mxu0 0.0
      %453 = vmatmul.mubr.f32.gmra.mrb[0].mxu0 %v376
      %v454 = vpop.f32.mrb[0].mxu0
      %v455 = vadd.f32 0.0, %v454
      %v456 = vpop.f32.mrb[0].mxu0
      %457 = vdwg.mxu0
      %v458 = vadd.f32 %v349, %v445
      %v459 = vadd.f32 %v354, %v450
      %v460 = vadd.f32 %v359, %v455
      %v461 = vld [vmem:[%s1 + $0x30] sm:$0xff]
      %v462 = vld [vmem:[%s1 + $0x38] sm:$0xff]
      %vm463 = vcmask 1044480
      %v464 = vrot.slane %v169, 3
      %v465 = vrot.slane %v170, 3
      %v466 = vsel %vm463, %v464, %v465
      %v467 = vrot.slane %v171, 3
      %v468 = vsel %vm463, %v465, %v467
      %v469 = vrot.slane %v172, 3
      %v470 = vsel %vm463, %v467, %v469
      %v471 = vsel %vm189, %v466, 0
      %v473 = vsel %vm189, %v468, 0
      %v475 = vsel %vm189, %v470, 0
      %477 = vmatprep.subr.mxu0 0.0
      %478 = vmatpush1.msra.mxu0 %v461
      %479 = vmatprep.subr.mxu0 0.0
      %480 = vmatpush1.msra.mxu0 %v462
      %481 = vmatprep.subr.mxu0 0.0
      %482 = vmatpush1.msra.mxu0 0.0
      %483 = vmatprep.subr.mxu0 0.0
      %484 = vmatpush1.msra.mxu0 0.0
      %485 = vmatprep.subr.mxu0 0.0
      %486 = vmatpush1.msra.mxu0 0.0
      %487 = vmatprep.subr.mxu0 0.0
      %488 = vmatpush1.msra.mxu0 0.0
      %489 = vmatprep.subr.mxu0 0.0
      %490 = vmatpush1.msra.mxu0 0.0
      %491 = vmatprep.subr.mxu0 0.0
      %492 = vmatpush1.msra.mxu0 0.0
      %493 = vmatprep.subr.mxu0 0.0
      %494 = vmatpush1.msra.mxu0 0.0
      %495 = vmatprep.subr.mxu0 0.0
      %496 = vmatpush1.msra.mxu0 0.0
      %497 = vmatprep.subr.mxu0 0.0
      %498 = vmatpush1.msra.mxu0 0.0
      %499 = vmatprep.subr.mxu0 0.0
      %500 = vmatpush1.msra.mxu0 0.0
      %501 = vmatprep.subr.mxu0 0.0
      %502 = vmatpush1.msra.mxu0 0.0
      %503 = vmatprep.subr.mxu0 0.0
      %504 = vmatpush1.msra.mxu0 0.0
      %505 = vmatprep.subr.mxu0 0.0
      %506 = vmatpush1.msra.mxu0 0.0
      %507 = vmatprep.subr.mxu0 0.0
      %508 = vmatpush1.msra.mxu0 0.0
      %509 = vmatprep.subr.mxu0 0.0
      %510 = vmatpush1.msra.mxu0 0.0
      %511 = vmatprep.subr.mxu0 0.0
      %512 = vmatpush1.msra.mxu0 0.0
      %513 = vmatprep.subr.mxu0 0.0
      %514 = vmatpush1.msra.mxu0 0.0
      %515 = vmatprep.subr.mxu0 0.0
      %516 = vmatpush1.msra.mxu0 0.0
      %517 = vmatprep.subr.mxu0 0.0
      %518 = vmatpush1.msra.mxu0 0.0
      %519 = vmatprep.subr.mxu0 0.0
      %520 = vmatpush1.msra.mxu0 0.0
      %521 = vmatprep.subr.mxu0 0.0
      %522 = vmatpush1.msra.mxu0 0.0
      %523 = vmatprep.subr.mxu0 0.0
      %524 = vmatpush1.msra.mxu0 0.0
      %525 = vmatprep.subr.mxu0 0.0
      %526 = vmatpush1.msra.mxu0 0.0
      %527 = vmatprep.subr.mxu0 0.0
      %528 = vmatpush1.msra.mxu0 0.0
      %529 = vmatprep.subr.mxu0 0.0
      %530 = vmatpush1.msra.mxu0 0.0
      %531 = vmatprep.subr.mxu0 0.0
      %532 = vmatpush1.msra.mxu0 0.0
      %533 = vmatprep.subr.mxu0 0.0
      %534 = vmatpush1.msra.mxu0 0.0
      %535 = vmatprep.subr.mxu0 0.0
      %536 = vmatpush1.msra.mxu0 0.0
      %537 = vmatprep.subr.mxu0 0.0
      %538 = vmatpush1.msra.mxu0 0.0
      %539 = vmatprep.subr.mxu0 0.0
      %540 = vmatpush1.msra.mxu0 0.0
      %541 = vmatprep.mubr.f32.mxu0 0.0
      %542 = vmatmul.mubr.f32.gmra.mrb[0].mxu0 %v471
      %v543 = vpop.f32.mrb[0].mxu0
      %v544 = vadd.f32 0.0, %v543
      %v545 = vpop.f32.mrb[0].mxu0
      %546 = vmatprep.mubr.f32.mxu0 0.0
      %547 = vmatmul.mubr.f32.gmra.mrb[0].mxu0 %v473
      %v548 = vpop.f32.mrb[0].mxu0
      %v549 = vadd.f32 0.0, %v548
      %v550 = vpop.f32.mrb[0].mxu0
      %551 = vmatprep.mubr.f32.mxu0 0.0
      %552 = vmatmul.mubr.f32.gmra.mrb[0].mxu0 %v475
      %v553 = vpop.f32.mrb[0].mxu0
      %v554 = vadd.f32 0.0, %v553
      %v555 = vpop.f32.mrb[0].mxu0
      %556 = vdwg.mxu0
      %v557 = vadd.f32 %v458, %v544
      %v558 = vadd.f32 %v459, %v549
      %v559 = vadd.f32 %v460, %v554
      %560 = vst [vmem:[%s165] sm:$0xff] %v557
      %561 = vst [vmem:[%s165 + $0x8] sm:$0xff] %v558
      %562 = vst [vmem:[%s165 + $0x10] sm:$0xff] %v559
      %s563 = smul.u32 3, %s18
      %p564 = scmp.lt.s32.totalorder %s17, 1
      %s565 = scalar_select %p564, %s17, 1
      %p566 = scmp.lt.s32.totalorder %s563, 2
      %s567 = scalar_select %p566, %s563, 2
      %s568 = smul.addr %s565, 3
      %s569 = sadd.s32 %s567, %s568
      %s570 = smul.addr %s569, 8
      %s571 = scalar_lea.vmem %s2, %s570
      // Predicated region
      $region29: #{model_forward.4} parent=27 // pred_check
        %p572 = pneg %p92
      $region30: #{model_forward.4} parent=27 // pred_check_branch
        %574 = sbr.rel (%p572) target = $region32
      $region31: #{model_forward.4} parent=27 // pred_region
        %s575 = smul.u32 3, %s18
      $region32: #{model_forward.4} parent=27 // pred_fallthru
        _
    $region28: #{model_forward.4} parent=5 // pred_fallthru
      _
    %p576 = scmp.le.s32.totalorder 2, %s8
    // Predicated region
    $region33: #{model_forward.4} parent=5 // pred_check
      %p577 = pneg %p576
    $region34: #{model_forward.4} parent=5 // pred_check_branch
      %579 = sbr.rel (%p577) target = $region36
    $region35: #{model_forward.4} parent=5 // pred_region
      %s580 = ssub.s32 %s8, 2
      // Predicated region
      $region37: #{model_forward.4} parent=35 // pred_check
        %p581 = pneg %p98
      $region38: #{model_forward.4} parent=35 // pred_check_branch
        %583 = sbr.rel (%p581) target = $region40
      $region39: #{model_forward.4} parent=35 // pred_region
        %s584 = smul.u32 3, %s20
        %p585 = scmp.lt.s32.totalorder %s19, 1
        %s586 = scalar_select %p585, %s19, 1
        %p587 = scmp.lt.s32.totalorder %s584, 2
        %s588 = scalar_select %p587, %s584, 2
        %s589 = smul.addr %s586, 3
        %s590 = sadd.s32 %s588, %s589
        %s591 = smul.addr %s590, 8
        %s592 = scalar_lea.vmem %s2, %s591
      $region40: #{model_forward.4} parent=35 // pred_fallthru
        _
    $region36: #{model_forward.4} parent=5 // pred_fallthru
      _
  $region6: #{model_forward.4} parent=0 // loop_footer
    %s12 = sadd.s32 1, %s8
  $region7: #{model_forward.4} parent=0 // loop_footer_branch
    %7 = sbr.rel target = $region3
  $region8: #{model_forward.4} parent=0 // loop_exit
    _

// kernel: model_forward.7
$region0: #{model_forward.7}
  #allocation0 [shape = 'u32[]', space=smem, size = 0x4, offset = 0x4, fixed_abs, tag = 'smem constant byte address 0x4 - core index']
  #allocation1 [shape = 'u32[144,128]{1,0:T(1,128)}', space=vmem, size = 0x12000, scoped, tag = 'internal scratch']
  %s0 = inlined_call_operand.vmem [shape: f32[1,16,128], index: 0, kind: input, shape index: {}]
  %s1 = inlined_call_operand.vmem [shape: f32[512,1024], index: 1, kind: input, shape index: {}]
  %s2 = inlined_call_operand.vmem [shape: f32[1,8,1024], index: 2, kind: output, shape index: {}]
  %s3 = sld [smem:[#allocation0]]
  $region18: #{model_forward.7} parent=0
    _
  %s5 = ssub.s32 1, %s3
  %s6 = scalar_select 0, %s5, %s3
  // Predicated region
  $region2: #{model_forward.7} parent=0 // pred_check
    _
  $region3: #{model_forward.7} parent=0 // pred_check_branch
    %8 = sbr.rel (0) target = $region5
  $region4: #{model_forward.7} parent=0 // pred_region
    _
  $region5: #{model_forward.7} parent=0 // pred_fallthru
    _
  // Predicated region
  $region6: #{model_forward.7} parent=0 // pred_check
    _
  $region7: #{model_forward.7} parent=0 // pred_check_branch
    %10 = sbr.rel (0) target = $region9
  $region8: #{model_forward.7} parent=0 // pred_region
    _
  $region9: #{model_forward.7} parent=0 // pred_fallthru
    _
  %s11 = smul.u32 0, 8
  %s12 = scalar_lea.vmem %s0, %s11
  %v13 = vld [vmem:[%s12] sm:$0xff]
  %v14 = vld [vmem:[%s12 + $0x8] sm:$0xff]
  %v15 = vld [vmem:[%s1] sm:$0xff]
  %v16 = vld [vmem:[%s1 + $0x8] sm:$0xff]
  %v17 = vld [vmem:[%s1 + $0x10] sm:$0xff]
  %v18 = vld [vmem:[%s1 + $0x18] sm:$0xff]
  %v19 = vld [vmem:[%s1 + $0x20] sm:$0xff]
  %v20 = vld [vmem:[%s1 + $0x28] sm:$0xff]
  %v21 = vld [vmem:[%s1 + $0x30] sm:$0xff]
  %v22 = vld [vmem:[%s1 + $0x38] sm:$0xff]
  %v23 = vld [vmem:[%s1 + $0x40] sm:$0xff]
  %v24 = vld [vmem:[%s1 + $0x48] sm:$0xff]
  %v25 = vld [vmem:[%s1 + $0x50] sm:$0xff]
  %v26 = vld [vmem:[%s1 + $0x58] sm:$0xff]
  %v27 = vld [vmem:[%s1 + $0x60] sm:$0xff]
  %v28 = vld [vmem:[%s1 + $0x68] sm:$0xff]
  %v29 = vld [vmem:[%s1 + $0x70] sm:$0xff]
  %v30 = vld [vmem:[%s1 + $0x78] sm:$0xff]
  %v31 = vld [vmem:[%s1 + $0x80] sm:$0xff]
  %v32 = vld [vmem:[%s1 + $0x88] sm:$0xff]
  %v33 = vld [vmem:[%s1 + $0x90] sm:$0xff]
  %v34 = vld [vmem:[%s1 + $0x98] sm:$0xff]
  %v35 = vld [vmem:[%s1 + $0xa0] sm:$0xff]
  %v36 = vld [vmem:[%s1 + $0xa8] sm:$0xff]
  %v37 = vld [vmem:[%s1 + $0xb0] sm:$0xff]
  %v38 = vld [vmem:[%s1 + $0xb8] sm:$0xff]
  %v39 = vld [vmem:[%s1 + $0xc0] sm:$0xff]
  %v40 = vld [vmem:[%s1 + $0xc8] sm:$0xff]
  %v41 = vld [vmem:[%s1 + $0xd0] sm:$0xff]
  %v42 = vld [vmem:[%s1 + $0xd8] sm:$0xff]
  %v43 = vld [vmem:[%s1 + $0xe0] sm:$0xff]
  %v44 = vld [vmem:[%s1 + $0xe8] sm:$0xff]
  %v45 = vld [vmem:[%s1 + $0xf0] sm:$0xff]
  %v46 = vld [vmem:[%s1 + $0xf8] sm:$0xff]
  %v47 = vld [vmem:[%s1 + $0x100] sm:$0xff]
  %v48 = vld [vmem:[%s1 + $0x108] sm:$0xff]
  %v49 = vld [vmem:[%s1 + $0x110] sm:$0xff]
  %v50 = vld [vmem:[%s1 + $0x118] sm:$0xff]
  %v51 = vld [vmem:[%s1 + $0x120] sm:$0xff]
  %v52 = vld [vmem:[%s1 + $0x128] sm:$0xff]
  %v53 = vld [vmem:[%s1 + $0x130] sm:$0xff]
  %v54 = vld [vmem:[%s1 + $0x138] sm:$0xff]
  %v55 = vld [vmem:[%s1 + $0x140] sm:$0xff]
  %v56 = vld [vmem:[%s1 + $0x148] sm:$0xff]
  %v57 = vld [vmem:[%s1 + $0x150] sm:$0xff]
  %v58 = vld [vmem:[%s1 + $0x158] sm:$0xff]
  %v59 = vld [vmem:[%s1 + $0x160] sm:$0xff]
  %v60 = vld [vmem:[%s1 + $0x168] sm:$0xff]
  %v61 = vld [vmem:[%s1 + $0x170] sm:$0xff]
  %v62 = vld [vmem:[%s1 + $0x178] sm:$0xff]
  %v63 = vld [vmem:[%s1 + $0x180] sm:$0xff]
  %v64 = vld [vmem:[%s1 + $0x188] sm:$0xff]
  %v65 = vld [vmem:[%s1 + $0x190] sm:$0xff]
  %v66 = vld [vmem:[%s1 + $0x198] sm:$0xff]
  %v67 = vld [vmem:[%s1 + $0x1a0] sm:$0xff]
  %v68 = vld [vmem:[%s1 + $0x1a8] sm:$0xff]
  %v69 = vld [vmem:[%s1 + $0x1b0] sm:$0xff]
  %v70 = vld [vmem:[%s1 + $0x1b8] sm:$0xff]
  %v71 = vld [vmem:[%s1 + $0x1c0] sm:$0xff]
  %v72 = vld [vmem:[%s1 + $0x1c8] sm:$0xff]
  %v73 = vld [vmem:[%s1 + $0x1d0] sm:$0xff]
  %v74 = vld [vmem:[%s1 + $0x1d8] sm:$0xff]
  %v75 = vld [vmem:[%s1 + $0x1e0] sm:$0xff]
  %v76 = vld [vmem:[%s1 + $0x1e8] sm:$0xff]
  %v77 = vld [vmem:[%s1 + $0x1f0] sm:$0xff]
  %v78 = vld [vmem:[%s1 + $0x1f8] sm:$0xff]
  %v79 = vld [vmem:[%s1 + $0x200] sm:$0xff]
  %v80 = vld [vmem:[%s1 + $0x208] sm:$0xff]
  %v81 = vld [vmem:[%s1 + $0x210] sm:$0xff]
  %v82 = vld [vmem:[%s1 + $0x218] sm:$0xff]
  %v83 = vld [vmem:[%s1 + $0x220] sm:$0xff]
  %v84 = vld [vmem:[%s1 + $0x228] sm:$0xff]
  %v85 = vld [vmem:[%s1 + $0x230] sm:$0xff]
  %v86 = vld [vmem:[%s1 + $0x238] sm:$0xff]
  %v87 = vld [vmem:[%s1 + $0x240] sm:$0xff]
  %v88 = vld [vmem:[%s1 + $0x248] sm:$0xff]
  %v89 = vld [vmem:[%s1 + $0x250] sm:$0xff]
  %v90 = vld [vmem:[%s1 + $0x258] sm:$0xff]
  %v91 = vld [vmem:[%s1 + $0x260] sm:$0xff]
  %v92 = vld [vmem:[%s1 + $0x268] sm:$0xff]
  %v93 = vld [vmem:[%s1 + $0x270] sm:$0xff]
  %v94 = vld [vmem:[%s1 + $0x278] sm:$0xff]
  %v95 = vld [vmem:[%s1 + $0x280] sm:$0xff]
  %v96 = vld [vmem:[%s1 + $0x288] sm:$0xff]
  %v97 = vld [vmem:[%s1 + $0x290] sm:$0xff]
  %v98 = vld [vmem:[%s1 + $0x298] sm:$0xff]
  %v99 = vld [vmem:[%s1 + $0x2a0] sm:$0xff]
  %v100 = vld [vmem:[%s1 + $0x2a8] sm:$0xff]
  %v101 = vld [vmem:[%s1 + $0x2b0] sm:$0xff]
  %v102 = vld [vmem:[%s1 + $0x2b8] sm:$0xff]
  %v103 = vld [vmem:[%s1 + $0x2c0] sm:$0xff]
  %v104 = vld [vmem:[%s1 + $0x2c8] sm:$0xff]
  %v105 = vld [vmem:[%s1 + $0x2d0] sm:$0xff]
  %v106 = vld [vmem:[%s1 + $0x2d8] sm:$0xff]
  %v107 = vld [vmem:[%s1 + $0x2e0] sm:$0xff]
  %v108 = vld [vmem:[%s1 + $0x2e8] sm:$0xff]
  %v109 = vld [vmem:[%s1 + $0x2f0] sm:$0xff]
  %v110 = vld [vmem:[%s1 + $0x2f8] sm:$0xff]
  %v111 = vld [vmem:[%s1 + $0x300] sm:$0xff]
  %v112 = vld [vmem:[%s1 + $0x308] sm:$0xff]
  %v113 = vld [vmem:[%s1 + $0x310] sm:$0xff]
  %v114 = vld [vmem:[%s1 + $0x318] sm:$0xff]
  %v115 = vld [vmem:[%s1 + $0x320] sm:$0xff]
  %v116 = vld [vmem:[%s1 + $0x328] sm:$0xff]
  %v117 = vld [vmem:[%s1 + $0x330] sm:$0xff]
  %v118 = vld [vmem:[%s1 + $0x338] sm:$0xff]
  %v119 = vld [vmem:[%s1 + $0x340] sm:$0xff]
  %v120 = vld [vmem:[%s1 + $0x348] sm:$0xff]
  %v121 = vld [vmem:[%s1 + $0x350] sm:$0xff]
  %v122 = vld [vmem:[%s1 + $0x358] sm:$0xff]
  %v123 = vld [vmem:[%s1 + $0x360] sm:$0xff]
  %v124 = vld [vmem:[%s1 + $0x368] sm:$0xff]
  %v125 = vld [vmem:[%s1 + $0x370] sm:$0xff]
  %v126 = vld [vmem:[%s1 + $0x378] sm:$0xff]
  %v127 = vld [vmem:[%s1 + $0x380] sm:$0xff]
  %v128 = vld [vmem:[%s1 + $0x388] sm:$0xff]
  %v129 = vld [vmem:[%s1 + $0x390] sm:$0xff]
  %v130 = vld [vmem:[%s1 + $0x398] sm:$0xff]
  %v131 = vld [vmem:[%s1 + $0x3a0] sm:$0xff]
  %v132 = vld [vmem:[%s1 + $0x3a8] sm:$0xff]
  %v133 = vld [vmem:[%s1 + $0x3b0] sm:$0xff]
  %v134 = vld [vmem:[%s1 + $0x3b8] sm:$0xff]
  %v135 = vld [vmem:[%s1 + $0x3c0] sm:$0xff]
  %v136 = vld [vmem:[%s1 + $0x3c8] sm:$0xff]
  %v137 = vld [vmem:[%s1 + $0x3d0] sm:$0xff]
  %v138 = vld [vmem:[%s1 + $0x3d8] sm:$0xff]
  %v139 = vld [vmem:[%s1 + $0x3e0] sm:$0xff]
  %v140 = vld [vmem:[%s1 + $0x3e8] sm:$0xff]
  %v141 = vld [vmem:[%s1 + $0x3f0] sm:$0xff]
  %v142 = vld [vmem:[%s1 + $0x3f8] sm:$0xff]
  %v143 = vld [vmem:[%s1 + $0x400] sm:$0xff]
  %v144 = vld [vmem:[%s1 + $0x408] sm:$0xff]
  %v145 = vld [vmem:[%s1 + $0x410] sm:$0xff]
  %v146 = vld [vmem:[%s1 + $0x418] sm:$0xff]
  %v147 = vld [vmem:[%s1 + $0x420] sm:$0xff]
  %v148 = vld [vmem:[%s1 + $0x428] sm:$0xff]
  %v149 = vld [vmem:[%s1 + $0x430] sm:$0xff]
  %v150 = vld [vmem:[%s1 + $0x438] sm:$0xff]
  %v151 = vld [vmem:[%s1 + $0x440] sm:$0xff]
  %v152 = vld [vmem:[%s1 + $0x448] sm:$0xff]
  %v153 = vld [vmem:[%s1 + $0x450] sm:$0xff]
  %v154 = vld [vmem:[%s1 + $0x458] sm:$0xff]
  %v155 = vld [vmem:[%s1 + $0x460] sm:$0xff]
  %v156 = vld [vmem:[%s1 + $0x468] sm:$0xff]
  %v157 = vld [vmem:[%s1 + $0x470] sm:$0xff]
  %v158 = vld [vmem:[%s1 + $0x478] sm:$0xff]
  %v159 = vld [vmem:[%s1 + $0x480] sm:$0xff]
  %v160 = vld [vmem:[%s1 + $0x488] sm:$0xff]
  %v161 = vld [vmem:[%s1 + $0x490] sm:$0xff]
  %v162 = vld [vmem:[%s1 + $0x498] sm:$0xff]
  %v163 = vld [vmem:[%s1 + $0x4a0] sm:$0xff]
  %v164 = vld [vmem:[%s1 + $0x4a8] sm:$0xff]
  %v165 = vld [vmem:[%s1 + $0x4b0] sm:$0xff]
  %v166 = vld [vmem:[%s1 + $0x4b8] sm:$0xff]
  %v167 = vld [vmem:[%s1 + $0x4c0] sm:$0xff]
  %v168 = vld [vmem:[%s1 + $0x4c8] sm:$0xff]
  %v169 = vld [vmem:[%s1 + $0x4d0] sm:$0xff]
  %v170 = vld [vmem:[%s1 + $0x4d8] sm:$0xff]
  %v171 = vld [vmem:[%s1 + $0x4e0] sm:$0xff]
  %v172 = vld [vmem:[%s1 + $0x4e8] sm:$0xff]
  %v173 = vld [vmem:[%s1 + $0x4f0] sm:$0xff]
  %v174 = vld [vmem:[%s1 + $0x4f8] sm:$0xff]
  %v175 = vld [vmem:[%s1 + $0x500] sm:$0xff]
  %v176 = vld [vmem:[%s1 + $0x508] sm:$0xff]
  %v177 = vld [vmem:[%s1 + $0x510] sm:$0xff]
  %v178 = vld [vmem:[%s1 + $0x518] sm:$0xff]
  %v179 = vld [vmem:[%s1 + $0x520] sm:$0xff]
  %v180 = vld [vmem:[%s1 + $0x528] sm:$0xff]
  %v181 = vld [vmem:[%s1 + $0x530] sm:$0xff]
  %v182 = vld [vmem:[%s1 + $0x538] sm:$0xff]
  %v183 = vld [vmem:[%s1 + $0x540] sm:$0xff]
  %v184 = vld [vmem:[%s1 + $0x548] sm:$0xff]
  %v185 = vld [vmem:[%s1 + $0x550] sm:$0xff]
  %v186 = vld [vmem:[%s1 + $0x558] sm:$0xff]
  %v187 = vld [vmem:[%s1 + $0x560] sm:$0xff]
  %v188 = vld [vmem:[%s1 + $0x568] sm:$0xff]
  %v189 = vld [vmem:[%s1 + $0x570] sm:$0xff]
  %v190 = vld [vmem:[%s1 + $0x578] sm:$0xff]
  %v191 = vld [vmem:[%s1 + $0x580] sm:$0xff]
  %v192 = vld [vmem:[%s1 + $0x588] sm:$0xff]
  %v193 = vld [vmem:[%s1 + $0x590] sm:$0xff]
  %v194 = vld [vmem:[%s1 + $0x598] sm:$0xff]
  %v195 = vld [vmem:[%s1 + $0x5a0] sm:$0xff]
  %v196 = vld [vmem:[%s1 + $0x5a8] sm:$0xff]
  %v197 = vld [vmem:[%s1 + $0x5b0] sm:$0xff]
  %v198 = vld [vmem:[%s1 + $0x5b8] sm:$0xff]
  %v199 = vld [vmem:[%s1 + $0x5c0] sm:$0xff]
  %v200 = vld [vmem:[%s1 + $0x5c8] sm:$0xff]
  %v201 = vld [vmem:[%s1 + $0x5d0] sm:$0xff]
  %v202 = vld [vmem:[%s1 + $0x5d8] sm:$0xff]
  %v203 = vld [vmem:[%s1 + $0x5e0] sm:$0xff]
  %v204 = vld [vmem:[%s1 + $0x5e8] sm:$0xff]
  %v205 = vld [vmem:[%s1 + $0x5f0] sm:$0xff]
  %v206 = vld [vmem:[%s1 + $0x5f8] sm:$0xff]
  %v207 = vld [vmem:[%s1 + $0x600] sm:$0xff]
  %v208 = vld [vmem:[%s1 + $0x608] sm:$0xff]
  %v209 = vld [vmem:[%s1 + $0x610] sm:$0xff]
  %v210 = vld [vmem:[%s1 + $0x618] sm:$0xff]
  %v211 = vld [vmem:[%s1 + $0x620] sm:$0xff]
  %v212 = vld [vmem:[%s1 + $0x628] sm:$0xff]
  %v213 = vld [vmem:[%s1 + $0x630] sm:$0xff]
  %v214 = vld [vmem:[%s1 + $0x638] sm:$0xff]
  %v215 = vld [vmem:[%s1 + $0x640] sm:$0xff]
  %v216 = vld [vmem:[%s1 + $0x648] sm:$0xff]
  %v217 = vld [vmem:[%s1 + $0x650] sm:$0xff]
  %v218 = vld [vmem:[%s1 + $0x658] sm:$0xff]
  %v219 = vld [vmem:[%s1 + $0x660] sm:$0xff]
  %v220 = vld [vmem:[%s1 + $0x668] sm:$0xff]
  %v221 = vld [vmem:[%s1 + $0x670] sm:$0xff]
  %v222 = vld [vmem:[%s1 + $0x678] sm:$0xff]
  %v223 = vld [vmem:[%s1 + $0x680] sm:$0xff]
  %v224 = vld [vmem:[%s1 + $0x688] sm:$0xff]
  %v225 = vld [vmem:[%s1 + $0x690] sm:$0xff]
  %v226 = vld [vmem:[%s1 + $0x698] sm:$0xff]
  %v227 = vld [vmem:[%s1 + $0x6a0] sm:$0xff]
  %v228 = vld [vmem:[%s1 + $0x6a8] sm:$0xff]
  %v229 = vld [vmem:[%s1 + $0x6b0] sm:$0xff]
  %v230 = vld [vmem:[%s1 + $0x6b8] sm:$0xff]
  %v231 = vld [vmem:[%s1 + $0x6c0] sm:$0xff]
  %v232 = vld [vmem:[%s1 + $0x6c8] sm:$0xff]
  %v233 = vld [vmem:[%s1 + $0x6d0] sm:$0xff]
  %v234 = vld [vmem:[%s1 + $0x6d8] sm:$0xff]
  %v235 = vld [vmem:[%s1 + $0x6e0] sm:$0xff]
  %v236 = vld [vmem:[%s1 + $0x6e8] sm:$0xff]
  %v237 = vld [vmem:[%s1 + $0x6f0] sm:$0xff]
  %v238 = vld [vmem:[%s1 + $0x6f8] sm:$0xff]
  %v239 = vld [vmem:[%s1 + $0x700] sm:$0xff]
  %v240 = vld [vmem:[%s1 + $0x708] sm:$0xff]
  %v241 = vld [vmem:[%s1 + $0x710] sm:$0xff]
  %v242 = vld [vmem:[%s1 + $0x718] sm:$0xff]
  %v243 = vld [vmem:[%s1 + $0x720] sm:$0xff]
  %v244 = vld [vmem:[%s1 + $0x728] sm:$0xff]
  %v245 = vld [vmem:[%s1 + $0x730] sm:$0xff]
  %v246 = vld [vmem:[%s1 + $0x738] sm:$0xff]
  %v247 = vld [vmem:[%s1 + $0x740] sm:$0xff]
  %v248 = vld [vmem:[%s1 + $0x748] sm:$0xff]
  %v249 = vld [vmem:[%s1 + $0x750] sm:$0xff]
  %v250 = vld [vmem:[%s1 + $0x758] sm:$0xff]
  %v251 = vld [vmem:[%s1 + $0x760] sm:$0xff]
  %v252 = vld [vmem:[%s1 + $0x768] sm:$0xff]
  %v253 = vld [vmem:[%s1 + $0x770] sm:$0xff]
  %v254 = vld [vmem:[%s1 + $0x778] sm:$0xff]
  %v255 = vld [vmem:[%s1 + $0x780] sm:$0xff]
  %v256 = vld [vmem:[%s1 + $0x788] sm:$0xff]
  %v257 = vld [vmem:[%s1 + $0x790] sm:$0xff]
  %v258 = vld [vmem:[%s1 + $0x798] sm:$0xff]
  %v259 = vld [vmem:[%s1 + $0x7a0] sm:$0xff]
  %v260 = vld [vmem:[%s1 + $0x7a8] sm:$0xff]
  %v261 = vld [vmem:[%s1 + $0x7b0] sm:$0xff]
  %v262 = vld [vmem:[%s1 + $0x7b8] sm:$0xff]
  %v263 = vld [vmem:[%s1 + $0x7c0] sm:$0xff]
  %v264 = vld [vmem:[%s1 + $0x7c8] sm:$0xff]
  %v265 = vld [vmem:[%s1 + $0x7d0] sm:$0xff]
  %v266 = vld [vmem:[%s1 + $0x7d8] sm:$0xff]
  %v267 = vld [vmem:[%s1 + $0x7e0] sm:$0xff]
  %v268 = vld [vmem:[%s1 + $0x7e8] sm:$0xff]
  %v269 = vld [vmem:[%s1 + $0x7f0] sm:$0xff]
  %v270 = vld [vmem:[%s1 + $0x7f8] sm:$0xff]
  %vm273 = vcmask 1046528
  %v274 = vrot.slane %v13, 1
  %v275 = vrot.slane %v14, 1
  %v276 = vsel %vm273, %v274, %v275
  %278 = vmatprep.subr.mxu0 %v144
  %279 = vmatpush1.msra.mxu0 %v143
  %280 = vmatprep.subr.mxu0 %v152
  %281 = vmatpush1.msra.mxu0 %v151
  %282 = vmatprep.subr.mxu0 %v160
  %283 = vmatpush1.msra.mxu0 %v159
  %284 = vmatprep.subr.mxu0 %v168
  %285 = vmatpush1.msra.mxu0 %v167
  %286 = vmatprep.subr.mxu0 %v176
  %287 = vmatpush1.msra.mxu0 %v175
  %288 = vmatprep.subr.mxu0 %v184
  %289 = vmatpush1.msra.mxu0 %v183
  %290 = vmatprep.subr.mxu0 %v192
  %291 = vmatpush1.msra.mxu0 %v191
  %292 = vmatprep.subr.mxu0 %v200
  %293 = vmatpush1.msra.mxu0 %v199
  %294 = vmatprep.subr.mxu0 %v208
  %295 = vmatpush1.msra.mxu0 %v207
  %296 = vmatprep.subr.mxu0 %v216
  %297 = vmatpush1.msra.mxu0 %v215
  %298 = vmatprep.subr.mxu0 %v224
  %299 = vmatpush1.msra.mxu0 %v223
  %300 = vmatprep.subr.mxu0 %v232
  %301 = vmatpush1.msra.mxu0 %v231
  %302 = vmatprep.subr.mxu0 %v240
  %303 = vmatpush1.msra.mxu0 %v239
  %304 = vmatprep.subr.mxu0 %v248
  %305 = vmatpush1.msra.mxu0 %v247
  %306 = vmatprep.subr.mxu0 %v256
  %307 = vmatpush1.msra.mxu0 %v255
  %308 = vmatprep.subr.mxu0 %v264
  %309 = vmatpush1.msra.mxu0 %v263
  %310 = vmatprep.subr.mxu0 0.0
  %311 = vmatpush1.msra.mxu0 0.0
  %312 = vmatprep.subr.mxu0 0.0
  %313 = vmatpush1.msra.mxu0 0.0
  %314 = vmatprep.subr.mxu0 0.0
  %315 = vmatpush1.msra.mxu0 0.0
  %316 = vmatprep.subr.mxu0 0.0
  %317 = vmatpush1.msra.mxu0 0.0
  %318 = vmatprep.subr.mxu0 0.0
  %319 = vmatpush1.msra.mxu0 0.0
  %320 = vmatprep.subr.mxu0 0.0
  %321 = vmatpush1.msra.mxu0 0.0
  %322 = vmatprep.subr.mxu0 0.0
  %323 = vmatpush1.msra.mxu0 0.0
  %324 = vmatprep.subr.mxu0 0.0
  %325 = vmatpush1.msra.mxu0 0.0
  %326 = vmatprep.subr.mxu0 0.0
  %327 = vmatpush1.msra.mxu0 0.0
  %328 = vmatprep.subr.mxu0 0.0
  %329 = vmatpush1.msra.mxu0 0.0
  %330 = vmatprep.subr.mxu0 0.0
  %331 = vmatpush1.msra.mxu0 0.0
  %332 = vmatprep.subr.mxu0 0.0
  %333 = vmatpush1.msra.mxu0 0.0
  %334 = vmatprep.subr.mxu0 0.0
  %335 = vmatpush1.msra.mxu0 0.0
  %336 = vmatprep.subr.mxu0 0.0
  %337 = vmatpush1.msra.mxu0 0.0
  %338 = vmatprep.subr.mxu0 0.0
  %339 = vmatpush1.msra.mxu0 0.0
  %340 = vmatprep.subr.mxu0 0.0
  %341 = vmatpush1.msra.mxu0 0.0
  %342 = vmatprep.mubr.f32.mxu0 0.0
  %343 = vmatmul.mubr.f32.gmra.mrb[0].mxu0 %v276
  %v344 = vpop.f32.mrb[0].mxu0
  %v345 = vadd.f32 0.0, %v344
  %v346 = vpop.f32.mrb[0].mxu0
  %v347 = vadd.f32 0.0, %v346
  %348 = vdwg.mxu0
  %349 = vmatprep.subr.mxu0 %v146
  %350 = vmatpush1.msra.mxu0 %v145
  %351 = vmatprep.subr.mxu0 %v154
  %352 = vmatpush1.msra.mxu0 %v153
  %353 = vmatprep.subr.mxu0 %v162
  %354 = vmatpush1.msra.mxu0 %v161
  %355 = vmatprep.subr.mxu0 %v170
  %356 = vmatpush1.msra.mxu0 %v169
  %357 = vmatprep.subr.mxu0 %v178
  %358 = vmatpush1.msra.mxu0 %v177
  %359 = vmatprep.subr.mxu0 %v186
  %360 = vmatpush1.msra.mxu0 %v185
  %361 = vmatprep.subr.mxu0 %v194
  %362 = vmatpush1.msra.mxu0 %v193
  %363 = vmatprep.subr.mxu0 %v202
  %364 = vmatpush1.msra.mxu0 %v201
  %365 = vmatprep.subr.mxu0 %v210
  %366 = vmatpush1.msra.mxu0 %v209
  %367 = vmatprep.subr.mxu0 %v218
  %368 = vmatpush1.msra.mxu0 %v217
  %369 = vmatprep.subr.mxu0 %v226
  %370 = vmatpush1.msra.mxu0 %v225
  %371 = vmatprep.subr.mxu0 %v234
  %372 = vmatpush1.msra.mxu0 %v233
  %373 = vmatprep.subr.mxu0 %v242
  %374 = vmatpush1.msra.mxu0 %v241
  %375 = vmatprep.subr.mxu0 %v250
  %376 = vmatpush1.msra.mxu0 %v249
  %377 = vmatprep.subr.mxu0 %v258
  %378 = vmatpush1.msra.mxu0 %v257
  %379 = vmatprep.subr.mxu0 %v266
  %380 = vmatpush1.msra.mxu0 %v265
  %381 = vmatprep.subr.mxu0 0.0
  %382 = vmatpush1.msra.mxu0 0.0
  %383 = vmatprep.subr.mxu0 0.0
  %384 = vmatpush1.msra.mxu0 0.0
  %385 = vmatprep.subr.mxu0 0.0
  %386 = vmatpush1.msra.mxu0 0.0
  %387 = vmatprep.subr.mxu0 0.0
  %388 = vmatpush1.msra.mxu0 0.0
  %389 = vmatprep.subr.mxu0 0.0
  %390 = vmatpush1.msra.mxu0 0.0
  %391 = vmatprep.subr.mxu0 0.0
  %392 = vmatpush1.msra.mxu0 0.0
  %393 = vmatprep.subr.mxu0 0.0
  %394 = vmatpush1.msra.mxu0 0.0
  %395 = vmatprep.subr.mxu0 0.0
  %396 = vmatpush1.msra.mxu0 0.0
  %397 = vmatprep.subr.mxu0 0.0
  %398 = vmatpush1.msra.mxu0 0.0
  %399 = vmatprep.subr.mxu0 0.0
  %400 = vmatpush1.msra.mxu0 0.0
  %401 = vmatprep.subr.mxu0 0.0
  %402 = vmatpush1.msra.mxu0 0.0
  %403 = vmatprep.subr.mxu0 0.0
  %404 = vmatpush1.msra.mxu0 0.0
  %405 = vmatprep.subr.mxu0 0.0
  %406 = vmatpush1.msra.mxu0 0.0
  %407 = vmatprep.subr.mxu0 0.0
  %408 = vmatpush1.msra.mxu0 0.0
  %409 = vmatprep.subr.mxu0 0.0
  %410 = vmatpush1.msra.mxu0 0.0
  %411 = vmatprep.subr.mxu0 0.0
  %412 = vmatpush1.msra.mxu0 0.0
  %413 = vmatprep.mubr.f32.mxu0 0.0
  %414 = vmatmul.mubr.f32.gmra.mrb[0].mxu0 %v276
  %v415 = vpop.f32.mrb[0].mxu0
  %v416 = vadd.f32 0.0, %v415
  %v417 = vpop.f32.mrb[0].mxu0
  %v418 = vadd.f32 0.0, %v417
  %419 = vdwg.mxu0
  %420 = vmatprep.subr.mxu0 %v148
  %421 = vmatpush1.msra.mxu0 %v147
  %422 = vmatprep.subr.mxu0 %v156
  %423 = vmatpush1.msra.mxu0 %v155
  %424 = vmatprep.subr.mxu0 %v164
  %425 = vmatpush1.msra.mxu0 %v163
  %426 = vmatprep.subr.mxu0 %v172
  %427 = vmatpush1.msra.mxu0 %v171
  %428 = vmatprep.subr.mxu0 %v180
  %429 = vmatpush1.msra.mxu0 %v179
  %430 = vmatprep.subr.mxu0 %v188
  %431 = vmatpush1.msra.mxu0 %v187
  %432 = vmatprep.subr.mxu0 %v196
  %433 = vmatpush1.msra.mxu0 %v195
  %434 = vmatprep.subr.mxu0 %v204
  %435 = vmatpush1.msra.mxu0 %v203
  %436 = vmatprep.subr.mxu0 %v212
  %437 = vmatpush1.msra.mxu0 %v211
  %438 = vmatprep.subr.mxu0 %v220
  %439 = vmatpush1.msra.mxu0 %v219
  %440 = vmatprep.subr.mxu0 %v228
  %441 = vmatpush1.msra.mxu0 %v227
  %442 = vmatprep.subr.mxu0 %v236
  %443 = vmatpush1.msra.mxu0 %v235
  %444 = vmatprep.subr.mxu0 %v244
  %445 = vmatpush1.msra.mxu0 %v243
  %446 = vmatprep.subr.mxu0 %v252
  %447 = vmatpush1.msra.mxu0 %v251
  %448 = vmatprep.subr.mxu0 %v260
  %449 = vmatpush1.msra.mxu0 %v259
  %450 = vmatprep.subr.mxu0 %v268
  %451 = vmatpush1.msra.mxu0 %v267
  %452 = vmatprep.subr.mxu0 0.0
  %453 = vmatpush1.msra.mxu0 0.0
  %454 = vmatprep.subr.mxu0 0.0
  %455 = vmatpush1.msra.mxu0 0.0
  %456 = vmatprep.subr.mxu0 0.0
  %457 = vmatpush1.msra.mxu0 0.0
  %458 = vmatprep.subr.mxu0 0.0
  %459 = vmatpush1.msra.mxu0 0.0
  %460 = vmatprep.subr.mxu0 0.0
  %461 = vmatpush1.msra.mxu0 0.0
  %462 = vmatprep.subr.mxu0 0.0
  %463 = vmatpush1.msra.mxu0 0.0
  %464 = vmatprep.subr.mxu0 0.0
  %465 = vmatpush1.msra.mxu0 0.0
  %466 = vmatprep.subr.mxu0 0.0
  %467 = vmatpush1.msra.mxu0 0.0
  %468 = vmatprep.subr.mxu0 0.0
  %469 = vmatpush1.msra.mxu0 0.0
  %470 = vmatprep.subr.mxu0 0.0
  %471 = vmatpush1.msra.mxu0 0.0
  %472 = vmatprep.subr.mxu0 0.0
  %473 = vmatpush1.msra.mxu0 0.0
  %474 = vmatprep.subr.mxu0 0.0
  %475 = vmatpush1.msra.mxu0 0.0
  %476 = vmatprep.subr.mxu0 0.0
  %477 = vmatpush1.msra.mxu0 0.0
  %478 = vmatprep.subr.mxu0 0.0
  %479 = vmatpush1.msra.mxu0 0.0
  %480 = vmatprep.subr.mxu0 0.0
  %481 = vmatpush1.msra.mxu0 0.0
  %482 = vmatprep.subr.mxu0 0.0
  %483 = vmatpush1.msra.mxu0 0.0
  %484 = vmatprep.mubr.f32.mxu0 0.0
  %485 = vmatmul.mubr.f32.gmra.mrb[0].mxu0 %v276
  %v486 = vpop.f32.mrb[0].mxu0
  %v487 = vadd.f32 0.0, %v486
  %v488 = vpop.f32.mrb[0].mxu0
  %v489 = vadd.f32 0.0, %v488
  %490 = vdwg.mxu0
  %491 = vmatprep.subr.mxu0 %v150
  %492 = vmatpush1.msra.mxu0 %v149
  %493 = vmatprep.subr.mxu0 %v158
  %494 = vmatpush1.msra.mxu0 %v157
  %495 = vmatprep.subr.mxu0 %v166
  %496 = vmatpush1.msra.mxu0 %v165
  %497 = vmatprep.subr.mxu0 %v174
  %498 = vmatpush1.msra.mxu0 %v173
  %499 = vmatprep.subr.mxu0 %v182
  %500 = vmatpush1.msra.mxu0 %v181
  %501 = vmatprep.subr.mxu0 %v190
  %502 = vmatpush1.msra.mxu0 %v189
  %503 = vmatprep.subr.mxu0 %v198
  %504 = vmatpush1.msra.mxu0 %v197
  %505 = vmatprep.subr.mxu0 %v206
  %506 = vmatpush1.msra.mxu0 %v205
  %507 = vmatprep.subr.mxu0 %v214
  %508 = vmatpush1.msra.mxu0 %v213
  %509 = vmatprep.subr.mxu0 %v222
  %510 = vmatpush1.msra.mxu0 %v221
  %511 = vmatprep.subr.mxu0 %v230
  %512 = vmatpush1.msra.mxu0 %v229
  %513 = vmatprep.subr.mxu0 %v238
  %514 = vmatpush1.msra.mxu0 %v237
  %515 = vmatprep.subr.mxu0 %v246
  %516 = vmatpush1.msra.mxu0 %v245
  %517 = vmatprep.subr.mxu0 %v254
  %518 = vmatpush1.msra.mxu0 %v253
  %519 = vmatprep.subr.mxu0 %v262
  %520 = vmatpush1.msra.mxu0 %v261
  %521 = vmatprep.subr.mxu0 %v270
  %522 = vmatpush1.msra.mxu0 %v269
  %523 = vmatprep.subr.mxu0 0.0
  %524 = vmatpush1.msra.mxu0 0.0
  %525 = vmatprep.subr.mxu0 0.0
  %526 = vmatpush1.msra.mxu0 0.0
  %527 = vmatprep.subr.mxu0 0.0
  %528 = vmatpush1.msra.mxu0 0.0
  %529 = vmatprep.subr.mxu0 0.0
  %530 = vmatpush1.msra.mxu0 0.0
  %531 = vmatprep.subr.mxu0 0.0
  %532 = vmatpush1.msra.mxu0 0.0
  %533 = vmatprep.subr.mxu0 0.0
  %534 = vmatpush1.msra.mxu0 0.0
  %535 = vmatprep.subr.mxu0 0.0
  %536 = vmatpush1.msra.mxu0 0.0
  %537 = vmatprep.subr.mxu0 0.0
  %538 = vmatpush1.msra.mxu0 0.0
  %539 = vmatprep.subr.mxu0 0.0
  %540 = vmatpush1.msra.mxu0 0.0
  %541 = vmatprep.subr.mxu0 0.0
  %542 = vmatpush1.msra.mxu0 0.0
  %543 = vmatprep.subr.mxu0 0.0
  %544 = vmatpush1.msra.mxu0 0.0
  %545 = vmatprep.subr.mxu0 0.0
  %546 = vmatpush1.msra.mxu0 0.0
  %547 = vmatprep.subr.mxu0 0.0
  %548 = vmatpush1.msra.mxu0 0.0
  %549 = vmatprep.subr.mxu0 0.0
  %550 = vmatpush1.msra.mxu0 0.0
  %551 = vmatprep.subr.mxu0 0.0
  %552 = vmatpush1.msra.mxu0 0.0
  %553 = vmatprep.subr.mxu0 0.0
  %554 = vmatpush1.msra.mxu0 0.0
  %555 = vmatprep.mubr.f32.mxu0 0.0
  %556 = vmatmul.mubr.f32.gmra.mrb[0].mxu0 %v276
  %v557 = vpop.f32.mrb[0].mxu0
  %v558 = vadd.f32 0.0, %v557
  %v559 = vpop.f32.mrb[0].mxu0
  %v560 = vadd.f32 0.0, %v559
  %561 = vdwg.mxu0
  %562 = vmatprep.subr.mxu0 %v16
  %563 = vmatpush1.msra.mxu0 %v15
  %564 = vmatprep.subr.mxu0 %v24
  %565 = vmatpush1.msra.mxu0 %v23
  %566 = vmatprep.subr.mxu0 %v32
  %567 = vmatpush1.msra.mxu0 %v31
  %568 = vmatprep.subr.mxu0 %v40
  %569 = vmatpush1.msra.mxu0 %v39
  %570 = vmatprep.subr.mxu0 %v48
  %571 = vmatpush1.msra.mxu0 %v47
  %572 = vmatprep.subr.mxu0 %v56
  %573 = vmatpush1.msra.mxu0 %v55
  %574 = vmatprep.subr.mxu0 %v64
  %575 = vmatpush1.msra.mxu0 %v63
  %576 = vmatprep.subr.mxu0 %v72
  %577 = vmatpush1.msra.mxu0 %v71
  %578 = vmatprep.subr.mxu0 %v80
  %579 = vmatpush1.msra.mxu0 %v79
  %580 = vmatprep.subr.mxu0 %v88
  %581 = vmatpush1.msra.mxu0 %v87
  %582 = vmatprep.subr.mxu0 %v96
  %583 = vmatpush1.msra.mxu0 %v95
  %584 = vmatprep.subr.mxu0 %v104
  %585 = vmatpush1.msra.mxu0 %v103
  %586 = vmatprep.subr.mxu0 %v112
  %587 = vmatpush1.msra.mxu0 %v111
  %588 = vmatprep.subr.mxu0 %v120
  %589 = vmatpush1.msra.mxu0 %v119
  %590 = vmatprep.subr.mxu0 %v128
  %591 = vmatpush1.msra.mxu0 %v127
  %592 = vmatprep.subr.mxu0 %v136
  %593 = vmatpush1.msra.mxu0 %v135
  %594 = vmatprep.subr.mxu0 0.0
  %595 = vmatpush1.msra.mxu0 0.0
  %596 = vmatprep.subr.mxu0 0.0
  %597 = vmatpush1.msra.mxu0 0.0
  %598 = vmatprep.subr.mxu0 0.0
  %599 = vmatpush1.msra.mxu0 0.0
  %600 = vmatprep.subr.mxu0 0.0
  %601 = vmatpush1.msra.mxu0 0.0
  %602 = vmatprep.subr.mxu0 0.0
  %603 = vmatpush1.msra.mxu0 0.0
  %604 = vmatprep.subr.mxu0 0.0
  %605 = vmatpush1.msra.mxu0 0.0
  %606 = vmatprep.subr.mxu0 0.0
  %607 = vmatpush1.msra.mxu0 0.0
  %608 = vmatprep.subr.mxu0 0.0
  %609 = vmatpush1.msra.mxu0 0.0
  %610 = vmatprep.subr.mxu0 0.0
  %611 = vmatpush1.msra.mxu0 0.0
  %612 = vmatprep.subr.mxu0 0.0
  %613 = vmatpush1.msra.mxu0 0.0
  %614 = vmatprep.subr.mxu0 0.0
  %615 = vmatpush1.msra.mxu0 0.0
  %616 = vmatprep.subr.mxu0 0.0
  %617 = vmatpush1.msra.mxu0 0.0
  %618 = vmatprep.subr.mxu0 0.0
  %619 = vmatpush1.msra.mxu0 0.0
  %620 = vmatprep.subr.mxu0 0.0
  %621 = vmatpush1.msra.mxu0 0.0
  %622 = vmatprep.subr.mxu0 0.0
  %623 = vmatpush1.msra.mxu0 0.0
  %624 = vmatprep.subr.mxu0 0.0
  %625 = vmatpush1.msra.mxu0 0.0
  %626 = vmatprep.mubr.f32.mxu0 0.0
  %627 = vmatmul.mubr.f32.gmra.mrb[0].mxu0 %v13
  %v628 = vpop.f32.mrb[0].mxu0
  %v629 = vadd.f32 %v345, %v628
  %v630 = vpop.f32.mrb[0].mxu0
  %v631 = vadd.f32 %v347, %v630
  %632 = vdwg.mxu0
  %633 = vmatprep.subr.mxu0 %v18
  %634 = vmatpush1.msra.mxu0 %v17
  %635 = vmatprep.subr.mxu0 %v26
  %636 = vmatpush1.msra.mxu0 %v25
  %637 = vmatprep.subr.mxu0 %v34
  %638 = vmatpush1.msra.mxu0 %v33
  %639 = vmatprep.subr.mxu0 %v42
  %640 = vmatpush1.msra.mxu0 %v41
  %641 = vmatprep.subr.mxu0 %v50
  %642 = vmatpush1.msra.mxu0 %v49
  %643 = vmatprep.subr.mxu0 %v58
  %644 = vmatpush1.msra.mxu0 %v57
  %645 = vmatprep.subr.mxu0 %v66
  %646 = vmatpush1.msra.mxu0 %v65
  %647 = vmatprep.subr.mxu0 %v74
  %648 = vmatpush1.msra.mxu0 %v73
  %649 = vmatprep.subr.mxu0 %v82
  %650 = vmatpush1.msra.mxu0 %v81
  %651 = vmatprep.subr.mxu0 %v90
  %652 = vmatpush1.msra.mxu0 %v89
  %653 = vmatprep.subr.mxu0 %v98
  %654 = vmatpush1.msra.mxu0 %v97
  %655 = vmatprep.subr.mxu0 %v106
  %656 = vmatpush1.msra.mxu0 %v105
  %657 = vmatprep.subr.mxu0 %v114
  %658 = vmatpush1.msra.mxu0 %v113
  %659 = vmatprep.subr.mxu0 %v122
  %660 = vmatpush1.msra.mxu0 %v121
  %661 = vmatprep.subr.mxu0 %v130
  %662 = vmatpush1.msra.mxu0 %v129
  %663 = vmatprep.subr.mxu0 %v138
  %664 = vmatpush1.msra.mxu0 %v137
  %665 = vmatprep.subr.mxu0 0.0
  %666 = vmatpush1.msra.mxu0 0.0
  %667 = vmatprep.subr.mxu0 0.0
  %668 = vmatpush1.msra.mxu0 0.0
  %669 = vmatprep.subr.mxu0 0.0
  %670 = vmatpush1.msra.mxu0 0.0
  %671 = vmatprep.subr.mxu0 0.0
  %672 = vmatpush1.msra.mxu0 0.0
  %673 = vmatprep.subr.mxu0 0.0
  %674 = vmatpush1.msra.mxu0 0.0
  %675 = vmatprep.subr.mxu0 0.0
  %676 = vmatpush1.msra.mxu0 0.0
  %677 = vmatprep.subr.mxu0 0.0
  %678 = vmatpush1.msra.mxu0 0.0
  %679 = vmatprep.subr.mxu0 0.0
  %680 = vmatpush1.msra.mxu0 0.0
  %681 = vmatprep.subr.mxu0 0.0
  %682 = vmatpush1.msra.mxu0 0.0
  %683 = vmatprep.subr.mxu0 0.0
  %684 = vmatpush1.msra.mxu0 0.0
  %685 = vmatprep.subr.mxu0 0.0
  %686 = vmatpush1.msra.mxu0 0.0
  %687 = vmatprep.subr.mxu0 0.0
  %688 = vmatpush1.msra.mxu0 0.0
  %689 = vmatprep.subr.mxu0 0.0
  %690 = vmatpush1.msra.mxu0 0.0
  %691 = vmatprep.subr.mxu0 0.0
  %692 = vmatpush1.msra.mxu0 0.0
  %693 = vmatprep.subr.mxu0 0.0
  %694 = vmatpush1.msra.mxu0 0.0
  %695 = vmatprep.subr.mxu0 0.0
  %696 = vmatpush1.msra.mxu0 0.0
  %697 = vmatprep.mubr.f32.mxu0 0.0
  %698 = vmatmul.mubr.f32.gmra.mrb[0].mxu0 %v13
  %v699 = vpop.f32.mrb[0].mxu0
  %v700 = vadd.f32 %v416, %v699
  %v701 = vpop.f32.mrb[0].mxu0
  %v702 = vadd.f32 %v418, %v701
  %703 = vdwg.mxu0
  %704 = vmatprep.subr.mxu0 %v20
  %705 = vmatpush1.msra.mxu0 %v19
  %706 = vmatprep.subr.mxu0 %v28
  %707 = vmatpush1.msra.mxu0 %v27
  %708 = vmatprep.subr.mxu0 %v36
  %709 = vmatpush1.msra.mxu0 %v35
  %710 = vmatprep.subr.mxu0 %v44
  %711 = vmatpush1.msra.mxu0 %v43
  %712 = vmatprep.subr.mxu0 %v52
  %713 = vmatpush1.msra.mxu0 %v51
  %714 = vmatprep.subr.mxu0 %v60
  %715 = vmatpush1.msra.mxu0 %v59
  %716 = vmatprep.subr.mxu0 %v68
  %717 = vmatpush1.msra.mxu0 %v67
  %718 = vmatprep.subr.mxu0 %v76
  %719 = vmatpush1.msra.mxu0 %v75
  %720 = vmatprep.subr.mxu0 %v84
  %721 = vmatpush1.msra.mxu0 %v83
  %722 = vmatprep.subr.mxu0 %v92
  %723 = vmatpush1.msra.mxu0 %v91
  %724 = vmatprep.subr.mxu0 %v100
  %725 = vmatpush1.msra.mxu0 %v99
  %726 = vmatprep.subr.mxu0 %v108
  %727 = vmatpush1.msra.mxu0 %v107
  %728 = vmatprep.subr.mxu0 %v116
  %729 = vmatpush1.msra.mxu0 %v115
  %730 = vmatprep.subr.mxu0 %v124
  %731 = vmatpush1.msra.mxu0 %v123
  %732 = vmatprep.subr.mxu0 %v132
  %733 = vmatpush1.msra.mxu0 %v131
  %734 = vmatprep.subr.mxu0 %v140
  %735 = vmatpush1.msra.mxu0 %v139
  %736 = vmatprep.subr.mxu0 0.0
  %737 = vmatpush1.msra.mxu0 0.0
  %738 = vmatprep.subr.mxu0 0.0
  %739 = vmatpush1.msra.mxu0 0.0
  %740 = vmatprep.subr.mxu0 0.0
  %741 = vmatpush1.msra.mxu0 0.0
  %742 = vmatprep.subr.mxu0 0.0
  %743 = vmatpush1.msra.mxu0 0.0
  %744 = vmatprep.subr.mxu0 0.0
  %745 = vmatpush1.msra.mxu0 0.0
  %746 = vmatprep.subr.mxu0 0.0
  %747 = vmatpush1.msra.mxu0 0.0
  %748 = vmatprep.subr.mxu0 0.0
  %749 = vmatpush1.msra.mxu0 0.0
  %750 = vmatprep.subr.mxu0 0.0
  %751 = vmatpush1.msra.mxu0 0.0
  %752 = vmatprep.subr.mxu0 0.0
  %753 = vmatpush1.msra.mxu0 0.0
  %754 = vmatprep.subr.mxu0 0.0
  %755 = vmatpush1.msra.mxu0 0.0
  %756 = vmatprep.subr.mxu0 0.0
  %757 = vmatpush1.msra.mxu0 0.0
  %758 = vmatprep.subr.mxu0 0.0
  %759 = vmatpush1.msra.mxu0 0.0
  %760 = vmatprep.subr.mxu0 0.0
  %761 = vmatpush1.msra.mxu0 0.0
  %762 = vmatprep.subr.mxu0 0.0
  %763 = vmatpush1.msra.mxu0 0.0
  %764 = vmatprep.subr.mxu0 0.0
  %765 = vmatpush1.msra.mxu0 0.0
  %766 = vmatprep.subr.mxu0 0.0
  %767 = vmatpush1.msra.mxu0 0.0
  %768 = vmatprep.mubr.f32.mxu0 0.0
  %769 = vmatmul.mubr.f32.gmra.mrb[0].mxu0 %v13
  %v770 = vpop.f32.mrb[0].mxu0
  %v771 = vadd.f32 %v487, %v770
  %v772 = vpop.f32.mrb[0].mxu0
  %v773 = vadd.f32 %v489, %v772
  %774 = vdwg.mxu0
  %775 = vmatprep.subr.mxu0 %v22
  %776 = vmatpush1.msra.mxu0 %v21
  %777 = vmatprep.subr.mxu0 %v30
  %778 = vmatpush1.msra.mxu0 %v29
  %779 = vmatprep.subr.mxu0 %v38
  %780 = vmatpush1.msra.mxu0 %v37
  %781 = vmatprep.subr.mxu0 %v46
  %782 = vmatpush1.msra.mxu0 %v45
  %783 = vmatprep.subr.mxu0 %v54
  %784 = vmatpush1.msra.mxu0 %v53
  %785 = vmatprep.subr.mxu0 %v62
  %786 = vmatpush1.msra.mxu0 %v61
  %787 = vmatprep.subr.mxu0 %v70
  %788 = vmatpush1.msra.mxu0 %v69
  %789 = vmatprep.subr.mxu0 %v78
  %790 = vmatpush1.msra.mxu0 %v77
  %791 = vmatprep.subr.mxu0 %v86
  %792 = vmatpush1.msra.mxu0 %v85
  %793 = vmatprep.subr.mxu0 %v94
  %794 = vmatpush1.msra.mxu0 %v93
  %795 = vmatprep.subr.mxu0 %v102
  %796 = vmatpush1.msra.mxu0 %v101
  %797 = vmatprep.subr.mxu0 %v110
  %798 = vmatpush1.msra.mxu0 %v109
  %799 = vmatprep.subr.mxu0 %v118
  %800 = vmatpush1.msra.mxu0 %v117
  %801 = vmatprep.subr.mxu0 %v126
  %802 = vmatpush1.msra.mxu0 %v125
  %803 = vmatprep.subr.mxu0 %v134
  %804 = vmatpush1.msra.mxu0 %v133
  %805 = vmatprep.subr.mxu0 %v142
  %806 = vmatpush1.msra.mxu0 %v141
  %807 = vmatprep.subr.mxu0 0.0
  %808 = vmatpush1.msra.mxu0 0.0
  %809 = vmatprep.subr.mxu0 0.0
  %810 = vmatpush1.msra.mxu0 0.0
  %811 = vmatprep.subr.mxu0 0.0
  %812 = vmatpush1.msra.mxu0 0.0
  %813 = vmatprep.subr.mxu0 0.0
  %814 = vmatpush1.msra.mxu0 0.0
  %815 = vmatprep.subr.mxu0 0.0
  %816 = vmatpush1.msra.mxu0 0.0
  %817 = vmatprep.subr.mxu0 0.0
  %818 = vmatpush1.msra.mxu0 0.0
  %819 = vmatprep.subr.mxu0 0.0
  %820 = vmatpush1.msra.mxu0 0.0
  %821 = vmatprep.subr.mxu0 0.0
  %822 = vmatpush1.msra.mxu0 0.0
  %823 = vmatprep.subr.mxu0 0.0
  %824 = vmatpush1.msra.mxu0 0.0
  %825 = vmatprep.subr.mxu0 0.0
  %826 = vmatpush1.msra.mxu0 0.0
  %827 = vmatprep.subr.mxu0 0.0
  %828 = vmatpush1.msra.mxu0 0.0
  %829 = vmatprep.subr.mxu0 0.0
  %830 = vmatpush1.msra.mxu0 0.0
  %831 = vmatprep.subr.mxu0 0.0
  %832 = vmatpush1.msra.mxu0 0.0
  %833 = vmatprep.subr.mxu0 0.0
  %834 = vmatpush1.msra.mxu0 0.0
  %835 = vmatprep.subr.mxu0 0.0
  %836 = vmatpush1.msra.mxu0 0.0
  %837 = vmatprep.subr.mxu0 0.0
  %838 = vmatpush1.msra.mxu0 0.0
  %839 = vmatprep.mubr.f32.mxu0 0.0
  %840 = vmatmul.mubr.f32.gmra.mrb[0].mxu0 %v13
  %v841 = vpop.f32.mrb[0].mxu0
  %v842 = vadd.f32 %v558, %v841
  %v843 = vpop.f32.mrb[0].mxu0
  %v844 = vadd.f32 %v560, %v843
  %845 = vdwg.mxu0
  %v846 = vld [vmem:[%s1 + $0x800] sm:$0xff]
  %v847 = vld [vmem:[%s1 + $0x808] sm:$0xff]
  %v848 = vld [vmem:[%s1 + $0x810] sm:$0xff]
  %v849 = vld [vmem:[%s1 + $0x818] sm:$0xff]
  %v850 = vld [vmem:[%s1 + $0x820] sm:$0xff]
  %v851 = vld [vmem:[%s1 + $0x828] sm:$0xff]
  %v852 = vld [vmem:[%s1 + $0x830] sm:$0xff]
  %v853 = vld [vmem:[%s1 + $0x838] sm:$0xff]
  %v854 = vld [vmem:[%s1 + $0x840] sm:$0xff]
  %v855 = vld [vmem:[%s1 + $0x848] sm:$0xff]
  %v856 = vld [vmem:[%s1 + $0x850] sm:$0xff]
  %v857 = vld [vmem:[%s1 + $0x858] sm:$0xff]
  %v858 = vld [vmem:[%s1 + $0x860] sm:$0xff]
  %v859 = vld [vmem:[%s1 + $0x868] sm:$0xff]
  %v860 = vld [vmem:[%s1 + $0x870] sm:$0xff]
  %v861 = vld [vmem:[%s1 + $0x878] sm:$0xff]
  %v862 = vld [vmem:[%s1 + $0x880] sm:$0xff]
  %v863 = vld [vmem:[%s1 + $0x888] sm:$0xff]
  %v864 = vld [vmem:[%s1 + $0x890] sm:$0xff]
  %v865 = vld [vmem:[%s1 + $0x898] sm:$0xff]
  %v866 = vld [vmem:[%s1 + $0x8a0] sm:$0xff]
  %v867 = vld [vmem:[%s1 + $0x8a8] sm:$0xff]
  %v868 = vld [vmem:[%s1 + $0x8b0] sm:$0xff]
  %v869 = vld [vmem:[%s1 + $0x8b8] sm:$0xff]
  %v870 = vld [vmem:[%s1 + $0x8c0] sm:$0xff]
  %v871 = vld [vmem:[%s1 + $0x8c8] sm:$0xff]
  %v872 = vld [vmem:[%s1 + $0x8d0] sm:$0xff]
  %v873 = vld [vmem:[%s1 + $0x8d8] sm:$0xff]
  %v874 = vld [vmem:[%s1 + $0x8e0] sm:$0xff]
  %v875 = vld [vmem:[%s1 + $0x8e8] sm:$0xff]
  %v876 = vld [vmem:[%s1 + $0x8f0] sm:$0xff]
  %v877 = vld [vmem:[%s1 + $0x8f8] sm:$0xff]
  %v878 = vld [vmem:[%s1 + $0x900] sm:$0xff]
  %v879 = vld [vmem:[%s1 + $0x908] sm:$0xff]
  %v880 = vld [vmem:[%s1 + $0x910] sm:$0xff]
  %v881 = vld [vmem:[%s1 + $0x918] sm:$0xff]
  %v882 = vld [vmem:[%s1 + $0x920] sm:$0xff]
  %v883 = vld [vmem:[%s1 + $0x928] sm:$0xff]
  %v884 = vld [vmem:[%s1 + $0x930] sm:$0xff]
  %v885 = vld [vmem:[%s1 + $0x938] sm:$0xff]
  %v886 = vld [vmem:[%s1 + $0x940] sm:$0xff]
  %v887 = vld [vmem:[%s1 + $0x948] sm:$0xff]
  %v888 = vld [vmem:[%s1 + $0x950] sm:$0xff]
  %v889 = vld [vmem:[%s1 + $0x958] sm:$0xff]
  %v890 = vld [vmem:[%s1 + $0x960] sm:$0xff]
  %v891 = vld [vmem:[%s1 + $0x968] sm:$0xff]
  %v892 = vld [vmem:[%s1 + $0x970] sm:$0xff]
  %v893 = vld [vmem:[%s1 + $0x978] sm:$0xff]
  %v894 = vld [vmem:[%s1 + $0x980] sm:$0xff]
  %v895 = vld [vmem:[%s1 + $0x988] sm:$0xff]
  %v896 = vld [vmem:[%s1 + $0x990] sm:$0xff]
  %v897 = vld [vmem:[%s1 + $0x998] sm:$0xff]
  %v898 = vld [vmem:[%s1 + $0x9a0] sm:$0xff]
  %v899 = vld [vmem:[%s1 + $0x9a8] sm:$0xff]
  %v900 = vld [vmem:[%s1 + $0x9b0] sm:$0xff]
  %v901 = vld [vmem:[%s1 + $0x9b8] sm:$0xff]
  %v902 = vld [vmem:[%s1 + $0x9c0] sm:$0xff]
  %v903 = vld [vmem:[%s1 + $0x9c8] sm:$0xff]
  %v904 = vld [vmem:[%s1 + $0x9d0] sm:$0xff]
  %v905 = vld [vmem:[%s1 + $0x9d8] sm:$0xff]
  %v906 = vld [vmem:[%s1 + $0x9e0] sm:$0xff]
  %v907 = vld [vmem:[%s1 + $0x9e8] sm:$0xff]
  %v908 = vld [vmem:[%s1 + $0x9f0] sm:$0xff]
  %v909 = vld [vmem:[%s1 + $0x9f8] sm:$0xff]
  %v910 = vld [vmem:[%s1 + $0xa00] sm:$0xff]
  %v911 = vld [vmem:[%s1 + $0xa08] sm:$0xff]
  %v912 = vld [vmem:[%s1 + $0xa10] sm:$0xff]
  %v913 = vld [vmem:[%s1 + $0xa18] sm:$0xff]
  %v914 = vld [vmem:[%s1 + $0xa20] sm:$0xff]
  %v915 = vld [vmem:[%s1 + $0xa28] sm:$0xff]
  %v916 = vld [vmem:[%s1 + $0xa30] sm:$0xff]
  %v917 = vld [vmem:[%s1 + $0xa38] sm:$0xff]
  %v918 = vld [vmem:[%s1 + $0xa40] sm:$0xff]
  %v919 = vld [vmem:[%s1 + $0xa48] sm:$0xff]
  %v920 = vld [vmem:[%s1 + $0xa50] sm:$0xff]
  %v921 = vld [vmem:[%s1 + $0xa58] sm:$0xff]
  %v922 = vld [vmem:[%s1 + $0xa60] sm:$0xff]
  %v923 = vld [vmem:[%s1 + $0xa68] sm:$0xff]
  %v924 = vld [vmem:[%s1 + $0xa70] sm:$0xff]
  %v925 = vld [vmem:[%s1 + $0xa78] sm:$0xff]
  %v926 = vld [vmem:[%s1 + $0xa80] sm:$0xff]
  %v927 = vld [vmem:[%s1 + $0xa88] sm:$0xff]
  %v928 = vld [vmem:[%s1 + $0xa90] sm:$0xff]
  %v929 = vld [vmem:[%s1 + $0xa98] sm:$0xff]
  %v930 = vld [vmem:[%s1 + $0xaa0] sm:$0xff]
  %v931 = vld [vmem:[%s1 + $0xaa8] sm:$0xff]
  %v932 = vld [vmem:[%s1 + $0xab0] sm:$0xff]
  %v933 = vld [vmem:[%s1 + $0xab8] sm:$0xff]
  %v934 = vld [vmem:[%s1 + $0xac0] sm:$0xff]
  %v935 = vld [vmem:[%s1 + $0xac8] sm:$0xff]
  %v936 = vld [vmem:[%s1 + $0xad0] sm:$0xff]
  %v937 = vld [vmem:[%s1 + $0xad8] sm:$0xff]
  %v938 = vld [vmem:[%s1 + $0xae0] sm:$0xff]
  %v939 = vld [vmem:[%s1 + $0xae8] sm:$0xff]
  %v940 = vld [vmem:[%s1 + $0xaf0] sm:$0xff]
  %v941 = vld [vmem:[%s1 + $0xaf8] sm:$0xff]
  %v942 = vld [vmem:[%s1 + $0xb00] sm:$0xff]
  %v943 = vld [vmem:[%s1 + $0xb08] sm:$0xff]
  %v944 = vld [vmem:[%s1 + $0xb10] sm:$0xff]
  %v945 = vld [vmem:[%s1 + $0xb18] sm:$0xff]
  %v946 = vld [vmem:[%s1 + $0xb20] sm:$0xff]
  %v947 = vld [vmem:[%s1 + $0xb28] sm:$0xff]
  %v948 = vld [vmem:[%s1 + $0xb30] sm:$0xff]
  %v949 = vld [vmem:[%s1 + $0xb38] sm:$0xff]
  %v950 = vld [vmem:[%s1 + $0xb40] sm:$0xff]
  %v951 = vld [vmem:[%s1 + $0xb48] sm:$0xff]
  %v952 = vld [vmem:[%s1 + $0xb50] sm:$0xff]
  %v953 = vld [vmem:[%s1 + $0xb58] sm:$0xff]
  %v954 = vld [vmem:[%s1 + $0xb60] sm:$0xff]
  %v955 = vld [vmem:[%s1 + $0xb68] sm:$0xff]
  %v956 = vld [vmem:[%s1 + $0xb70] sm:$0xff]
  %v957 = vld [vmem:[%s1 + $0xb78] sm:$0xff]
  %v958 = vld [vmem:[%s1 + $0xb80] sm:$0xff]
  %v959 = vld [vmem:[%s1 + $0xb88] sm:$0xff]
  %v960 = vld [vmem:[%s1 + $0xb90] sm:$0xff]
  %v961 = vld [vmem:[%s1 + $0xb98] sm:$0xff]
  %v962 = vld [vmem:[%s1 + $0xba0] sm:$0xff]
  %v963 = vld [vmem:[%s1 + $0xba8] sm:$0xff]
  %v964 = vld [vmem:[%s1 + $0xbb0] sm:$0xff]
  %v965 = vld [vmem:[%s1 + $0xbb8] sm:$0xff]
  %v966 = vld [vmem:[%s1 + $0xbc0] sm:$0xff]
  %v967 = vld [vmem:[%s1 + $0xbc8] sm:$0xff]
  %v968 = vld [vmem:[%s1 + $0xbd0] sm:$0xff]
  %v969 = vld [vmem:[%s1 + $0xbd8] sm:$0xff]
  %v970 = vld [vmem:[%s1 + $0xbe0] sm:$0xff]
  %v971 = vld [vmem:[%s1 + $0xbe8] sm:$0xff]
  %v972 = vld [vmem:[%s1 + $0xbf0] sm:$0xff]
  %v973 = vld [vmem:[%s1 + $0xbf8] sm:$0xff]
  %vm974 = vcmask 1045504
  %v975 = vrot.slane %v13, 2
  %v976 = vrot.slane %v14, 2
  %v977 = vsel %vm974, %v975, %v976
  %979 = vmatprep.subr.mxu0 %v847
  %980 = vmatpush1.msra.mxu0 %v846
  %981 = vmatprep.subr.mxu0 %v855
  %982 = vmatpush1.msra.mxu0 %v854
  %983 = vmatprep.subr.mxu0 %v863
  %984 = vmatpush1.msra.mxu0 %v862
  %985 = vmatprep.subr.mxu0 %v871
  %986 = vmatpush1.msra.mxu0 %v870
  %987 = vmatprep.subr.mxu0 %v879
  %988 = vmatpush1.msra.mxu0 %v878
  %989 = vmatprep.subr.mxu0 %v887
  %990 = vmatpush1.msra.mxu0 %v886
  %991 = vmatprep.subr.mxu0 %v895
  %992 = vmatpush1.msra.mxu0 %v894
  %993 = vmatprep.subr.mxu0 %v903
  %994 = vmatpush1.msra.mxu0 %v902
  %995 = vmatprep.subr.mxu0 %v911
  %996 = vmatpush1.msra.mxu0 %v910
  %997 = vmatprep.subr.mxu0 %v919
  %998 = vmatpush1.msra.mxu0 %v918
  %999 = vmatprep.subr.mxu0 %v927
  %1000 = vmatpush1.msra.mxu0 %v926
  %1001 = vmatprep.subr.mxu0 %v935
  %1002 = vmatpush1.msra.mxu0 %v934
  %1003 = vmatprep.subr.mxu0 %v943
  %1004 = vmatpush1.msra.mxu0 %v942
  %1005 = vmatprep.subr.mxu0 %v951
  %1006 = vmatpush1.msra.mxu0 %v950
  %1007 = vmatprep.subr.mxu0 %v959
  %1008 = vmatpush1.msra.mxu0 %v958
  %1009 = vmatprep.subr.mxu0 %v967
  %1010 = vmatpush1.msra.mxu0 %v966
  %1011 = vmatprep.subr.mxu0 0.0
  %1012 = vmatpush1.msra.mxu0 0.0
  %1013 = vmatprep.subr.mxu0 0.0
  %1014 = vmatpush1.msra.mxu0 0.0
  %1015 = vmatprep.subr.mxu0 0.0
  %1016 = vmatpush1.msra.mxu0 0.0
  %1017 = vmatprep.subr.mxu0 0.0
  %1018 = vmatpush1.msra.mxu0 0.0
  %1019 = vmatprep.subr.mxu0 0.0
  %1020 = vmatpush1.msra.mxu0 0.0
  %1021 = vmatprep.subr.mxu0 0.0
  %1022 = vmatpush1.msra.mxu0 0.0
  %1023 = vmatprep.subr.mxu0 0.0
  %1024 = vmatpush1.msra.mxu0 0.0
  %1025 = vmatprep.subr.mxu0 0.0
  %1026 = vmatpush1.msra.mxu0 0.0
  %1027 = vmatprep.subr.mxu0 0.0
  %1028 = vmatpush1.msra.mxu0 0.0
  %1029 = vmatprep.subr.mxu0 0.0
  %1030 = vmatpush1.msra.mxu0 0.0
  %1031 = vmatprep.subr.mxu0 0.0
  %1032 = vmatpush1.msra.mxu0 0.0
  %1033 = vmatprep.subr.mxu0 0.0
  %1034 = vmatpush1.msra.mxu0 0.0
  %1035 = vmatprep.subr.mxu0 0.0
  %1036 = vmatpush1.msra.mxu0 0.0
  %1037 = vmatprep.subr.mxu0 0.0
  %1038 = vmatpush1.msra.mxu0 0.0
  %1039 = vmatprep.subr.mxu0 0.0
  %1040 = vmatpush1.msra.mxu0 0.0
  %1041 = vmatprep.subr.mxu0 0.0
  %1042 = vmatpush1.msra.mxu0 0.0
  %1043 = vmatprep.mubr.f32.mxu0 0.0
  %1044 = vmatmul.mubr.f32.gmra.mrb[0].mxu0 %v977
  %v1045 = vpop.f32.mrb[0].mxu0
  %v1046 = vadd.f32 0.0, %v1045
  %v1047 = vpop.f32.mrb[0].mxu0
  %v1048 = vadd.f32 0.0, %v1047
  %1049 = vdwg.mxu0
  %1050 = vmatprep.subr.mxu0 %v849
  %1051 = vmatpush1.msra.mxu0 %v848
  %1052 = vmatprep.subr.mxu0 %v857
  %1053 = vmatpush1.msra.mxu0 %v856
  %1054 = vmatprep.subr.mxu0 %v865
  %1055 = vmatpush1.msra.mxu0 %v864
  %1056 = vmatprep.subr.mxu0 %v873
  %1057 = vmatpush1.msra.mxu0 %v872
  %1058 = vmatprep.subr.mxu0 %v881
  %1059 = vmatpush1.msra.mxu0 %v880
  %1060 = vmatprep.subr.mxu0 %v889
  %1061 = vmatpush1.msra.mxu0 %v888
  %1062 = vmatprep.subr.mxu0 %v897
  %1063 = vmatpush1.msra.mxu0 %v896
  %1064 = vmatprep.subr.mxu0 %v905
  %1065 = vmatpush1.msra.mxu0 %v904
  %1066 = vmatprep.subr.mxu0 %v913
  %1067 = vmatpush1.msra.mxu0 %v912
  %1068 = vmatprep.subr.mxu0 %v921
  %1069 = vmatpush1.msra.mxu0 %v920
  %1070 = vmatprep.subr.mxu0 %v929
  %1071 = vmatpush1.msra.mxu0 %v928
  %1072 = vmatprep.subr.mxu0 %v937
  %1073 = vmatpush1.msra.mxu0 %v936
  %1074 = vmatprep.subr.mxu0 %v945
  %1075 = vmatpush1.msra.mxu0 %v944
  %1076 = vmatprep.subr.mxu0 %v953
  %1077 = vmatpush1.msra.mxu0 %v952
  %1078 = vmatprep.subr.mxu0 %v961
  %1079 = vmatpush1.msra.mxu0 %v960
  %1080 = vmatprep.subr.mxu0 %v969
  %1081 = vmatpush1.msra.mxu0 %v968
  %1082 = vmatprep.subr.mxu0 0.0
  %1083 = vmatpush1.msra.mxu0 0.0
  %1084 = vmatprep.subr.mxu0 0.0
  %1085 = vmatpush1.msra.mxu0 0.0
  %1086 = vmatprep.subr.mxu0 0.0
  %1087 = vmatpush1.msra.mxu0 0.0
  %1088 = vmatprep.subr.mxu0 0.0
  %1089 = vmatpush1.msra.mxu0 0.0
  %1090 = vmatprep.subr.mxu0 0.0
  %1091 = vmatpush1.msra.mxu0 0.0
  %1092 = vmatprep.subr.mxu0 0.0
  %1093 = vmatpush1.msra.mxu0 0.0
  %1094 = vmatprep.subr.mxu0 0.0
  %1095 = vmatpush1.msra.mxu0 0.0
  %1096 = vmatprep.subr.mxu0 0.0
  %1097 = vmatpush1.msra.mxu0 0.0
  %1098 = vmatprep.subr.mxu0 0.0
  %1099 = vmatpush1.msra.mxu0 0.0
  %1100 = vmatprep.subr.mxu0 0.0
  %1101 = vmatpush1.msra.mxu0 0.0
  %1102 = vmatprep.subr.mxu0 0.0
  %1103 = vmatpush1.msra.mxu0 0.0
  %1104 = vmatprep.subr.mxu0 0.0
  %1105 = vmatpush1.msra.mxu0 0.0
  %1106 = vmatprep.subr.mxu0 0.0
  %1107 = vmatpush1.msra.mxu0 0.0
  %1108 = vmatprep.subr.mxu0 0.0
  %1109 = vmatpush1.msra.mxu0 0.0
  %1110 = vmatprep.subr.mxu0 0.0
  %1111 = vmatpush1.msra.mxu0 0.0
  %1112 = vmatprep.subr.mxu0 0.0
  %1113 = vmatpush1.msra.mxu0 0.0
  %1114 = vmatprep.mubr.f32.mxu0 0.0
  %1115 = vmatmul.mubr.f32.gmra.mrb[0].mxu0 %v977
  %v1116 = vpop.f32.mrb[0].mxu0
  %v1117 = vadd.f32 0.0, %v1116
  %v1118 = vpop.f32.mrb[0].mxu0
  %v1119 = vadd.f32 0.0, %v1118
  %1120 = vdwg.mxu0
  %1121 = vmatprep.subr.mxu0 %v851
  %1122 = vmatpush1.msra.mxu0 %v850
  %1123 = vmatprep.subr.mxu0 %v859
  %1124 = vmatpush1.msra.mxu0 %v858
  %1125 = vmatprep.subr.mxu0 %v867
  %1126 = vmatpush1.msra.mxu0 %v866
  %1127 = vmatprep.subr.mxu0 %v875
  %1128 = vmatpush1.msra.mxu0 %v874
  %1129 = vmatprep.subr.mxu0 %v883
  %1130 = vmatpush1.msra.mxu0 %v882
  %1131 = vmatprep.subr.mxu0 %v891
  %1132 = vmatpush1.msra.mxu0 %v890
  %1133 = vmatprep.subr.mxu0 %v899
  %1134 = vmatpush1.msra.mxu0 %v898
  %1135 = vmatprep.subr.mxu0 %v907
  %1136 = vmatpush1.msra.mxu0 %v906
  %1137 = vmatprep.subr.mxu0 %v915
  %1138 = vmatpush1.msra.mxu0 %v914
  %1139 = vmatprep.subr.mxu0 %v923
  %1140 = vmatpush1.msra.mxu0 %v922
  %1141 = vmatprep.subr.mxu0 %v931
  %1142 = vmatpush1.msra.mxu0 %v930
  %1143 = vmatprep.subr.mxu0 %v939
  %1144 = vmatpush1.msra.mxu0 %v938
  %1145 = vmatprep.subr.mxu0 %v947
  %1146 = vmatpush1.msra.mxu0 %v946
  %1147 = vmatprep.subr.mxu0 %v955
  %1148 = vmatpush1.msra.mxu0 %v954
  %1149 = vmatprep.subr.mxu0 %v963
  %1150 = vmatpush1.msra.mxu0 %v962
  %1151 = vmatprep.subr.mxu0 %v971
  %1152 = vmatpush1.msra.mxu0 %v970
  %1153 = vmatprep.subr.mxu0 0.0
  %1154 = vmatpush1.msra.mxu0 0.0
  %1155 = vmatprep.subr.mxu0 0.0
  %1156 = vmatpush1.msra.mxu0 0.0
  %1157 = vmatprep.subr.mxu0 0.0
  %1158 = vmatpush1.msra.mxu0 0.0
  %1159 = vmatprep.subr.mxu0 0.0
  %1160 = vmatpush1.msra.mxu0 0.0
  %1161 = vmatprep.subr.mxu0 0.0
  %1162 = vmatpush1.msra.mxu0 0.0
  %1163 = vmatprep.subr.mxu0 0.0
  %1164 = vmatpush1.msra.mxu0 0.0
  %1165 = vmatprep.subr.mxu0 0.0
  %1166 = vmatpush1.msra.mxu0 0.0
  %1167 = vmatprep.subr.mxu0 0.0
  %1168 = vmatpush1.msra.mxu0 0.0
  %1169 = vmatprep.subr.mxu0 0.0
  %1170 = vmatpush1.msra.mxu0 0.0
  %1171 = vmatprep.subr.mxu0 0.0
  %1172 = vmatpush1.msra.mxu0 0.0
  %1173 = vmatprep.subr.mxu0 0.0
  %1174 = vmatpush1.msra.mxu0 0.0
  %1175 = vmatprep.subr.mxu0 0.0
  %1176 = vmatpush1.msra.mxu0 0.0
  %1177 = vmatprep.subr.mxu0 0.0
  %1178 = vmatpush1.msra.mxu0 0.0
  %1179 = vmatprep.subr.mxu0 0.0
  %1180 = vmatpush1.msra.mxu0 0.0
  %1181 = vmatprep.subr.mxu0 0.0
  %1182 = vmatpush1.msra.mxu0 0.0
  %1183 = vmatprep.subr.mxu0 0.0
  %1184 = vmatpush1.msra.mxu0 0.0
  %1185 = vmatprep.mubr.f32.mxu0 0.0
  %1186 = vmatmul.mubr.f32.gmra.mrb[0].mxu0 %v977
  %v1187 = vpop.f32.mrb[0].mxu0
  %v1188 = vadd.f32 0.0, %v1187
  %v1189 = vpop.f32.mrb[0].mxu0
  %v1190 = vadd.f32 0.0, %v1189
  %1191 = vdwg.mxu0
  %1192 = vmatprep.subr.mxu0 %v853
  %1193 = vmatpush1.msra.mxu0 %v852
  %1194 = vmatprep.subr.mxu0 %v861
  %1195 = vmatpush1.msra.mxu0 %v860
  %1196 = vmatprep.subr.mxu0 %v869
  %1197 = vmatpush1.msra.mxu0 %v868
  %1198 = vmatprep.subr.mxu0 %v877
  %1199 = vmatpush1.msra.mxu0 %v876
  %1200 = vmatprep.subr.mxu0 %v885
  %1201 = vmatpush1.msra.mxu0 %v884
  %1202 = vmatprep.subr.mxu0 %v893
  %1203 = vmatpush1.msra.mxu0 %v892
  %1204 = vmatprep.subr.mxu0 %v901
  %1205 = vmatpush1.msra.mxu0 %v900
  %1206 = vmatprep.subr.mxu0 %v909
  %1207 = vmatpush1.msra.mxu0 %v908
  %1208 = vmatprep.subr.mxu0 %v917
  %1209 = vmatpush1.msra.mxu0 %v916
  %1210 = vmatprep.subr.mxu0 %v925
  %1211 = vmatpush1.msra.mxu0 %v924
  %1212 = vmatprep.subr.mxu0 %v933
  %1213 = vmatpush1.msra.mxu0 %v932
  %1214 = vmatprep.subr.mxu0 %v941
  %1215 = vmatpush1.msra.mxu0 %v940
  %1216 = vmatprep.subr.mxu0 %v949
  %1217 = vmatpush1.msra.mxu0 %v948
  %1218 = vmatprep.subr.mxu0 %v957
  %1219 = vmatpush1.msra.mxu0 %v956
  %1220 = vmatprep.subr.mxu0 %v965
  %1221 = vmatpush1.msra.mxu0 %v964
  %1222 = vmatprep.subr.mxu0 %v973
  %1223 = vmatpush1.msra.mxu0 %v972
  %1224 = vmatprep.subr.mxu0 0.0
  %1225 = vmatpush1.msra.mxu0 0.0
  %1226 = vmatprep.subr.mxu0 0.0
  %1227 = vmatpush1.msra.mxu0 0.0
  %1228 = vmatprep.subr.mxu0 0.0
  %1229 = vmatpush1.msra.mxu0 0.0
  %1230 = vmatprep.subr.mxu0 0.0
  %1231 = vmatpush1.msra.mxu0 0.0
  %1232 = vmatprep.subr.mxu0 0.0
  %1233 = vmatpush1.msra.mxu0 0.0
  %1234 = vmatprep.subr.mxu0 0.0
  %1235 = vmatpush1.msra.mxu0 0.0
  %1236 = vmatprep.subr.mxu0 0.0
  %1237 = vmatpush1.msra.mxu0 0.0
  %1238 = vmatprep.subr.mxu0 0.0
  %1239 = vmatpush1.msra.mxu0 0.0
  %1240 = vmatprep.subr.mxu0 0.0
  %1241 = vmatpush1.msra.mxu0 0.0
  %1242 = vmatprep.subr.mxu0 0.0
  %1243 = vmatpush1.msra.mxu0 0.0
  %1244 = vmatprep.subr.mxu0 0.0
  %1245 = vmatpush1.msra.mxu0 0.0
  %1246 = vmatprep.subr.mxu0 0.0
  %1247 = vmatpush1.msra.mxu0 0.0
  %1248 = vmatprep.subr.mxu0 0.0
  %1249 = vmatpush1.msra.mxu0 0.0
  %1250 = vmatprep.subr.mxu0 0.0
  %1251 = vmatpush1.msra.mxu0 0.0
  %1252 = vmatprep.subr.mxu0 0.0
  %1253 = vmatpush1.msra.mxu0 0.0
  %1254 = vmatprep.subr.mxu0 0.0
  %1255 = vmatpush1.msra.mxu0 0.0
  %1256 = vmatprep.mubr.f32.mxu0 0.0
  %1257 = vmatmul.mubr.f32.gmra.mrb[0].mxu0 %v977
  %v1258 = vpop.f32.mrb[0].mxu0
  %v1259 = vadd.f32 0.0, %v1258
  %v1260 = vpop.f32.mrb[0].mxu0
  %v1261 = vadd.f32 0.0, %v1260
  %1262 = vdwg.mxu0
  %v1263 = vadd.f32 %v629, %v1046
  %v1264 = vadd.f32 %v631, %v1048
  %v1265 = vadd.f32 %v700, %v1117
  %v1266 = vadd.f32 %v702, %v1119
  %v1267 = vadd.f32 %v771, %v1188
  %v1268 = vadd.f32 %v773, %v1190
  %v1269 = vadd.f32 %v842, %v1259
  %v1270 = vadd.f32 %v844, %v1261
  %v1271 = vld [vmem:[%s1 + $0xc00] sm:$0xff]
  %v1272 = vld [vmem:[%s1 + $0xc08] sm:$0xff]
  %v1273 = vld [vmem:[%s1 + $0xc10] sm:$0xff]
  %v1274 = vld [vmem:[%s1 + $0xc18] sm:$0xff]
  %v1275 = vld [vmem:[%s1 + $0xc20] sm:$0xff]
  %v1276 = vld [vmem:[%s1 + $0xc28] sm:$0xff]
  %v1277 = vld [vmem:[%s1 + $0xc30] sm:$0xff]
  %v1278 = vld [vmem:[%s1 + $0xc38] sm:$0xff]
  %v1279 = vld [vmem:[%s1 + $0xc40] sm:$0xff]
  %v1280 = vld [vmem:[%s1 + $0xc48] sm:$0xff]
  %v1281 = vld [vmem:[%s1 + $0xc50] sm:$0xff]
  %v1282 = vld [vmem:[%s1 + $0xc58] sm:$0xff]
  %v1283 = vld [vmem:[%s1 + $0xc60] sm:$0xff]
  %v1284 = vld [vmem:[%s1 + $0xc68] sm:$0xff]
  %v1285 = vld [vmem:[%s1 + $0xc70] sm:$0xff]
  %v1286 = vld [vmem:[%s1 + $0xc78] sm:$0xff]
  %v1287 = vld [vmem:[%s1 + $0xc80] sm:$0xff]
  %v1288 = vld [vmem:[%s1 + $0xc88] sm:$0xff]
  %v1289 = vld [vmem:[%s1 + $0xc90] sm:$0xff]
  %v1290 = vld [vmem:[%s1 + $0xc98] sm:$0xff]
  %v1291 = vld [vmem:[%s1 + $0xca0] sm:$0xff]
  %v1292 = vld [vmem:[%s1 + $0xca8] sm:$0xff]
  %v1293 = vld [vmem:[%s1 + $0xcb0] sm:$0xff]
  %v1294 = vld [vmem:[%s1 + $0xcb8] sm:$0xff]
  %v1295 = vld [vmem:[%s1 + $0xcc0] sm:$0xff]
  %v1296 = vld [vmem:[%s1 + $0xcc8] sm:$0xff]
  %v1297 = vld [vmem:[%s1 + $0xcd0] sm:$0xff]
  %v1298 = vld [vmem:[%s1 + $0xcd8] sm:$0xff]
  %v1299 = vld [vmem:[%s1 + $0xce0] sm:$0xff]
  %v1300 = vld [vmem:[%s1 + $0xce8] sm:$0xff]
  %v1301 = vld [vmem:[%s1 + $0xcf0] sm:$0xff]
  %v1302 = vld [vmem:[%s1 + $0xcf8] sm:$0xff]
  %v1303 = vld [vmem:[%s1 + $0xd00] sm:$0xff]
  %v1304 = vld [vmem:[%s1 + $0xd08] sm:$0xff]
  %v1305 = vld [vmem:[%s1 + $0xd10] sm:$0xff]
  %v1306 = vld [vmem:[%s1 + $0xd18] sm:$0xff]
  %v1307 = vld [vmem:[%s1 + $0xd20] sm:$0xff]
  %v1308 = vld [vmem:[%s1 + $0xd28] sm:$0xff]
  %v1309 = vld [vmem:[%s1 + $0xd30] sm:$0xff]
  %v1310 = vld [vmem:[%s1 + $0xd38] sm:$0xff]
  %v1311 = vld [vmem:[%s1 + $0xd40] sm:$0xff]
  %v1312 = vld [vmem:[%s1 + $0xd48] sm:$0xff]
  %v1313 = vld [vmem:[%s1 + $0xd50] sm:$0xff]
  %v1314 = vld [vmem:[%s1 + $0xd58] sm:$0xff]
  %v1315 = vld [vmem:[%s1 + $0xd60] sm:$0xff]
  %v1316 = vld [vmem:[%s1 + $0xd68] sm:$0xff]
  %v1317 = vld [vmem:[%s1 + $0xd70] sm:$0xff]
  %v1318 = vld [vmem:[%s1 + $0xd78] sm:$0xff]
  %v1319 = vld [vmem:[%s1 + $0xd80] sm:$0xff]
  %v1320 = vld [vmem:[%s1 + $0xd88] sm:$0xff]
  %v1321 = vld [vmem:[%s1 + $0xd90] sm:$0xff]
  %v1322 = vld [vmem:[%s1 + $0xd98] sm:$0xff]
  %v1323 = vld [vmem:[%s1 + $0xda0] sm:$0xff]
  %v1324 = vld [vmem:[%s1 + $0xda8] sm:$0xff]
  %v1325 = vld [vmem:[%s1 + $0xdb0] sm:$0xff]
  %v1326 = vld [vmem:[%s1 + $0xdb8] sm:$0xff]
  %v1327 = vld [vmem:[%s1 + $0xdc0] sm:$0xff]
  %v1328 = vld [vmem:[%s1 + $0xdc8] sm:$0xff]
  %v1329 = vld [vmem:[%s1 + $0xdd0] sm:$0xff]
  %v1330 = vld [vmem:[%s1 + $0xdd8] sm:$0xff]
  %v1331 = vld [vmem:[%s1 + $0xde0] sm:$0xff]
  %v1332 = vld [vmem:[%s1 + $0xde8] sm:$0xff]
  %v1333 = vld [vmem:[%s1 + $0xdf0] sm:$0xff]
  %v1334 = vld [vmem:[%s1 + $0xdf8] sm:$0xff]
  %v1335 = vld [vmem:[%s1 + $0xe00] sm:$0xff]
  %v1336 = vld [vmem:[%s1 + $0xe08] sm:$0xff]
  %v1337 = vld [vmem:[%s1 + $0xe10] sm:$0xff]
  %v1338 = vld [vmem:[%s1 + $0xe18] sm:$0xff]
  %v1339 = vld [vmem:[%s1 + $0xe20] sm:$0xff]
  %v1340 = vld [vmem:[%s1 + $0xe28] sm:$0xff]
  %v1341 = vld [vmem:[%s1 + $0xe30] sm:$0xff]
  %v1342 = vld [vmem:[%s1 + $0xe38] sm:$0xff]
  %v1343 = vld [vmem:[%s1 + $0xe40] sm:$0xff]
  %v1344 = vld [vmem:[%s1 + $0xe48] sm:$0xff]
  %v1345 = vld [vmem:[%s1 + $0xe50] sm:$0xff]
  %v1346 = vld [vmem:[%s1 + $0xe58] sm:$0xff]
  %v1347 = vld [vmem:[%s1 + $0xe60] sm:$0xff]
  %v1348 = vld [vmem:[%s1 + $0xe68] sm:$0xff]
  %v1349 = vld [vmem:[%s1 + $0xe70] sm:$0xff]
  %v1350 = vld [vmem:[%s1 + $0xe78] sm:$0xff]
  %v1351 = vld [vmem:[%s1 + $0xe80] sm:$0xff]
  %v1352 = vld [vmem:[%s1 + $0xe88] sm:$0xff]
  %v1353 = vld [vmem:[%s1 + $0xe90] sm:$0xff]
  %v1354 = vld [vmem:[%s1 + $0xe98] sm:$0xff]
  %v1355 = vld [vmem:[%s1 + $0xea0] sm:$0xff]
  %v1356 = vld [vmem:[%s1 + $0xea8] sm:$0xff]
  %v1357 = vld [vmem:[%s1 + $0xeb0] sm:$0xff]
  %v1358 = vld [vmem:[%s1 + $0xeb8] sm:$0xff]
  %v1359 = vld [vmem:[%s1 + $0xec0] sm:$0xff]
  %v1360 = vld [vmem:[%s1 + $0xec8] sm:$0xff]
  %v1361 = vld [vmem:[%s1 + $0xed0] sm:$0xff]
  %v1362 = vld [vmem:[%s1 + $0xed8] sm:$0xff]
  %v1363 = vld [vmem:[%s1 + $0xee0] sm:$0xff]
  %v1364 = vld [vmem:[%s1 + $0xee8] sm:$0xff]
  %v1365 = vld [vmem:[%s1 + $0xef0] sm:$0xff]
  %v1366 = vld [vmem:[%s1 + $0xef8] sm:$0xff]
  %v1367 = vld [vmem:[%s1 + $0xf00] sm:$0xff]
  %v1368 = vld [vmem:[%s1 + $0xf08] sm:$0xff]
  %v1369 = vld [vmem:[%s1 + $0xf10] sm:$0xff]
  %v1370 = vld [vmem:[%s1 + $0xf18] sm:$0xff]
  %v1371 = vld [vmem:[%s1 + $0xf20] sm:$0xff]
  %v1372 = vld [vmem:[%s1 + $0xf28] sm:$0xff]
  %v1373 = vld [vmem:[%s1 + $0xf30] sm:$0xff]
  %v1374 = vld [vmem:[%s1 + $0xf38] sm:$0xff]
  %v1375 = vld [vmem:[%s1 + $0xf40] sm:$0xff]
  %v1376 = vld [vmem:[%s1 + $0xf48] sm:$0xff]
  %v1377 = vld [vmem:[%s1 + $0xf50] sm:$0xff]
  %v1378 = vld [vmem:[%s1 + $0xf58] sm:$0xff]
  %v1379 = vld [vmem:[%s1 + $0xf60] sm:$0xff]
  %v1380 = vld [vmem:[%s1 + $0xf68] sm:$0xff]
  %v1381 = vld [vmem:[%s1 + $0xf70] sm:$0xff]
  %v1382 = vld [vmem:[%s1 + $0xf78] sm:$0xff]
  %v1383 = vld [vmem:[%s1 + $0xf80] sm:$0xff]
  %v1384 = vld [vmem:[%s1 + $0xf88] sm:$0xff]
  %v1385 = vld [vmem:[%s1 + $0xf90] sm:$0xff]
  %v1386 = vld [vmem:[%s1 + $0xf98] sm:$0xff]
  %v1387 = vld [vmem:[%s1 + $0xfa0] sm:$0xff]
  %v1388 = vld [vmem:[%s1 + $0xfa8] sm:$0xff]
  %v1389 = vld [vmem:[%s1 + $0xfb0] sm:$0xff]
  %v1390 = vld [vmem:[%s1 + $0xfb8] sm:$0xff]
  %v1391 = vld [vmem:[%s1 + $0xfc0] sm:$0xff]
  %v1392 = vld [vmem:[%s1 + $0xfc8] sm:$0xff]
  %v1393 = vld [vmem:[%s1 + $0xfd0] sm:$0xff]
  %v1394 = vld [vmem:[%s1 + $0xfd8] sm:$0xff]
  %v1395 = vld [vmem:[%s1 + $0xfe0] sm:$0xff]
  %v1396 = vld [vmem:[%s1 + $0xfe8] sm:$0xff]
  %v1397 = vld [vmem:[%s1 + $0xff0] sm:$0xff]
  %v1398 = vld [vmem:[%s1 + $0xff8] sm:$0xff]
  %vm1399 = vcmask 1044480
  %v1400 = vrot.slane %v13, 3
  %v1401 = vrot.slane %v14, 3
  %v1402 = vsel %vm1399, %v1400, %v1401
  %1404 = vmatprep.subr.mxu0 %v1272
  %1405 = vmatpush1.msra.mxu0 %v1271
  %1406 = vmatprep.subr.mxu0 %v1280
  %1407 = vmatpush1.msra.mxu0 %v1279
  %1408 = vmatprep.subr.mxu0 %v1288
  %1409 = vmatpush1.msra.mxu0 %v1287
  %1410 = vmatprep.subr.mxu0 %v1296
  %1411 = vmatpush1.msra.mxu0 %v1295
  %1412 = vmatprep.subr.mxu0 %v1304
  %1413 = vmatpush1.msra.mxu0 %v1303
  %1414 = vmatprep.subr.mxu0 %v1312
  %1415 = vmatpush1.msra.mxu0 %v1311
  %1416 = vmatprep.subr.mxu0 %v1320
  %1417 = vmatpush1.msra.mxu0 %v1319
  %1418 = vmatprep.subr.mxu0 %v1328
  %1419 = vmatpush1.msra.mxu0 %v1327
  %1420 = vmatprep.subr.mxu0 %v1336
  %1421 = vmatpush1.msra.mxu0 %v1335
  %1422 = vmatprep.subr.mxu0 %v1344
  %1423 = vmatpush1.msra.mxu0 %v1343
  %1424 = vmatprep.subr.mxu0 %v1352
  %1425 = vmatpush1.msra.mxu0 %v1351
  %1426 = vmatprep.subr.mxu0 %v1360
  %1427 = vmatpush1.msra.mxu0 %v1359
  %1428 = vmatprep.subr.mxu0 %v1368
  %1429 = vmatpush1.msra.mxu0 %v1367
  %1430 = vmatprep.subr.mxu0 %v1376
  %1431 = vmatpush1.msra.mxu0 %v1375
  %1432 = vmatprep.subr.mxu0 %v1384
  %1433 = vmatpush1.msra.mxu0 %v1383
  %1434 = vmatprep.subr.mxu0 %v1392
  %1435 = vmatpush1.msra.mxu0 %v1391
  %1436 = vmatprep.subr.mxu0 0.0
  %1437 = vmatpush1.msra.mxu0 0.0
  %1438 = vmatprep.subr.mxu0 0.0
  %1439 = vmatpush1.msra.mxu0 0.0
  %1440 = vmatprep.subr.mxu0 0.0
  %1441 = vmatpush1.msra.mxu0 0.0
  %1442 = vmatprep.subr.mxu0 0.0
  %1443 = vmatpush1.msra.mxu0 0.0
  %1444 = vmatprep.subr.mxu0 0.0
  %1445 = vmatpush1.msra.mxu0 0.0
  %1446 = vmatprep.subr.mxu0 0.0
  %1447 = vmatpush1.msra.mxu0 0.0
  %1448 = vmatprep.subr.mxu0 0.0
  %1449 = vmatpush1.msra.mxu0 0.0
  %1450 = vmatprep.subr.mxu0 0.0
  %1451 = vmatpush1.msra.mxu0 0.0
  %1452 = vmatprep.subr.mxu0 0.0
  %1453 = vmatpush1.msra.mxu0 0.0
  %1454 = vmatprep.subr.mxu0 0.0
  %1455 = vmatpush1.msra.mxu0 0.0
  %1456 = vmatprep.subr.mxu0 0.0
  %1457 = vmatpush1.msra.mxu0 0.0
  %1458 = vmatprep.subr.mxu0 0.0
  %1459 = vmatpush1.msra.mxu0 0.0
  %1460 = vmatprep.subr.mxu0 0.0
  %1461 = vmatpush1.msra.mxu0 0.0
  %1462 = vmatprep.subr.mxu0 0.0
  %1463 = vmatpush1.msra.mxu0 0.0
  %1464 = vmatprep.subr.mxu0 0.0
  %1465 = vmatpush1.msra.mxu0 0.0
  %1466 = vmatprep.subr.mxu0 0.0
  %1467 = vmatpush1.msra.mxu0 0.0
  %1468 = vmatprep.mubr.f32.mxu0 0.0
  %1469 = vmatmul.mubr.f32.gmra.mrb[0].mxu0 %v1402
  %v1470 = vpop.f32.mrb[0].mxu0
  %v1471 = vadd.f32 0.0, %v1470
  %v1472 = vpop.f32.mrb[0].mxu0
  %v1473 = vadd.f32 0.0, %v1472
  %1474 = vdwg.mxu0
  %1475 = vmatprep.subr.mxu0 %v1274
  %1476 = vmatpush1.msra.mxu0 %v1273
  %1477 = vmatprep.subr.mxu0 %v1282
  %1478 = vmatpush1.msra.mxu0 %v1281
  %1479 = vmatprep.subr.mxu0 %v1290
  %1480 = vmatpush1.msra.mxu0 %v1289
  %1481 = vmatprep.subr.mxu0 %v1298
  %1482 = vmatpush1.msra.mxu0 %v1297
  %1483 = vmatprep.subr.mxu0 %v1306
  %1484 = vmatpush1.msra.mxu0 %v1305
  %1485 = vmatprep.subr.mxu0 %v1314
  %1486 = vmatpush1.msra.mxu0 %v1313
  %1487 = vmatprep.subr.mxu0 %v1322
  %1488 = vmatpush1.msra.mxu0 %v1321
  %1489 = vmatprep.subr.mxu0 %v1330
  %1490 = vmatpush1.msra.mxu0 %v1329
  %1491 = vmatprep.subr.mxu0 %v1338
  %1492 = vmatpush1.msra.mxu0 %v1337
  %1493 = vmatprep.subr.mxu0 %v1346
  %1494 = vmatpush1.msra.mxu0 %v1345
  %1495 = vmatprep.subr.mxu0 %v1354
  %1496 = vmatpush1.msra.mxu0 %v1353
  %1497 = vmatprep.subr.mxu0 %v1362
  %1498 = vmatpush1.msra.mxu0 %v1361
  %1499 = vmatprep.subr.mxu0 %v1370
  %1500 = vmatpush1.msra.mxu0 %v1369
  %1501 = vmatprep.subr.mxu0 %v1378
  %1502 = vmatpush1.msra.mxu0 %v1377
  %1503 = vmatprep.subr.mxu0 %v1386
  %1504 = vmatpush1.msra.mxu0 %v1385
  %1505 = vmatprep.subr.mxu0 %v1394
  %1506 = vmatpush1.msra.mxu0 %v1393
  %1507 = vmatprep.subr.mxu0 0.0
  %1508 = vmatpush1.msra.mxu0 0.0
  %1509 = vmatprep.subr.mxu0 0.0
  %1510 = vmatpush1.msra.mxu0 0.0
  %1511 = vmatprep.subr.mxu0 0.0
  %1512 = vmatpush1.msra.mxu0 0.0
  %1513 = vmatprep.subr.mxu0 0.0
  %1514 = vmatpush1.msra.mxu0 0.0
  %1515 = vmatprep.subr.mxu0 0.0
  %1516 = vmatpush1.msra.mxu0 0.0
  %1517 = vmatprep.subr.mxu0 0.0
  %1518 = vmatpush1.msra.mxu0 0.0
  %1519 = vmatprep.subr.mxu0 0.0
  %1520 = vmatpush1.msra.mxu0 0.0
  %1521 = vmatprep.subr.mxu0 0.0
  %1522 = vmatpush1.msra.mxu0 0.0
  %1523 = vmatprep.subr.mxu0 0.0
  %1524 = vmatpush1.msra.mxu0 0.0
  %1525 = vmatprep.subr.mxu0 0.0
  %1526 = vmatpush1.msra.mxu0 0.0
  %1527 = vmatprep.subr.mxu0 0.0
  %1528 = vmatpush1.msra.mxu0 0.0
  %1529 = vmatprep.subr.mxu0 0.0
  %1530 = vmatpush1.msra.mxu0 0.0
  %1531 = vmatprep.subr.mxu0 0.0
  %1532 = vmatpush1.msra.mxu0 0.0
  %1533 = vmatprep.subr.mxu0 0.0
  %1534 = vmatpush1.msra.mxu0 0.0
  %1535 = vmatprep.subr.mxu0 0.0
  %1536 = vmatpush1.msra.mxu0 0.0
  %1537 = vmatprep.subr.mxu0 0.0
  %1538 = vmatpush1.msra.mxu0 0.0
  %1539 = vmatprep.mubr.f32.mxu0 0.0
  %1540 = vmatmul.mubr.f32.gmra.mrb[0].mxu0 %v1402
  %v1541 = vpop.f32.mrb[0].mxu0
  %v1542 = vadd.f32 0.0, %v1541
  %v1543 = vpop.f32.mrb[0].mxu0
  %v1544 = vadd.f32 0.0, %v1543
  %1545 = vdwg.mxu0
  %1546 = vmatprep.subr.mxu0 %v1276
  %1547 = vmatpush1.msra.mxu0 %v1275
  %1548 = vmatprep.subr.mxu0 %v1284
  %1549 = vmatpush1.msra.mxu0 %v1283
  %1550 = vmatprep.subr.mxu0 %v1292
  %1551 = vmatpush1.msra.mxu0 %v1291
  %1552 = vmatprep.subr.mxu0 %v1300
  %1553 = vmatpush1.msra.mxu0 %v1299
  %1554 = vmatprep.subr.mxu0 %v1308
  %1555 = vmatpush1.msra.mxu0 %v1307
  %1556 = vmatprep.subr.mxu0 %v1316
  %1557 = vmatpush1.msra.mxu0 %v1315
  %1558 = vmatprep.subr.mxu0 %v1324
  %1559 = vmatpush1.msra.mxu0 %v1323
  %1560 = vmatprep.subr.mxu0 %v1332
  %1561 = vmatpush1.msra.mxu0 %v1331
  %1562 = vmatprep.subr.mxu0 %v1340
  %1563 = vmatpush1.msra.mxu0 %v1339
  %1564 = vmatprep.subr.mxu0 %v1348
  %1565 = vmatpush1.msra.mxu0 %v1347
  %1566 = vmatprep.subr.mxu0 %v1356
  %1567 = vmatpush1.msra.mxu0 %v1355
  %1568 = vmatprep.subr.mxu0 %v1364
  %1569 = vmatpush1.msra.mxu0 %v1363
  %1570 = vmatprep.subr.mxu0 %v1372
  %1571 = vmatpush1.msra.mxu0 %v1371
  %1572 = vmatprep.subr.mxu0 %v1380
  %1573 = vmatpush1.msra.mxu0 %v1379
  %1574 = vmatprep.subr.mxu0 %v1388
  %1575 = vmatpush1.msra.mxu0 %v1387
  %1576 = vmatprep.subr.mxu0 %v1396
  %1577 = vmatpush1.msra.mxu0 %v1395
  %1578 = vmatprep.subr.mxu0 0.0
  %1579 = vmatpush1.msra.mxu0 0.0
  %1580 = vmatprep.subr.mxu0 0.0
  %1581 = vmatpush1.msra.mxu0 0.0
  %1582 = vmatprep.subr.mxu0 0.0
  %1583 = vmatpush1.msra.mxu0 0.0
  %1584 = vmatprep.subr.mxu0 0.0
  %1585 = vmatpush1.msra.mxu0 0.0
  %1586 = vmatprep.subr.mxu0 0.0
  %1587 = vmatpush1.msra.mxu0 0.0
  %1588 = vmatprep.subr.mxu0 0.0
  %1589 = vmatpush1.msra.mxu0 0.0
  %1590 = vmatprep.subr.mxu0 0.0
  %1591 = vmatpush1.msra.mxu0 0.0
  %1592 = vmatprep.subr.mxu0 0.0
  %1593 = vmatpush1.msra.mxu0 0.0
  %1594 = vmatprep.subr.mxu0 0.0
  %1595 = vmatpush1.msra.mxu0 0.0
  %1596 = vmatprep.subr.mxu0 0.0
  %1597 = vmatpush1.msra.mxu0 0.0
  %1598 = vmatprep.subr.mxu0 0.0
  %1599 = vmatpush1.msra.mxu0 0.0
  %1600 = vmatprep.subr.mxu0 0.0
  %1601 = vmatpush1.msra.mxu0 0.0
  %1602 = vmatprep.subr.mxu0 0.0
  %1603 = vmatpush1.msra.mxu0 0.0
  %1604 = vmatprep.subr.mxu0 0.0
  %1605 = vmatpush1.msra.mxu0 0.0
  %1606 = vmatprep.subr.mxu0 0.0
  %1607 = vmatpush1.msra.mxu0 0.0
  %1608 = vmatprep.subr.mxu0 0.0
  %1609 = vmatpush1.msra.mxu0 0.0
  %1610 = vmatprep.mubr.f32.mxu0 0.0
  %1611 = vmatmul.mubr.f32.gmra.mrb[0].mxu0 %v1402
  %v1612 = vpop.f32.mrb[0].mxu0
  %v1613 = vadd.f32 0.0, %v1612
  %v1614 = vpop.f32.mrb[0].mxu0
  %v1615 = vadd.f32 0.0, %v1614
  %1616 = vdwg.mxu0
  %1617 = vmatprep.subr.mxu0 %v1278
  %1618 = vmatpush1.msra.mxu0 %v1277
  %1619 = vmatprep.subr.mxu0 %v1286
  %1620 = vmatpush1.msra.mxu0 %v1285
  %1621 = vmatprep.subr.mxu0 %v1294
  %1622 = vmatpush1.msra.mxu0 %v1293
  %1623 = vmatprep.subr.mxu0 %v1302
  %1624 = vmatpush1.msra.mxu0 %v1301
  %1625 = vmatprep.subr.mxu0 %v1310
  %1626 = vmatpush1.msra.mxu0 %v1309
  %1627 = vmatprep.subr.mxu0 %v1318
  %1628 = vmatpush1.msra.mxu0 %v1317
  %1629 = vmatprep.subr.mxu0 %v1326
  %1630 = vmatpush1.msra.mxu0 %v1325
  %1631 = vmatprep.subr.mxu0 %v1334
  %1632 = vmatpush1.msra.mxu0 %v1333
  %1633 = vmatprep.subr.mxu0 %v1342
  %1634 = vmatpush1.msra.mxu0 %v1341
  %1635 = vmatprep.subr.mxu0 %v1350
  %1636 = vmatpush1.msra.mxu0 %v1349
  %1637 = vmatprep.subr.mxu0 %v1358
  %1638 = vmatpush1.msra.mxu0 %v1357
  %1639 = vmatprep.subr.mxu0 %v1366
  %1640 = vmatpush1.msra.mxu0 %v1365
  %1641 = vmatprep.subr.mxu0 %v1374
  %1642 = vmatpush1.msra.mxu0 %v1373
  %1643 = vmatprep.subr.mxu0 %v1382
  %1644 = vmatpush1.msra.mxu0 %v1381
  %1645 = vmatprep.subr.mxu0 %v1390
  %1646 = vmatpush1.msra.mxu0 %v1389
  %1647 = vmatprep.subr.mxu0 %v1398
  %1648 = vmatpush1.msra.mxu0 %v1397
  %1649 = vmatprep.subr.mxu0 0.0
  %1650 = vmatpush1.msra.mxu0 0.0
  %1651 = vmatprep.subr.mxu0 0.0
  %1652 = vmatpush1.msra.mxu0 0.0
  %1653 = vmatprep.subr.mxu0 0.0
  %1654 = vmatpush1.msra.mxu0 0.0
  %1655 = vmatprep.subr.mxu0 0.0
  %1656 = vmatpush1.msra.mxu0 0.0
  %1657 = vmatprep.subr.mxu0 0.0
  %1658 = vmatpush1.msra.mxu0 0.0
  %1659 = vmatprep.subr.mxu0 0.0
  %1660 = vmatpush1.msra.mxu0 0.0
  %1661 = vmatprep.subr.mxu0 0.0
  %1662 = vmatpush1.msra.mxu0 0.0
  %1663 = vmatprep.subr.mxu0 0.0
  %1664 = vmatpush1.msra.mxu0 0.0
  %1665 = vmatprep.subr.mxu0 0.0
  %1666 = vmatpush1.msra.mxu0 0.0
  %1667 = vmatprep.subr.mxu0 0.0
  %1668 = vmatpush1.msra.mxu0 0.0
  %1669 = vmatprep.subr.mxu0 0.0
  %1670 = vmatpush1.msra.mxu0 0.0
  %1671 = vmatprep.subr.mxu0 0.0
  %1672 = vmatpush1.msra.mxu0 0.0
  %1673 = vmatprep.subr.mxu0 0.0
  %1674 = vmatpush1.msra.mxu0 0.0
  %1675 = vmatprep.subr.mxu0 0.0
  %1676 = vmatpush1.msra.mxu0 0.0
  %1677 = vmatprep.subr.mxu0 0.0
  %1678 = vmatpush1.msra.mxu0 0.0
  %1679 = vmatprep.subr.mxu0 0.0
  %1680 = vmatpush1.msra.mxu0 0.0
  %1681 = vmatprep.mubr.f32.mxu0 0.0
  %1682 = vmatmul.mubr.f32.gmra.mrb[0].mxu0 %v1402
  %v1683 = vpop.f32.mrb[0].mxu0
  %v1684 = vadd.f32 0.0, %v1683
  %v1685 = vpop.f32.mrb[0].mxu0
  %v1686 = vadd.f32 0.0, %v1685
  %1687 = vdwg.mxu0
  %v1688 = vadd.f32 %v1263, %v1471
  %v1689 = vadd.f32 %v1264, %v1473
  %v1690 = vadd.f32 %v1265, %v1542
  %v1691 = vadd.f32 %v1266, %v1544
  %v1692 = vadd.f32 %v1267, %v1613
  %v1693 = vadd.f32 %v1268, %v1615
  %v1694 = vadd.f32 %v1269, %v1684
  %v1695 = vadd.f32 %v1270, %v1686
  %1696 = vst [vmem:[%s2] sm:$0xff] %v1688
  %1697 = vst [vmem:[%s2 + $0x8] sm:$0xff] %v1689
  %1698 = vst [vmem:[%s2 + $0x10] sm:$0xff] %v1690
  %1699 = vst [vmem:[%s2 + $0x18] sm:$0xff] %v1691
  %1700 = vst [vmem:[%s2 + $0x20] sm:$0xff] %v1692
  %1701 = vst [vmem:[%s2 + $0x28] sm:$0xff] %v1693
  %1702 = vst [vmem:[%s2 + $0x30] sm:$0xff] %v1694
  %1703 = vst [vmem:[%s2 + $0x38] sm:$0xff] %v1695
  // Predicated region
  $region10: #{model_forward.7} parent=0 // pred_check
    _
  $region11: #{model_forward.7} parent=0 // pred_check_branch
    %1705 = sbr.rel (0) target = $region13
  $region12: #{model_forward.7} parent=0 // pred_region
    _
  $region13: #{model_forward.7} parent=0 // pred_fallthru
    _
  // Predicated region
  $region14: #{model_forward.7} parent=0 // pred_check
    _
  $region15: #{model_forward.7} parent=0 // pred_check_branch
    %1707 = sbr.rel (0) target = $region17
  $region16: #{model_forward.7} parent=0 // pred_region
    _
  $region17: #{model_forward.7} parent=0 // pred_fallthru
    _

// kernel: model_forward.5
$region0: #{model_forward.5}
  #allocation0 [shape = 'u32[]', space=smem, size = 0x4, offset = 0x4, fixed_abs, tag = 'smem constant byte address 0x4 - core index']
  #allocation1 [shape = 'u32[144,128]{1,0:T(1,128)}', space=vmem, size = 0x12000, scoped, tag = 'internal scratch']
  %s0 = inlined_call_operand.vmem [shape: f32[2,16,32], index: 0, kind: input, shape index: {}]
  %s1 = inlined_call_operand.vmem [shape: f32[128,256], index: 1, kind: input, shape index: {}]
  %s2 = inlined_call_operand.vmem [shape: f32[2,8,256], index: 2, kind: output, shape index: {}]
  %s3 = sld [smem:[#allocation0]]
  $region41: #{model_forward.5} parent=0
    _
  %s5 = ssub.s32 1, %s3
  %s6 = scalar_select 0, %s5, %s3
  loop: start=0, step=1, limit=4
  $region2: #{model_forward.5} parent=0 // loop_pre_header
    _
  $region3: #{model_forward.5} parent=0 // loop_header
    %s8 = sphi 0, %s12
    %p9 = scmp.ge.s32.totalorder %s8, 4
    %s15 = sphi 0, %s27
    %s16 = sphi 0, %s23
    %s17 = sphi 0, %s15
    %s18 = sphi 0, %s16
    %s19 = sphi 0, %s17
    %s20 = sphi 0, %s18
    %s30 = sphi 0, %s32
    %s33 = sphi 0, %s30
    %s34 = sphi 0, %s33
    %s50 = sphi 0, %s34
    %s54 = sphi 0, %s54
    %s56 = sphi 0, %s54
    %s57 = sphi 0, %s56
    %s71 = sphi 0, %s57
    %s79 = sphi 0, %s81
    %s82 = sphi 0, %s79
    %s83 = sphi 0, %s82
    %s99 = sphi 0, %s83
  $region4: #{model_forward.5} parent=0 // loop_header_branch
    %11 = sbr.rel (%p9) target = $region8
  $region5: #{model_forward.5} parent=0 // loop_body
    %s13 = ssub.s32 %s8, 1
    %s14 = ssub.s32 %s8, 2
    %s21 = sadd.s32 1, %s16
    %p22 = scmp.ge.s32.totalorder %s21, 1
    %s23 = scalar_select %p22, 0, %s21
    %s24 = sadd.s32 1, %s15
    %s25 = scalar_select %p22, %s24, %s15
    %p26 = scmp.ge.s32.totalorder %s25, 2
    %s27 = scalar_select %p26, 0, %s25
    %s28 = ssub.s32 %s15, %s27
    %p29 = scmp.eq.s32.totalorder %s28, 0
    %s31 = sadd.s32 %s30, 1
    %s32 = scalar_select %p29, %s30, %s31
    %p35 = pneg %p29
    %p36 = scmp.eq.s32.totalorder %s8, 1
    %p37 = por %p35, %p36
    %p38 = scmp.ne.s32.totalorder %s30, %s33
    %p39 = scmp.eq.s32.totalorder %s8, 0
    %p40 = por %p38, %p39
    %p41 = scmp.ne.s32.totalorder %s30, %s33
    %p42 = scmp.eq.s32.totalorder %s13, 1
    %p43 = por %p41, %p42
    %p44 = scmp.ne.s32.totalorder %s33, %s34
    %p45 = scmp.eq.s32.totalorder %s13, 0
    %p46 = por %p44, %p45
    %p47 = scmp.ne.s32.totalorder %s33, %s34
    %p48 = scmp.eq.s32.totalorder %s14, 1
    %p49 = por %p47, %p48
    %p51 = scmp.ne.s32.totalorder %s34, %s50
    %p52 = scmp.eq.s32.totalorder %s14, 0
    %p53 = por %p51, %p52
    %s55 = sadd.s32 %s54, 1
    %p58 = scmp.eq.s32.totalorder %s8, 1
    %p59 = scmp.ne.s32.totalorder %s54, %s56
    %p60 = scmp.eq.s32.totalorder %s8, 0
    %p61 = por %p59, %p60
    %p62 = scmp.ne.s32.totalorder %s54, %s56
    %p63 = scmp.eq.s32.totalorder %s13, 1
    %p64 = por %p62, %p63
    %p65 = scmp.ne.s32.totalorder %s56, %s57
    %p66 = scmp.eq.s32.totalorder %s13, 0
    %p67 = por %p65, %p66
    %p68 = scmp.ne.s32.totalorder %s56, %s57
    %p69 = scmp.eq.s32.totalorder %s14, 1
    %p70 = por %p68, %p69
    %p72 = scmp.ne.s32.totalorder %s57, %s71
    %p73 = scmp.eq.s32.totalorder %s14, 0
    %p74 = por %p72, %p73
    %s75 = ssub.s32 %s15, %s27
    %s76 = ssub.s32 %s16, %s23
    %s77 = sor.u32 %s75, %s76
    %p78 = scmp.eq.s32.totalorder %s77, 0
    %s80 = sadd.s32 %s79, 1
    %s81 = scalar_select %p78, %s79, %s80
    %p84 = pneg %p78
    %p85 = scmp.eq.s32.totalorder %s8, 1
    %p86 = por %p84, %p85
    %p87 = scmp.ne.s32.totalorder %s79, %s82
    %p88 = scmp.eq.s32.totalorder %s8, 0
    %p89 = por %p87, %p88
    %p90 = scmp.ne.s32.totalorder %s79, %s82
    %p91 = scmp.eq.s32.totalorder %s13, 1
    %p92 = por %p90, %p91
    %p93 = scmp.ne.s32.totalorder %s82, %s83
    %p94 = scmp.eq.s32.totalorder %s13, 0
    %p95 = por %p93, %p94
    %p96 = scmp.ne.s32.totalorder %s82, %s83
    %p97 = scmp.eq.s32.totalorder %s14, 1
    %p98 = por %p96, %p97
    %p100 = scmp.ne.s32.totalorder %s83, %s99
    %p101 = scmp.eq.s32.totalorder %s14, 0
    %p102 = por %p100, %p101
    %p103 = scmp.le.s32.totalorder 1, %s8
    %p104 = scmp.lt.s32.totalorder %s8, 3
    %p105 = pnand %p103, %p104
    %p106 = pneg %p105
    // Predicated region
    $region9: #{model_forward.5} parent=5 // pred_check
      _
    $region10: #{model_forward.5} parent=5 // pred_check_branch
      %108 = sbr.rel (%p105) target = $region12
    $region11: #{model_forward.5} parent=5 // pred_region
      %s109 = ssub.s32 %s8, 1
      // Predicated region
      $region13: #{model_forward.5} parent=11 // pred_check
        %p110 = pneg %p67
      $region14: #{model_forward.5} parent=11 // pred_check_branch
        %112 = sbr.rel (%p110) target = $region16
      $region15: #{model_forward.5} parent=11 // pred_region
        _
      $region16: #{model_forward.5} parent=11 // pred_fallthru
        _
    $region12: #{model_forward.5} parent=5 // pred_fallthru
      _
    %p113 = scmp.lt.s32.totalorder %s8, 2
    // Predicated region
    $region17: #{model_forward.5} parent=5 // pred_check
      %p114 = pneg %p113
    $region18: #{model_forward.5} parent=5 // pred_check_branch
      %116 = sbr.rel (%p114) target = $region20
    $region19: #{model_forward.5} parent=5 // pred_region
      // Predicated region
      $region21: #{model_forward.5} parent=19 // pred_check
        %p117 = pneg %p40
      $region22: #{model_forward.5} parent=19 // pred_check_branch
        %119 = sbr.rel (%p117) target = $region24
      $region23: #{model_forward.5} parent=19 // pred_region
        %p120 = scmp.lt.s32.totalorder %s15, 1
        %s121 = scalar_select %p120, %s15, 1
        %s122 = smul.addr %s121, 2
        %s123 = smul.addr %s122, 8
        %s124 = scalar_lea.vmem %s0, %s123
      $region24: #{model_forward.5} parent=19 // pred_fallthru
        _
    $region20: #{model_forward.5} parent=5 // pred_fallthru
      _
    %p125 = scmp.le.s32.totalorder 1, %s8
    %p126 = scmp.lt.s32.totalorder %s8, 3
    %p127 = pnand %p125, %p126
    %p128 = pneg %p127
    // Predicated region
    $region25: #{model_forward.5} parent=5 // pred_check
      _
    $region26: #{model_forward.5} parent=5 // pred_check_branch
      %130 = sbr.rel (%p127) target = $region28
    $region27: #{model_forward.5} parent=5 // pred_region
      %s131 = ssub.s32 %s8, 1
      %p132 = scmp.lt.s32.totalorder %s17, 1
      %s133 = scalar_select %p132, %s17, 1
      %s134 = smul.addr %s133, 2
      %s135 = smul.addr %s134, 8
      %s136 = scalar_lea.vmem %s0, %s135
      %p137 = pneg %p46
      %p138 = pneg %p43
      %p139 = pneg %p67
      %p140 = pneg %p64
      %p141 = pneg %p95
      %p142 = pneg %p92
      %p143 = scmp.lt.s32.totalorder %s17, 1
      %s144 = scalar_select %p143, %s17, 1
      %p145 = scmp.lt.s32.totalorder %s18, 0
      %s146 = scalar_select %p145, %s18, 0
      %s147 = smul.addr %s146, 2
      %s148 = smul.addr %s144, 2
      %s149 = sadd.s32 %s147, %s148
      %s150 = smul.addr %s149, 8
      %s151 = scalar_lea.vmem %s2, %s150
      %p152 = scmp.lt.s32.totalorder %s17, 1
      %s153 = scalar_select %p152, %s17, 1
      %s154 = smul.addr %s153, 2
      %s155 = smul.addr %s154, 8
      %s156 = scalar_lea.vmem %s0, %s155
      %p157 = scmp.lt.s32.totalorder %s17, 1
      %s158 = scalar_select %p157, %s17, 1
      %p159 = scmp.lt.s32.totalorder %s18, 0
      %s160 = scalar_select %p159, %s18, 0
      %s161 = smul.addr %s160, 2
      %s162 = smul.addr %s158, 2
      %s163 = sadd.s32 %s161, %s162
      %s164 = smul.addr %s163, 8
      %s165 = scalar_lea.vmem %s2, %s164
      %s166 = smul.u32 %s18, 8
      %s167 = scalar_lea.vmem %s156, %s166
      %v168 = vld [vmem:[%s167] sm:$0xff]
      %v169 = vld [vmem:[%s167 + $0x8] sm:$0xff]
      %v170 = vld [vmem:[%s1] sm:$0xff]
      %v171 = vld [vmem:[%s1 + $0x8] sm:$0xff]
      %v172 = vld [vmem:[%s1 + $0x10] sm:$0xff]
      %v173 = vld [vmem:[%s1 + $0x18] sm:$0xff]
      %v174 = vld [vmem:[%s1 + $0x20] sm:$0xff]
      %v175 = vld [vmem:[%s1 + $0x28] sm:$0xff]
      %v176 = vld [vmem:[%s1 + $0x30] sm:$0xff]
      %v177 = vld [vmem:[%s1 + $0x38] sm:$0xff]
      %v178 = vld [vmem:[%s1 + $0x40] sm:$0xff]
      %v179 = vld [vmem:[%s1 + $0x48] sm:$0xff]
      %v180 = vld [vmem:[%s1 + $0x50] sm:$0xff]
      %v181 = vld [vmem:[%s1 + $0x58] sm:$0xff]
      %v182 = vld [vmem:[%s1 + $0x60] sm:$0xff]
      %v183 = vld [vmem:[%s1 + $0x68] sm:$0xff]
      %v184 = vld [vmem:[%s1 + $0x70] sm:$0xff]
      %v185 = vld [vmem:[%s1 + $0x78] sm:$0xff]
      %vm188 = vcmask 1046528
      %v189 = vrot.slane %v168, 1
      %v190 = vrot.slane %v169, 1
      %v191 = vsel %vm188, %v189, %v190
      %vm192 = vcmask 261120
      %v193 = vsel %vm192, %v191, 0
      %195 = vmatprep.subr.mxu0 %v179
      %196 = vmatpush1.msra.mxu0 %v178
      %197 = vmatprep.subr.mxu0 %v181
      %198 = vmatpush1.msra.mxu0 %v180
      %199 = vmatprep.subr.mxu0 %v183
      %200 = vmatpush1.msra.mxu0 %v182
      %201 = vmatprep.subr.mxu0 %v185
      %202 = vmatpush1.msra.mxu0 %v184
      %203 = vmatprep.subr.mxu0 0.0
      %204 = vmatpush1.msra.mxu0 0.0
      %205 = vmatprep.subr.mxu0 0.0
      %206 = vmatpush1.msra.mxu0 0.0
      %207 = vmatprep.subr.mxu0 0.0
      %208 = vmatpush1.msra.mxu0 0.0
      %209 = vmatprep.subr.mxu0 0.0
      %210 = vmatpush1.msra.mxu0 0.0
      %211 = vmatprep.subr.mxu0 0.0
      %212 = vmatpush1.msra.mxu0 0.0
      %213 = vmatprep.subr.mxu0 0.0
      %214 = vmatpush1.msra.mxu0 0.0
      %215 = vmatprep.subr.mxu0 0.0
      %216 = vmatpush1.msra.mxu0 0.0
      %217 = vmatprep.subr.mxu0 0.0
      %218 = vmatpush1.msra.mxu0 0.0
      %219 = vmatprep.subr.mxu0 0.0
      %220 = vmatpush1.msra.mxu0 0.0
      %221 = vmatprep.subr.mxu0 0.0
      %222 = vmatpush1.msra.mxu0 0.0
      %223 = vmatprep.subr.mxu0 0.0
      %224 = vmatpush1.msra.mxu0 0.0
      %225 = vmatprep.subr.mxu0 0.0
      %226 = vmatpush1.msra.mxu0 0.0
      %227 = vmatprep.subr.mxu0 0.0
      %228 = vmatpush1.msra.mxu0 0.0
      %229 = vmatprep.subr.mxu0 0.0
      %230 = vmatpush1.msra.mxu0 0.0
      %231 = vmatprep.subr.mxu0 0.0
      %232 = vmatpush1.msra.mxu0 0.0
      %233 = vmatprep.subr.mxu0 0.0
      %234 = vmatpush1.msra.mxu0 0.0
      %235 = vmatprep.subr.mxu0 0.0
      %236 = vmatpush1.msra.mxu0 0.0
      %237 = vmatprep.subr.mxu0 0.0
      %238 = vmatpush1.msra.mxu0 0.0
      %239 = vmatprep.subr.mxu0 0.0
      %240 = vmatpush1.msra.mxu0 0.0
      %241 = vmatprep.subr.mxu0 0.0
      %242 = vmatpush1.msra.mxu0 0.0
      %243 = vmatprep.subr.mxu0 0.0
      %244 = vmatpush1.msra.mxu0 0.0
      %245 = vmatprep.subr.mxu0 0.0
      %246 = vmatpush1.msra.mxu0 0.0
      %247 = vmatprep.subr.mxu0 0.0
      %248 = vmatpush1.msra.mxu0 0.0
      %249 = vmatprep.subr.mxu0 0.0
      %250 = vmatpush1.msra.mxu0 0.0
      %251 = vmatprep.subr.mxu0 0.0
      %252 = vmatpush1.msra.mxu0 0.0
      %253 = vmatprep.subr.mxu0 0.0
      %254 = vmatpush1.msra.mxu0 0.0
      %255 = vmatprep.subr.mxu0 0.0
      %256 = vmatpush1.msra.mxu0 0.0
      %257 = vmatprep.subr.mxu0 0.0
      %258 = vmatpush1.msra.mxu0 0.0
      %259 = vmatprep.mubr.f32.mxu0 0.0
      %260 = vmatmul.mubr.f32.gmra.mrb[0].mxu0 %v193
      %v261 = vpop.f32.mrb[0].mxu0
      %v262 = vadd.f32 0.0, %v261
      %v263 = vpop.f32.mrb[0].mxu0
      %v264 = vadd.f32 0.0, %v263
      %265 = vdwg.mxu0
      %v266 = vsel %vm192, %v168, 0
      %268 = vmatprep.subr.mxu0 %v171
      %269 = vmatpush1.msra.mxu0 %v170
      %270 = vmatprep.subr.mxu0 %v173
      %271 = vmatpush1.msra.mxu0 %v172
      %272 = vmatprep.subr.mxu0 %v175
      %273 = vmatpush1.msra.mxu0 %v174
      %274 = vmatprep.subr.mxu0 %v177
      %275 = vmatpush1.msra.mxu0 %v176
      %276 = vmatprep.subr.mxu0 0.0
      %277 = vmatpush1.msra.mxu0 0.0
      %278 = vmatprep.subr.mxu0 0.0
      %279 = vmatpush1.msra.mxu0 0.0
      %280 = vmatprep.subr.mxu0 0.0
      %281 = vmatpush1.msra.mxu0 0.0
      %282 = vmatprep.subr.mxu0 0.0
      %283 = vmatpush1.msra.mxu0 0.0
      %284 = vmatprep.subr.mxu0 0.0
      %285 = vmatpush1.msra.mxu0 0.0
      %286 = vmatprep.subr.mxu0 0.0
      %287 = vmatpush1.msra.mxu0 0.0
      %288 = vmatprep.subr.mxu0 0.0
      %289 = vmatpush1.msra.mxu0 0.0
      %290 = vmatprep.subr.mxu0 0.0
      %291 = vmatpush1.msra.mxu0 0.0
      %292 = vmatprep.subr.mxu0 0.0
      %293 = vmatpush1.msra.mxu0 0.0
      %294 = vmatprep.subr.mxu0 0.0
      %295 = vmatpush1.msra.mxu0 0.0
      %296 = vmatprep.subr.mxu0 0.0
      %297 = vmatpush1.msra.mxu0 0.0
      %298 = vmatprep.subr.mxu0 0.0
      %299 = vmatpush1.msra.mxu0 0.0
      %300 = vmatprep.subr.mxu0 0.0
      %301 = vmatpush1.msra.mxu0 0.0
      %302 = vmatprep.subr.mxu0 0.0
      %303 = vmatpush1.msra.mxu0 0.0
      %304 = vmatprep.subr.mxu0 0.0
      %305 = vmatpush1.msra.mxu0 0.0
      %306 = vmatprep.subr.mxu0 0.0
      %307 = vmatpush1.msra.mxu0 0.0
      %308 = vmatprep.subr.mxu0 0.0
      %309 = vmatpush1.msra.mxu0 0.0
      %310 = vmatprep.subr.mxu0 0.0
      %311 = vmatpush1.msra.mxu0 0.0
      %312 = vmatprep.subr.mxu0 0.0
      %313 = vmatpush1.msra.mxu0 0.0
      %314 = vmatprep.subr.mxu0 0.0
      %315 = vmatpush1.msra.mxu0 0.0
      %316 = vmatprep.subr.mxu0 0.0
      %317 = vmatpush1.msra.mxu0 0.0
      %318 = vmatprep.subr.mxu0 0.0
      %319 = vmatpush1.msra.mxu0 0.0
      %320 = vmatprep.subr.mxu0 0.0
      %321 = vmatpush1.msra.mxu0 0.0
      %322 = vmatprep.subr.mxu0 0.0
      %323 = vmatpush1.msra.mxu0 0.0
      %324 = vmatprep.subr.mxu0 0.0
      %325 = vmatpush1.msra.mxu0 0.0
      %326 = vmatprep.subr.mxu0 0.0
      %327 = vmatpush1.msra.mxu0 0.0
      %328 = vmatprep.subr.mxu0 0.0
      %329 = vmatpush1.msra.mxu0 0.0
      %330 = vmatprep.subr.mxu0 0.0
      %331 = vmatpush1.msra.mxu0 0.0
      %332 = vmatprep.mubr.f32.mxu0 0.0
      %333 = vmatmul.mubr.f32.gmra.mrb[0].mxu0 %v266
      %v334 = vpop.f32.mrb[0].mxu0
      %v335 = vadd.f32 %v262, %v334
      %v336 = vpop.f32.mrb[0].mxu0
      %v337 = vadd.f32 %v264, %v336
      %338 = vdwg.mxu0
      %v339 = vld [vmem:[%s1 + $0x80] sm:$0xff]
      %v340 = vld [vmem:[%s1 + $0x88] sm:$0xff]
      %v341 = vld [vmem:[%s1 + $0x90] sm:$0xff]
      %v342 = vld [vmem:[%s1 + $0x98] sm:$0xff]
      %v343 = vld [vmem:[%s1 + $0xa0] sm:$0xff]
      %v344 = vld [vmem:[%s1 + $0xa8] sm:$0xff]
      %v345 = vld [vmem:[%s1 + $0xb0] sm:$0xff]
      %v346 = vld [vmem:[%s1 + $0xb8] sm:$0xff]
      %vm347 = vcmask 1045504
      %v348 = vrot.slane %v168, 2
      %v349 = vrot.slane %v169, 2
      %v350 = vsel %vm347, %v348, %v349
      %v351 = vsel %vm192, %v350, 0
      %353 = vmatprep.subr.mxu0 %v340
      %354 = vmatpush1.msra.mxu0 %v339
      %355 = vmatprep.subr.mxu0 %v342
      %356 = vmatpush1.msra.mxu0 %v341
      %357 = vmatprep.subr.mxu0 %v344
      %358 = vmatpush1.msra.mxu0 %v343
      %359 = vmatprep.subr.mxu0 %v346
      %360 = vmatpush1.msra.mxu0 %v345
      %361 = vmatprep.subr.mxu0 0.0
      %362 = vmatpush1.msra.mxu0 0.0
      %363 = vmatprep.subr.mxu0 0.0
      %364 = vmatpush1.msra.mxu0 0.0
      %365 = vmatprep.subr.mxu0 0.0
      %366 = vmatpush1.msra.mxu0 0.0
      %367 = vmatprep.subr.mxu0 0.0
      %368 = vmatpush1.msra.mxu0 0.0
      %369 = vmatprep.subr.mxu0 0.0
      %370 = vmatpush1.msra.mxu0 0.0
      %371 = vmatprep.subr.mxu0 0.0
      %372 = vmatpush1.msra.mxu0 0.0
      %373 = vmatprep.subr.mxu0 0.0
      %374 = vmatpush1.msra.mxu0 0.0
      %375 = vmatprep.subr.mxu0 0.0
      %376 = vmatpush1.msra.mxu0 0.0
      %377 = vmatprep.subr.mxu0 0.0
      %378 = vmatpush1.msra.mxu0 0.0
      %379 = vmatprep.subr.mxu0 0.0
      %380 = vmatpush1.msra.mxu0 0.0
      %381 = vmatprep.subr.mxu0 0.0
      %382 = vmatpush1.msra.mxu0 0.0
      %383 = vmatprep.subr.mxu0 0.0
      %384 = vmatpush1.msra.mxu0 0.0
      %385 = vmatprep.subr.mxu0 0.0
      %386 = vmatpush1.msra.mxu0 0.0
      %387 = vmatprep.subr.mxu0 0.0
      %388 = vmatpush1.msra.mxu0 0.0
      %389 = vmatprep.subr.mxu0 0.0
      %390 = vmatpush1.msra.mxu0 0.0
      %391 = vmatprep.subr.mxu0 0.0
      %392 = vmatpush1.msra.mxu0 0.0
      %393 = vmatprep.subr.mxu0 0.0
      %394 = vmatpush1.msra.mxu0 0.0
      %395 = vmatprep.subr.mxu0 0.0
      %396 = vmatpush1.msra.mxu0 0.0
      %397 = vmatprep.subr.mxu0 0.0
      %398 = vmatpush1.msra.mxu0 0.0
      %399 = vmatprep.subr.mxu0 0.0
      %400 = vmatpush1.msra.mxu0 0.0
      %401 = vmatprep.subr.mxu0 0.0
      %402 = vmatpush1.msra.mxu0 0.0
      %403 = vmatprep.subr.mxu0 0.0
      %404 = vmatpush1.msra.mxu0 0.0
      %405 = vmatprep.subr.mxu0 0.0
      %406 = vmatpush1.msra.mxu0 0.0
      %407 = vmatprep.subr.mxu0 0.0
      %408 = vmatpush1.msra.mxu0 0.0
      %409 = vmatprep.subr.mxu0 0.0
      %410 = vmatpush1.msra.mxu0 0.0
      %411 = vmatprep.subr.mxu0 0.0
      %412 = vmatpush1.msra.mxu0 0.0
      %413 = vmatprep.subr.mxu0 0.0
      %414 = vmatpush1.msra.mxu0 0.0
      %415 = vmatprep.subr.mxu0 0.0
      %416 = vmatpush1.msra.mxu0 0.0
      %417 = vmatprep.mubr.f32.mxu0 0.0
      %418 = vmatmul.mubr.f32.gmra.mrb[0].mxu0 %v351
      %v419 = vpop.f32.mrb[0].mxu0
      %v420 = vadd.f32 0.0, %v419
      %v421 = vpop.f32.mrb[0].mxu0
      %v422 = vadd.f32 0.0, %v421
      %423 = vdwg.mxu0
      %v424 = vadd.f32 %v335, %v420
      %v425 = vadd.f32 %v337, %v422
      %v426 = vld [vmem:[%s1 + $0xc0] sm:$0xff]
      %v427 = vld [vmem:[%s1 + $0xc8] sm:$0xff]
      %v428 = vld [vmem:[%s1 + $0xd0] sm:$0xff]
      %v429 = vld [vmem:[%s1 + $0xd8] sm:$0xff]
      %v430 = vld [vmem:[%s1 + $0xe0] sm:$0xff]
      %v431 = vld [vmem:[%s1 + $0xe8] sm:$0xff]
      %v432 = vld [vmem:[%s1 + $0xf0] sm:$0xff]
      %v433 = vld [vmem:[%s1 + $0xf8] sm:$0xff]
      %vm434 = vcmask 1044480
      %v435 = vrot.slane %v168, 3
      %v436 = vrot.slane %v169, 3
      %v437 = vsel %vm434, %v435, %v436
      %v438 = vsel %vm192, %v437, 0
      %440 = vmatprep.subr.mxu0 %v427
      %441 = vmatpush1.msra.mxu0 %v426
      %442 = vmatprep.subr.mxu0 %v429
      %443 = vmatpush1.msra.mxu0 %v428
      %444 = vmatprep.subr.mxu0 %v431
      %445 = vmatpush1.msra.mxu0 %v430
      %446 = vmatprep.subr.mxu0 %v433
      %447 = vmatpush1.msra.mxu0 %v432
      %448 = vmatprep.subr.mxu0 0.0
      %449 = vmatpush1.msra.mxu0 0.0
      %450 = vmatprep.subr.mxu0 0.0
      %451 = vmatpush1.msra.mxu0 0.0
      %452 = vmatprep.subr.mxu0 0.0
      %453 = vmatpush1.msra.mxu0 0.0
      %454 = vmatprep.subr.mxu0 0.0
      %455 = vmatpush1.msra.mxu0 0.0
      %456 = vmatprep.subr.mxu0 0.0
      %457 = vmatpush1.msra.mxu0 0.0
      %458 = vmatprep.subr.mxu0 0.0
      %459 = vmatpush1.msra.mxu0 0.0
      %460 = vmatprep.subr.mxu0 0.0
      %461 = vmatpush1.msra.mxu0 0.0
      %462 = vmatprep.subr.mxu0 0.0
      %463 = vmatpush1.msra.mxu0 0.0
      %464 = vmatprep.subr.mxu0 0.0
      %465 = vmatpush1.msra.mxu0 0.0
      %466 = vmatprep.subr.mxu0 0.0
      %467 = vmatpush1.msra.mxu0 0.0
      %468 = vmatprep.subr.mxu0 0.0
      %469 = vmatpush1.msra.mxu0 0.0
      %470 = vmatprep.subr.mxu0 0.0
      %471 = vmatpush1.msra.mxu0 0.0
      %472 = vmatprep.subr.mxu0 0.0
      %473 = vmatpush1.msra.mxu0 0.0
      %474 = vmatprep.subr.mxu0 0.0
      %475 = vmatpush1.msra.mxu0 0.0
      %476 = vmatprep.subr.mxu0 0.0
      %477 = vmatpush1.msra.mxu0 0.0
      %478 = vmatprep.subr.mxu0 0.0
      %479 = vmatpush1.msra.mxu0 0.0
      %480 = vmatprep.subr.mxu0 0.0
      %481 = vmatpush1.msra.mxu0 0.0
      %482 = vmatprep.subr.mxu0 0.0
      %483 = vmatpush1.msra.mxu0 0.0
      %484 = vmatprep.subr.mxu0 0.0
      %485 = vmatpush1.msra.mxu0 0.0
      %486 = vmatprep.subr.mxu0 0.0
      %487 = vmatpush1.msra.mxu0 0.0
      %488 = vmatprep.subr.mxu0 0.0
      %489 = vmatpush1.msra.mxu0 0.0
      %490 = vmatprep.subr.mxu0 0.0
      %491 = vmatpush1.msra.mxu0 0.0
      %492 = vmatprep.subr.mxu0 0.0
      %493 = vmatpush1.msra.mxu0 0.0
      %494 = vmatprep.subr.mxu0 0.0
      %495 = vmatpush1.msra.mxu0 0.0
      %496 = vmatprep.subr.mxu0 0.0
      %497 = vmatpush1.msra.mxu0 0.0
      %498 = vmatprep.subr.mxu0 0.0
      %499 = vmatpush1.msra.mxu0 0.0
      %500 = vmatprep.subr.mxu0 0.0
      %501 = vmatpush1.msra.mxu0 0.0
      %502 = vmatprep.subr.mxu0 0.0
      %503 = vmatpush1.msra.mxu0 0.0
      %504 = vmatprep.mubr.f32.mxu0 0.0
      %505 = vmatmul.mubr.f32.gmra.mrb[0].mxu0 %v438
      %v506 = vpop.f32.mrb[0].mxu0
      %v507 = vadd.f32 0.0, %v506
      %v508 = vpop.f32.mrb[0].mxu0
      %v509 = vadd.f32 0.0, %v508
      %510 = vdwg.mxu0
      %v511 = vadd.f32 %v424, %v507
      %v512 = vadd.f32 %v425, %v509
      %513 = vst [vmem:[%s165] sm:$0xff] %v511
      %514 = vst [vmem:[%s165 + $0x8] sm:$0xff] %v512
      %p515 = scmp.lt.s32.totalorder %s17, 1
      %s516 = scalar_select %p515, %s17, 1
      %p517 = scmp.lt.s32.totalorder %s18, 0
      %s518 = scalar_select %p517, %s18, 0
      %s519 = smul.addr %s518, 2
      %s520 = smul.addr %s516, 2
      %s521 = sadd.s32 %s519, %s520
      %s522 = smul.addr %s521, 8
      %s523 = scalar_lea.vmem %s2, %s522
      // Predicated region
      $region29: #{model_forward.5} parent=27 // pred_check
        %p524 = pneg %p92
      $region30: #{model_forward.5} parent=27 // pred_check_branch
        %526 = sbr.rel (%p524) target = $region32
      $region31: #{model_forward.5} parent=27 // pred_region
        _
      $region32: #{model_forward.5} parent=27 // pred_fallthru
        _
    $region28: #{model_forward.5} parent=5 // pred_fallthru
      _
    %p527 = scmp.le.s32.totalorder 2, %s8
    // Predicated region
    $region33: #{model_forward.5} parent=5 // pred_check
      %p528 = pneg %p527
    $region34: #{model_forward.5} parent=5 // pred_check_branch
      %530 = sbr.rel (%p528) target = $region36
    $region35: #{model_forward.5} parent=5 // pred_region
      %s531 = ssub.s32 %s8, 2
      // Predicated region
      $region37: #{model_forward.5} parent=35 // pred_check
        %p532 = pneg %p98
      $region38: #{model_forward.5} parent=35 // pred_check_branch
        %534 = sbr.rel (%p532) target = $region40
      $region39: #{model_forward.5} parent=35 // pred_region
        %p535 = scmp.lt.s32.totalorder %s19, 1
        %s536 = scalar_select %p535, %s19, 1
        %p537 = scmp.lt.s32.totalorder %s20, 0
        %s538 = scalar_select %p537, %s20, 0
        %s539 = smul.addr %s538, 2
        %s540 = smul.addr %s536, 2
        %s541 = sadd.s32 %s539, %s540
        %s542 = smul.addr %s541, 8
        %s543 = scalar_lea.vmem %s2, %s542
      $region40: #{model_forward.5} parent=35 // pred_fallthru
        _
    $region36: #{model_forward.5} parent=5 // pred_fallthru
      _
  $region6: #{model_forward.5} parent=0 // loop_footer
    %s12 = sadd.s32 1, %s8
  $region7: #{model_forward.5} parent=0 // loop_footer_branch
    %7 = sbr.rel target = $region3
  $region8: #{model_forward.5} parent=0 // loop_exit
    _

</llo_original>
